<compile_context>
chip_gen: v7x
topology: tpu7x:2x2x1
jax: 0.10.0
libtpu: 0.0.40
codegen_flags: <defaults>
</compile_context>

<pallas_src>
import functools

import numpy as np
import jax
import jax.numpy as jnp
from jax import lax
from jax.experimental import pallas as pl
from jax.experimental.pallas import tpu as pltpu


def _upconv_kernel(x_ref, w1_ref, b1_ref, a_ref, o_ref, *,
                   C, H, W, OH, OW, stride, ksize, pad):
    """One batch-block step.

    x_ref  : (bn, C*H*W)   VMEM  flattened input block (lane-dense spatial plane)
    w1_ref : (1, C)        SMEM  1x1-conv weight
    b1_ref : (1, 1)        SMEM  1x1-conv bias
    a_ref  : (K, W, OW)    VMEM  folded horizontal tap/interleave matrices
    o_ref  : (bn, OH*OW)   VMEM  dense output block (row-major, lane-dense)
    """
    s, K, p = stride, ksize, pad
    P = H * W
    bn = x_ref.shape[0]

    # ---- 1x1 conv over channels (+ bias): tiny C -> scalar*tile VPU chain ----
    # TODO(synk): for large C, stage w1 in VMEM and contract on the MXU.
    y = x_ref[:, 0:P].astype(jnp.float32) * w1_ref[0, 0]
    for c in range(1, C):
        y = y + x_ref[:, c * P:(c + 1) * P].astype(jnp.float32) * w1_ref[0, c]
    y = y + b1_ref[0, 0]

    # ---- MemoryEfficientSwish: y * sigmoid(y) (exp rides the EUP slot) ----
    y = y * pl.reciprocal(1.0 + jnp.exp(-y), approx=False)

    # ---- transposed conv, one dense output row at a time ----
    # out[n, oh, ow] = sum_{kh: (oh+p-kh) % s == 0, 0 <= i < H}
    #                      sum_j y[n, i, j] * A[kh][j, ow],   i = (oh+p-kh)//s
    # A[kh] folds the horizontal kernel taps + stride interleave (built in the
    # wrapper), so the MXU does the horizontal work and stores land directly in
    # dense row-major order -> no post-kernel transpose pass over HBM.
    for oh in range(OH):
        acc = None
        for kh in range(K):
            if (oh + p - kh) % s != 0:
                continue
            i = (oh + p - kh) // s
            if i < 0 or i >= H:
                continue
            term = jnp.dot(y[:, i * W:(i + 1) * W], a_ref[kh],
                           preferred_element_type=jnp.float32)
            acc = term if acc is None else acc + term
        if acc is None:
            acc = jnp.zeros((bn, OW), jnp.float32)
        o_ref[:, oh * OW:(oh + 1) * OW] = acc


def _vmem_capacity_bytes():
    try:
        return int(pltpu.get_tpu_info().vmem_capacity_bytes)
    except Exception:
        return 64 * 1024 * 1024   # conservative fallback (v7x per-TC size)


def upconv_block_transpose(x, w1, b1, wt, *, up_scale, padding):
    N, C, H, W = x.shape
    s = int(up_scale)
    K = int(wt.shape[0])
    p = int(padding)
    P = H * W
    OH = (H - 1) * s - 2 * p + K
    OW = (W - 1) * s - 2 * p + K

    # Folded horizontal tap matrices: A[kh][j, ow] = wt[kh, kw] iff ow = j*s - p + kw.
    M = np.zeros((K, W, OW), np.float32)
    for kw in range(K):
        for j in range(W):
            ow = j * s - p + kw
            if 0 <= ow < OW:
                M[kw, j, ow] = 1.0
    A = jnp.einsum('hk,kjo->hjo', wt.astype(jnp.float32), jnp.asarray(M))

    # Flat, lane-dense layouts (free reshapes in the wrapper).
    xr = x.reshape(N, C * P)

    # ---- batch block sizing: multiple of 8, ~4 MiB per step, bounded vreg use ----
    if N <= 8:
        bn = N
    else:
        row_bytes = (C * P + OH * OW) * 4
        bn_budget = max(8, ((4 << 20) // max(row_bytes, 1)) // 8 * 8)   # ~4 MiB/step
        bn_vregs = max(8, ((128 * 1024) // (P * 4)) // 8 * 8)           # y in ~32 vregs
        bn = min(N, bn_budget, bn_vregs)
        if bn < N:
            bn = max(8, (bn // 8) * 8)
    grid = (pl.cdiv(N, bn),)
    # TODO(synk): for small N on v7x, tile over output rows too so both TCs get work.

    # ---- generation-aware scoped-VMEM budget ----
    cap = _vmem_capacity_bytes()
    block_bytes = bn * (C * P + OH * OW) * 4          # x block + out block
    a_bytes = K * W * OW * 4
    needed = 2 * block_bytes + 2 * a_bytes + (8 << 20)
    vmem_limit = int(min(int(0.75 * cap), max(needed, 16 << 20)))

    kernel = functools.partial(_upconv_kernel, C=C, H=H, W=W, OH=OH, OW=OW,
                               stride=s, ksize=K, pad=p)

    out_flat = pl.pallas_call(
        kernel,
        out_shape=jax.ShapeDtypeStruct((N, OH * OW), jnp.float32),
        grid=grid,
        in_specs=[
            pl.BlockSpec((bn, C * P), lambda n: (n, 0)),              # x (VMEM)
            pl.BlockSpec(memory_space=pltpu.MemorySpace.SMEM),        # w1 (1, C)
            pl.BlockSpec(memory_space=pltpu.MemorySpace.SMEM),        # b1 (1, 1)
            pl.BlockSpec((K, W, OW), lambda n: (0, 0, 0)),            # A  (VMEM)
        ],
        out_specs=pl.BlockSpec((bn, OH * OW), lambda n: (n, 0)),
        compiler_params=pltpu.CompilerParams(
            dimension_semantics=("parallel",),
            vmem_limit_bytes=vmem_limit,
        ),
    )(xr, w1, b1, A)

    # Row-major flat output -> NCHW is a free reshape (no transpose pass).
    return out_flat.reshape(N, 1, OH, OW)


def _reference(x, w1, b1, wt, *, up_scale, padding):
    s = up_scale
    K = wt.shape[0]
    p = padding
    y = jnp.einsum('nchw,c->nhw', x, w1[0]) + b1[0, 0]
    y = y * jax.nn.sigmoid(y)
    return lax.conv_general_dilated(
        y[:, None, :, :].astype(jnp.float32),
        jnp.flip(wt, (0, 1))[None, None, :, :].astype(jnp.float32),
        window_strides=(1, 1),
        padding=[(K - 1 - p, K - 1 - p)] * 2,
        lhs_dilation=(s, s),
        dimension_numbers=('NCHW', 'OIHW', 'NCHW'))


if __name__ == "__main__":
    N, C, H, W = 2, 4, 16, 16
    up_scale, padding = 2, 1
    K = 2 * up_scale

    key = jax.random.PRNGKey(0)
    kx, kw1, kb1, kwt = jax.random.split(key, 4)
    x = jax.random.normal(kx, (N, C, H, W), jnp.float32)
    # Conv2d(C, 1, kernel_size=1): weight (1, C, 1, 1) -> (1, C); bias (1,) -> (1, 1)
    w1 = jax.random.normal(kw1, (1, C), jnp.float32) * 0.5
    b1 = jax.random.normal(kb1, (1, 1), jnp.float32) * 0.1
    # ConvTranspose2d(1, 1, K, stride, padding, bias=False): weight (1,1,K,K) -> (K,K)
    wt = jax.random.normal(kwt, (K, K), jnp.float32) * 0.5

    out = upconv_block_transpose(x, w1, b1, wt, up_scale=up_scale,
                                 padding=padding)
    out = jax.block_until_ready(out)
    OH = (H - 1) * up_scale - 2 * padding + K
    OW = (W - 1) * up_scale - 2 * padding + K
    assert out.shape == (N, 1, OH, OW), out.shape

    ref = _reference(x, w1, b1, wt, up_scale=up_scale, padding=padding)
    if not np.allclose(np.asarray(out), np.asarray(ref), atol=1e-3, rtol=1e-3):
        raise AssertionError("Pallas kernel does not match reference")

    print("KERNEL_OK")
</pallas_src>

<mosaic_0001>
module attributes {stable_mosaic.version = 11 : i64} {
  func.func @_upconv_kernel(%arg0: i32, %arg1: memref<2x1024xf32, #tpu.memory_space<vmem>>, %arg2: memref<1x4xf32, #tpu.memory_space<smem>>, %arg3: memref<1x1xf32, #tpu.memory_space<smem>>, %arg4: memref<4x16x32xf32, #tpu.memory_space<vmem>>, %arg5: memref<2x1024xf32, #tpu.memory_space<vmem>>) attributes {dimension_semantics = [#tpu.dimension_semantics<parallel>], iteration_bounds = array<i64: 1>, scalar_prefetch = 0 : i64, scratch_operands = 0 : i64, tpu.core_type = #tpu.core_type<tc>, window_params = [{transform_indices = @transform_0, window_bounds = array<i64: 2, 1024>}, {transform_indices = @transform_1, window_bounds = array<i64: 1, 4>}, {transform_indices = @transform_2, window_bounds = array<i64: 1, 1>}, {pipeline_mode = #tpu.pipeline_mode<synchronous>, transform_indices = @transform_3, window_bounds = array<i64: 4, 16, 32>}, {transform_indices = @transform_4, window_bounds = array<i64: 2, 1024>}]} {
    %c0 = arith.constant 0 : index
    %c0_0 = arith.constant 0 : index
    %0 = vector.load %arg1[%c0, %c0_0] : memref<2x1024xf32, #tpu.memory_space<vmem>>, vector<2x256xf32>
    %c0_1 = arith.constant 0 : index
    %c0_2 = arith.constant 0 : index
    %1 = memref.load %arg2[%c0_1, %c0_2] : memref<1x4xf32, #tpu.memory_space<smem>>
    %2 = vector.broadcast %1 : f32 to vector<2x256xf32>
    %3 = arith.mulf %0, %2 : vector<2x256xf32>
    %c0_3 = arith.constant 0 : index
    %c256 = arith.constant 256 : index
    %4 = vector.load %arg1[%c0_3, %c256] : memref<2x1024xf32, #tpu.memory_space<vmem>>, vector<2x256xf32>
    %c0_4 = arith.constant 0 : index
    %c1 = arith.constant 1 : index
    %5 = memref.load %arg2[%c0_4, %c1] : memref<1x4xf32, #tpu.memory_space<smem>>
    %6 = vector.broadcast %5 : f32 to vector<2x256xf32>
    %7 = arith.mulf %4, %6 : vector<2x256xf32>
    %8 = arith.addf %3, %7 : vector<2x256xf32>
    %c0_5 = arith.constant 0 : index
    %c512 = arith.constant 512 : index
    %9 = vector.load %arg1[%c0_5, %c512] : memref<2x1024xf32, #tpu.memory_space<vmem>>, vector<2x256xf32>
    %c0_6 = arith.constant 0 : index
    %c2 = arith.constant 2 : index
    %10 = memref.load %arg2[%c0_6, %c2] : memref<1x4xf32, #tpu.memory_space<smem>>
    %11 = vector.broadcast %10 : f32 to vector<2x256xf32>
    %12 = arith.mulf %9, %11 : vector<2x256xf32>
    %13 = arith.addf %8, %12 : vector<2x256xf32>
    %c0_7 = arith.constant 0 : index
    %c768 = arith.constant 768 : index
    %14 = vector.load %arg1[%c0_7, %c768] : memref<2x1024xf32, #tpu.memory_space<vmem>>, vector<2x256xf32>
    %c0_8 = arith.constant 0 : index
    %c3 = arith.constant 3 : index
    %15 = memref.load %arg2[%c0_8, %c3] : memref<1x4xf32, #tpu.memory_space<smem>>
    %16 = vector.broadcast %15 : f32 to vector<2x256xf32>
    %17 = arith.mulf %14, %16 : vector<2x256xf32>
    %18 = arith.addf %13, %17 : vector<2x256xf32>
    %c0_9 = arith.constant 0 : index
    %c0_10 = arith.constant 0 : index
    %19 = memref.load %arg3[%c0_9, %c0_10] : memref<1x1xf32, #tpu.memory_space<smem>>
    %20 = vector.broadcast %19 : f32 to vector<2x256xf32>
    %21 = arith.addf %18, %20 : vector<2x256xf32>
    %cst = arith.constant 0.000000e+00 : f32
    %22 = vector.broadcast %cst : f32 to vector<2x256xf32>
    %23 = arith.subf %22, %21 : vector<2x256xf32>
    %24 = math.exp %23 : vector<2x256xf32>
    %cst_11 = arith.constant 1.000000e+00 : f32
    %25 = vector.broadcast %cst_11 : f32 to vector<2x256xf32>
    %26 = arith.addf %25, %24 : vector<2x256xf32>
    %27 = tpu.reciprocal %26 : vector<2x256xf32> -> vector<2x256xf32>
    %28 = arith.mulf %21, %27 : vector<2x256xf32>
    %29 = vector.extract_strided_slice %28 {offsets = [0, 0], sizes = [2, 16], strides = [1, 1]} : vector<2x256xf32> to vector<2x16xf32>
    %c1_12 = arith.constant 1 : index
    %c0_13 = arith.constant 0 : index
    %c0_14 = arith.constant 0 : index
    %30 = vector.load %arg4[%c1_12, %c0_13, %c0_14] : memref<4x16x32xf32, #tpu.memory_space<vmem>>, vector<1x16x32xf32>
    %31 = vector.shape_cast %30 : vector<1x16x32xf32> to vector<16x32xf32>
    %cst_15 = arith.constant dense<0.000000e+00> : vector<2x32xf32>
    %32 = tpu.matmul %29, %31, %cst_15 {dimension_numbers = #tpu.dot_dimension_numbers<[1], [0], [0], [1], [0, 0, 1, 1], [], []>} : vector<2x16xf32>, vector<16x32xf32>, vector<2x32xf32> -> vector<2x32xf32>
    %c0_16 = arith.constant 0 : index
    %c0_17 = arith.constant 0 : index
    %33 = vector.load %arg5[%c0_16, %c0_17] : memref<2x1024xf32, #tpu.memory_space<vmem>>, vector<2x32xf32>
    tpu.vector_store %arg5[%c0_16, %c0_17], %32 {strides = array<i32>} : memref<2x1024xf32, #tpu.memory_space<vmem>>, vector<2x32xf32>,
    %34 = vector.extract_strided_slice %28 {offsets = [0, 16], sizes = [2, 16], strides = [1, 1]} : vector<2x256xf32> to vector<2x16xf32>
    %c0_18 = arith.constant 0 : index
    %c0_19 = arith.constant 0 : index
    %c0_20 = arith.constant 0 : index
    %35 = vector.load %arg4[%c0_18, %c0_19, %c0_20] : memref<4x16x32xf32, #tpu.memory_space<vmem>>, vector<1x16x32xf32>
    %36 = vector.shape_cast %35 : vector<1x16x32xf32> to vector<16x32xf32>
    %cst_21 = arith.constant dense<0.000000e+00> : vector<2x32xf32>
    %37 = tpu.matmul %34, %36, %cst_21 {dimension_numbers = #tpu.dot_dimension_numbers<[1], [0], [0], [1], [0, 0, 1, 1], [], []>} : vector<2x16xf32>, vector<16x32xf32>, vector<2x32xf32> -> vector<2x32xf32>
    %38 = vector.extract_strided_slice %28 {offsets = [0, 0], sizes = [2, 16], strides = [1, 1]} : vector<2x256xf32> to vector<2x16xf32>
    %c2_22 = arith.constant 2 : index
    %c0_23 = arith.constant 0 : index
    %c0_24 = arith.constant 0 : index
    %39 = vector.load %arg4[%c2_22, %c0_23, %c0_24] : memref<4x16x32xf32, #tpu.memory_space<vmem>>, vector<1x16x32xf32>
    %40 = vector.shape_cast %39 : vector<1x16x32xf32> to vector<16x32xf32>
    %cst_25 = arith.constant dense<0.000000e+00> : vector<2x32xf32>
    %41 = tpu.matmul %38, %40, %cst_25 {dimension_numbers = #tpu.dot_dimension_numbers<[1], [0], [0], [1], [0, 0, 1, 1], [], []>} : vector<2x16xf32>, vector<16x32xf32>, vector<2x32xf32> -> vector<2x32xf32>
    %42 = arith.addf %37, %41 : vector<2x32xf32>
    %c0_26 = arith.constant 0 : index
    %c32 = arith.constant 32 : index
    %43 = vector.load %arg5[%c0_26, %c32] : memref<2x1024xf32, #tpu.memory_space<vmem>>, vector<2x32xf32>
    tpu.vector_store %arg5[%c0_26, %c32], %42 {strides = array<i32>} : memref<2x1024xf32, #tpu.memory_space<vmem>>, vector<2x32xf32>,
    %44 = vector.extract_strided_slice %28 {offsets = [0, 16], sizes = [2, 16], strides = [1, 1]} : vector<2x256xf32> to vector<2x16xf32>
    %c1_27 = arith.constant 1 : index
    %c0_28 = arith.constant 0 : index
    %c0_29 = arith.constant 0 : index
    %45 = vector.load %arg4[%c1_27, %c0_28, %c0_29] : memref<4x16x32xf32, #tpu.memory_space<vmem>>, vector<1x16x32xf32>
    %46 = vector.shape_cast %45 : vector<1x16x32xf32> to vector<16x32xf32>
    %cst_30 = arith.constant dense<0.000000e+00> : vector<2x32xf32>
    %47 = tpu.matmul %44, %46, %cst_30 {dimension_numbers = #tpu.dot_dimension_numbers<[1], [0], [0], [1], [0, 0, 1, 1], [], []>} : vector<2x16xf32>, vector<16x32xf32>, vector<2x32xf32> -> vector<2x32xf32>
    %48 = vector.extract_strided_slice %28 {offsets = [0, 0], sizes = [2, 16], strides = [1, 1]} : vector<2x256xf32> to vector<2x16xf32>
    %c3_31 = arith.constant 3 : index
    %c0_32 = arith.constant 0 : index
    %c0_33 = arith.constant 0 : index
    %49 = vector.load %arg4[%c3_31, %c0_32, %c0_33] : memref<4x16x32xf32, #tpu.memory_space<vmem>>, vector<1x16x32xf32>
    %50 = vector.shape_cast %49 : vector<1x16x32xf32> to vector<16x32xf32>
    %cst_34 = arith.constant dense<0.000000e+00> : vector<2x32xf32>
    %51 = tpu.matmul %48, %50, %cst_34 {dimension_numbers = #tpu.dot_dimension_numbers<[1], [0], [0], [1], [0, 0, 1, 1], [], []>} : vector<2x16xf32>, vector<16x32xf32>, vector<2x32xf32> -> vector<2x32xf32>
    %52 = arith.addf %47, %51 : vector<2x32xf32>
    %c0_35 = arith.constant 0 : index
    %c64 = arith.constant 64 : index
    %53 = vector.load %arg5[%c0_35, %c64] : memref<2x1024xf32, #tpu.memory_space<vmem>>, vector<2x32xf32>
    tpu.vector_store %arg5[%c0_35, %c64], %52 {strides = array<i32>} : memref<2x1024xf32, #tpu.memory_space<vmem>>, vector<2x32xf32>,
    %54 = vector.extract_strided_slice %28 {offsets = [0, 32], sizes = [2, 16], strides = [1, 1]} : vector<2x256xf32> to vector<2x16xf32>
    %c0_36 = arith.constant 0 : index
    %c0_37 = arith.constant 0 : index
    %c0_38 = arith.constant 0 : index
    %55 = vector.load %arg4[%c0_36, %c0_37, %c0_38] : memref<4x16x32xf32, #tpu.memory_space<vmem>>, vector<1x16x32xf32>
    %56 = vector.shape_cast %55 : vector<1x16x32xf32> to vector<16x32xf32>
    %cst_39 = arith.constant dense<0.000000e+00> : vector<2x32xf32>
    %57 = tpu.matmul %54, %56, %cst_39 {dimension_numbers = #tpu.dot_dimension_numbers<[1], [0], [0], [1], [0, 0, 1, 1], [], []>} : vector<2x16xf32>, vector<16x32xf32>, vector<2x32xf32> -> vector<2x32xf32>
    %58 = vector.extract_strided_slice %28 {offsets = [0, 16], sizes = [2, 16], strides = [1, 1]} : vector<2x256xf32> to vector<2x16xf32>
    %c2_40 = arith.constant 2 : index
    %c0_41 = arith.constant 0 : index
    %c0_42 = arith.constant 0 : index
    %59 = vector.load %arg4[%c2_40, %c0_41, %c0_42] : memref<4x16x32xf32, #tpu.memory_space<vmem>>, vector<1x16x32xf32>
    %60 = vector.shape_cast %59 : vector<1x16x32xf32> to vector<16x32xf32>
    %cst_43 = arith.constant dense<0.000000e+00> : vector<2x32xf32>
    %61 = tpu.matmul %58, %60, %cst_43 {dimension_numbers = #tpu.dot_dimension_numbers<[1], [0], [0], [1], [0, 0, 1, 1], [], []>} : vector<2x16xf32>, vector<16x32xf32>, vector<2x32xf32> -> vector<2x32xf32>
    %62 = arith.addf %57, %61 : vector<2x32xf32>
    %c0_44 = arith.constant 0 : index
    %c96 = arith.constant 96 : index
    %63 = vector.load %arg5[%c0_44, %c96] : memref<2x1024xf32, #tpu.memory_space<vmem>>, vector<2x32xf32>
    tpu.vector_store %arg5[%c0_44, %c96], %62 {strides = array<i32>} : memref<2x1024xf32, #tpu.memory_space<vmem>>, vector<2x32xf32>,
    %64 = vector.extract_strided_slice %28 {offsets = [0, 32], sizes = [2, 16], strides = [1, 1]} : vector<2x256xf32> to vector<2x16xf32>
    %c1_45 = arith.constant 1 : index
    %c0_46 = arith.constant 0 : index
    %c0_47 = arith.constant 0 : index
    %65 = vector.load %arg4[%c1_45, %c0_46, %c0_47] : memref<4x16x32xf32, #tpu.memory_space<vmem>>, vector<1x16x32xf32>
    %66 = vector.shape_cast %65 : vector<1x16x32xf32> to vector<16x32xf32>
    %cst_48 = arith.constant dense<0.000000e+00> : vector<2x32xf32>
    %67 = tpu.matmul %64, %66, %cst_48 {dimension_numbers = #tpu.dot_dimension_numbers<[1], [0], [0], [1], [0, 0, 1, 1], [], []>} : vector<2x16xf32>, vector<16x32xf32>, vector<2x32xf32> -> vector<2x32xf32>
    %68 = vector.extract_strided_slice %28 {offsets = [0, 16], sizes = [2, 16], strides = [1, 1]} : vector<2x256xf32> to vector<2x16xf32>
    %c3_49 = arith.constant 3 : index
    %c0_50 = arith.constant 0 : index
    %c0_51 = arith.constant 0 : index
    %69 = vector.load %arg4[%c3_49, %c0_50, %c0_51] : memref<4x16x32xf32, #tpu.memory_space<vmem>>, vector<1x16x32xf32>
    %70 = vector.shape_cast %69 : vector<1x16x32xf32> to vector<16x32xf32>
    %cst_52 = arith.constant dense<0.000000e+00> : vector<2x32xf32>
    %71 = tpu.matmul %68, %70, %cst_52 {dimension_numbers = #tpu.dot_dimension_numbers<[1], [0], [0], [1], [0, 0, 1, 1], [], []>} : vector<2x16xf32>, vector<16x32xf32>, vector<2x32xf32> -> vector<2x32xf32>
    %72 = arith.addf %67, %71 : vector<2x32xf32>
    %c0_53 = arith.constant 0 : index
    %c128 = arith.constant 128 : index
    %73 = vector.load %arg5[%c0_53, %c128] : memref<2x1024xf32, #tpu.memory_space<vmem>>, vector<2x32xf32>
    tpu.vector_store %arg5[%c0_53, %c128], %72 {strides = array<i32>} : memref<2x1024xf32, #tpu.memory_space<vmem>>, vector<2x32xf32>,
    %74 = vector.extract_strided_slice %28 {offsets = [0, 48], sizes = [2, 16], strides = [1, 1]} : vector<2x256xf32> to vector<2x16xf32>
    %c0_54 = arith.constant 0 : index
    %c0_55 = arith.constant 0 : index
    %c0_56 = arith.constant 0 : index
    %75 = vector.load %arg4[%c0_54, %c0_55, %c0_56] : memref<4x16x32xf32, #tpu.memory_space<vmem>>, vector<1x16x32xf32>
    %76 = vector.shape_cast %75 : vector<1x16x32xf32> to vector<16x32xf32>
    %cst_57 = arith.constant dense<0.000000e+00> : vector<2x32xf32>
    %77 = tpu.matmul %74, %76, %cst_57 {dimension_numbers = #tpu.dot_dimension_numbers<[1], [0], [0], [1], [0, 0, 1, 1], [], []>} : vector<2x16xf32>, vector<16x32xf32>, vector<2x32xf32> -> vector<2x32xf32>
    %78 = vector.extract_strided_slice %28 {offsets = [0, 32], sizes = [2, 16], strides = [1, 1]} : vector<2x256xf32> to vector<2x16xf32>
    %c2_58 = arith.constant 2 : index
    %c0_59 = arith.constant 0 : index
    %c0_60 = arith.constant 0 : index
    %79 = vector.load %arg4[%c2_58, %c0_59, %c0_60] : memref<4x16x32xf32, #tpu.memory_space<vmem>>, vector<1x16x32xf32>
    %80 = vector.shape_cast %79 : vector<1x16x32xf32> to vector<16x32xf32>
    %cst_61 = arith.constant dense<0.000000e+00> : vector<2x32xf32>
    %81 = tpu.matmul %78, %80, %cst_61 {dimension_numbers = #tpu.dot_dimension_numbers<[1], [0], [0], [1], [0, 0, 1, 1], [], []>} : vector<2x16xf32>, vector<16x32xf32>, vector<2x32xf32> -> vector<2x32xf32>
    %82 = arith.addf %77, %81 : vector<2x32xf32>
    %c0_62 = arith.constant 0 : index
    %c160 = arith.constant 160 : index
    %83 = vector.load %arg5[%c0_62, %c160] : memref<2x1024xf32, #tpu.memory_space<vmem>>, vector<2x32xf32>
    tpu.vector_store %arg5[%c0_62, %c160], %82 {strides = array<i32>} : memref<2x1024xf32, #tpu.memory_space<vmem>>, vector<2x32xf32>,
    %84 = vector.extract_strided_slice %28 {offsets = [0, 48], sizes = [2, 16], strides = [1, 1]} : vector<2x256xf32> to vector<2x16xf32>
    %c1_63 = arith.constant 1 : index
    %c0_64 = arith.constant 0 : index
    %c0_65 = arith.constant 0 : index
    %85 = vector.load %arg4[%c1_63, %c0_64, %c0_65] : memref<4x16x32xf32, #tpu.memory_space<vmem>>, vector<1x16x32xf32>
    %86 = vector.shape_cast %85 : vector<1x16x32xf32> to vector<16x32xf32>
    %cst_66 = arith.constant dense<0.000000e+00> : vector<2x32xf32>
    %87 = tpu.matmul %84, %86, %cst_66 {dimension_numbers = #tpu.dot_dimension_numbers<[1], [0], [0], [1], [0, 0, 1, 1], [], []>} : vector<2x16xf32>, vector<16x32xf32>, vector<2x32xf32> -> vector<2x32xf32>
    %88 = vector.extract_strided_slice %28 {offsets = [0, 32], sizes = [2, 16], strides = [1, 1]} : vector<2x256xf32> to vector<2x16xf32>
    %c3_67 = arith.constant 3 : index
    %c0_68 = arith.constant 0 : index
    %c0_69 = arith.constant 0 : index
    %89 = vector.load %arg4[%c3_67, %c0_68, %c0_69] : memref<4x16x32xf32, #tpu.memory_space<vmem>>, vector<1x16x32xf32>
    %90 = vector.shape_cast %89 : vector<1x16x32xf32> to vector<16x32xf32>
    %cst_70 = arith.constant dense<0.000000e+00> : vector<2x32xf32>
    %91 = tpu.matmul %88, %90, %cst_70 {dimension_numbers = #tpu.dot_dimension_numbers<[1], [0], [0], [1], [0, 0, 1, 1], [], []>} : vector<2x16xf32>, vector<16x32xf32>, vector<2x32xf32> -> vector<2x32xf32>
    %92 = arith.addf %87, %91 : vector<2x32xf32>
    %c0_71 = arith.constant 0 : index
    %c192 = arith.constant 192 : index
    %93 = vector.load %arg5[%c0_71, %c192] : memref<2x1024xf32, #tpu.memory_space<vmem>>, vector<2x32xf32>
    tpu.vector_store %arg5[%c0_71, %c192], %92 {strides = array<i32>} : memref<2x1024xf32, #tpu.memory_space<vmem>>, vector<2x32xf32>,
    %94 = vector.extract_strided_slice %28 {offsets = [0, 64], sizes = [2, 16], strides = [1, 1]} : vector<2x256xf32> to vector<2x16xf32>
    %c0_72 = arith.constant 0 : index
    %c0_73 = arith.constant 0 : index
    %c0_74 = arith.constant 0 : index
    %95 = vector.load %arg4[%c0_72, %c0_73, %c0_74] : memref<4x16x32xf32, #tpu.memory_space<vmem>>, vector<1x16x32xf32>
    %96 = vector.shape_cast %95 : vector<1x16x32xf32> to vector<16x32xf32>
    %cst_75 = arith.constant dense<0.000000e+00> : vector<2x32xf32>
    %97 = tpu.matmul %94, %96, %cst_75 {dimension_numbers = #tpu.dot_dimension_numbers<[1], [0], [0], [1], [0, 0, 1, 1], [], []>} : vector<2x16xf32>, vector<16x32xf32>, vector<2x32xf32> -> vector<2x32xf32>
    %98 = vector.extract_strided_slice %28 {offsets = [0, 48], sizes = [2, 16], strides = [1, 1]} : vector<2x256xf32> to vector<2x16xf32>
    %c2_76 = arith.constant 2 : index
    %c0_77 = arith.constant 0 : index
    %c0_78 = arith.constant 0 : index
    %99 = vector.load %arg4[%c2_76, %c0_77, %c0_78] : memref<4x16x32xf32, #tpu.memory_space<vmem>>, vector<1x16x32xf32>
    %100 = vector.shape_cast %99 : vector<1x16x32xf32> to vector<16x32xf32>
    %cst_79 = arith.constant dense<0.000000e+00> : vector<2x32xf32>
    %101 = tpu.matmul %98, %100, %cst_79 {dimension_numbers = #tpu.dot_dimension_numbers<[1], [0], [0], [1], [0, 0, 1, 1], [], []>} : vector<2x16xf32>, vector<16x32xf32>, vector<2x32xf32> -> vector<2x32xf32>
    %102 = arith.addf %97, %101 : vector<2x32xf32>
    %c0_80 = arith.constant 0 : index
    %c224 = arith.constant 224 : index
    %103 = vector.load %arg5[%c0_80, %c224] : memref<2x1024xf32, #tpu.memory_space<vmem>>, vector<2x32xf32>
    tpu.vector_store %arg5[%c0_80, %c224], %102 {strides = array<i32>} : memref<2x1024xf32, #tpu.memory_space<vmem>>, vector<2x32xf32>,
    %104 = vector.extract_strided_slice %28 {offsets = [0, 64], sizes = [2, 16], strides = [1, 1]} : vector<2x256xf32> to vector<2x16xf32>
    %c1_81 = arith.constant 1 : index
    %c0_82 = arith.constant 0 : index
    %c0_83 = arith.constant 0 : index
    %105 = vector.load %arg4[%c1_81, %c0_82, %c0_83] : memref<4x16x32xf32, #tpu.memory_space<vmem>>, vector<1x16x32xf32>
    %106 = vector.shape_cast %105 : vector<1x16x32xf32> to vector<16x32xf32>
    %cst_84 = arith.constant dense<0.000000e+00> : vector<2x32xf32>
    %107 = tpu.matmul %104, %106, %cst_84 {dimension_numbers = #tpu.dot_dimension_numbers<[1], [0], [0], [1], [0, 0, 1, 1], [], []>} : vector<2x16xf32>, vector<16x32xf32>, vector<2x32xf32> -> vector<2x32xf32>
    %108 = vector.extract_strided_slice %28 {offsets = [0, 48], sizes = [2, 16], strides = [1, 1]} : vector<2x256xf32> to vector<2x16xf32>
    %c3_85 = arith.constant 3 : index
    %c0_86 = arith.constant 0 : index
    %c0_87 = arith.constant 0 : index
    %109 = vector.load %arg4[%c3_85, %c0_86, %c0_87] : memref<4x16x32xf32, #tpu.memory_space<vmem>>, vector<1x16x32xf32>
    %110 = vector.shape_cast %109 : vector<1x16x32xf32> to vector<16x32xf32>
    %cst_88 = arith.constant dense<0.000000e+00> : vector<2x32xf32>
    %111 = tpu.matmul %108, %110, %cst_88 {dimension_numbers = #tpu.dot_dimension_numbers<[1], [0], [0], [1], [0, 0, 1, 1], [], []>} : vector<2x16xf32>, vector<16x32xf32>, vector<2x32xf32> -> vector<2x32xf32>
    %112 = arith.addf %107, %111 : vector<2x32xf32>
    %c0_89 = arith.constant 0 : index
    %c256_90 = arith.constant 256 : index
    %113 = vector.load %arg5[%c0_89, %c256_90] : memref<2x1024xf32, #tpu.memory_space<vmem>>, vector<2x32xf32>
    tpu.vector_store %arg5[%c0_89, %c256_90], %112 {strides = array<i32>} : memref<2x1024xf32, #tpu.memory_space<vmem>>, vector<2x32xf32>,
    %114 = vector.extract_strided_slice %28 {offsets = [0, 80], sizes = [2, 16], strides = [1, 1]} : vector<2x256xf32> to vector<2x16xf32>
    %c0_91 = arith.constant 0 : index
    %c0_92 = arith.constant 0 : index
    %c0_93 = arith.constant 0 : index
    %115 = vector.load %arg4[%c0_91, %c0_92, %c0_93] : memref<4x16x32xf32, #tpu.memory_space<vmem>>, vector<1x16x32xf32>
    %116 = vector.shape_cast %115 : vector<1x16x32xf32> to vector<16x32xf32>
    %cst_94 = arith.constant dense<0.000000e+00> : vector<2x32xf32>
    %117 = tpu.matmul %114, %116, %cst_94 {dimension_numbers = #tpu.dot_dimension_numbers<[1], [0], [0], [1], [0, 0, 1, 1], [], []>} : vector<2x16xf32>, vector<16x32xf32>, vector<2x32xf32> -> vector<2x32xf32>
    %118 = vector.extract_strided_slice %28 {offsets = [0, 64], sizes = [2, 16], strides = [1, 1]} : vector<2x256xf32> to vector<2x16xf32>
    %c2_95 = arith.constant 2 : index
    %c0_96 = arith.constant 0 : index
    %c0_97 = arith.constant 0 : index
    %119 = vector.load %arg4[%c2_95, %c0_96, %c0_97] : memref<4x16x32xf32, #tpu.memory_space<vmem>>, vector<1x16x32xf32>
    %120 = vector.shape_cast %119 : vector<1x16x32xf32> to vector<16x32xf32>
    %cst_98 = arith.constant dense<0.000000e+00> : vector<2x32xf32>
    %121 = tpu.matmul %118, %120, %cst_98 {dimension_numbers = #tpu.dot_dimension_numbers<[1], [0], [0], [1], [0, 0, 1, 1], [], []>} : vector<2x16xf32>, vector<16x32xf32>, vector<2x32xf32> -> vector<2x32xf32>
    %122 = arith.addf %117, %121 : vector<2x32xf32>
    %c0_99 = arith.constant 0 : index
    %c288 = arith.constant 288 : index
    %123 = vector.load %arg5[%c0_99, %c288] : memref<2x1024xf32, #tpu.memory_space<vmem>>, vector<2x32xf32>
    tpu.vector_store %arg5[%c0_99, %c288], %122 {strides = array<i32>} : memref<2x1024xf32, #tpu.memory_space<vmem>>, vector<2x32xf32>,
    %124 = vector.extract_strided_slice %28 {offsets = [0, 80], sizes = [2, 16], strides = [1, 1]} : vector<2x256xf32> to vector<2x16xf32>
    %c1_100 = arith.constant 1 : index
    %c0_101 = arith.constant 0 : index
    %c0_102 = arith.constant 0 : index
    %125 = vector.load %arg4[%c1_100, %c0_101, %c0_102] : memref<4x16x32xf32, #tpu.memory_space<vmem>>, vector<1x16x32xf32>
    %126 = vector.shape_cast %125 : vector<1x16x32xf32> to vector<16x32xf32>
    %cst_103 = arith.constant dense<0.000000e+00> : vector<2x32xf32>
    %127 = tpu.matmul %124, %126, %cst_103 {dimension_numbers = #tpu.dot_dimension_numbers<[1], [0], [0], [1], [0, 0, 1, 1], [], []>} : vector<2x16xf32>, vector<16x32xf32>, vector<2x32xf32> -> vector<2x32xf32>
    %128 = vector.extract_strided_slice %28 {offsets = [0, 64], sizes = [2, 16], strides = [1, 1]} : vector<2x256xf32> to vector<2x16xf32>
    %c3_104 = arith.constant 3 : index
    %c0_105 = arith.constant 0 : index
    %c0_106 = arith.constant 0 : index
    %129 = vector.load %arg4[%c3_104, %c0_105, %c0_106] : memref<4x16x32xf32, #tpu.memory_space<vmem>>, vector<1x16x32xf32>
    %130 = vector.shape_cast %129 : vector<1x16x32xf32> to vector<16x32xf32>
    %cst_107 = arith.constant dense<0.000000e+00> : vector<2x32xf32>
    %131 = tpu.matmul %128, %130, %cst_107 {dimension_numbers = #tpu.dot_dimension_numbers<[1], [0], [0], [1], [0, 0, 1, 1], [], []>} : vector<2x16xf32>, vector<16x32xf32>, vector<2x32xf32> -> vector<2x32xf32>
    %132 = arith.addf %127, %131 : vector<2x32xf32>
    %c0_108 = arith.constant 0 : index
    %c320 = arith.constant 320 : index
    %133 = vector.load %arg5[%c0_108, %c320] : memref<2x1024xf32, #tpu.memory_space<vmem>>, vector<2x32xf32>
    tpu.vector_store %arg5[%c0_108, %c320], %132 {strides = array<i32>} : memref<2x1024xf32, #tpu.memory_space<vmem>>, vector<2x32xf32>,
    %134 = vector.extract_strided_slice %28 {offsets = [0, 96], sizes = [2, 16], strides = [1, 1]} : vector<2x256xf32> to vector<2x16xf32>
    %c0_109 = arith.constant 0 : index
    %c0_110 = arith.constant 0 : index
    %c0_111 = arith.constant 0 : index
    %135 = vector.load %arg4[%c0_109, %c0_110, %c0_111] : memref<4x16x32xf32, #tpu.memory_space<vmem>>, vector<1x16x32xf32>
    %136 = vector.shape_cast %135 : vector<1x16x32xf32> to vector<16x32xf32>
    %cst_112 = arith.constant dense<0.000000e+00> : vector<2x32xf32>
    %137 = tpu.matmul %134, %136, %cst_112 {dimension_numbers = #tpu.dot_dimension_numbers<[1], [0], [0], [1], [0, 0, 1, 1], [], []>} : vector<2x16xf32>, vector<16x32xf32>, vector<2x32xf32> -> vector<2x32xf32>
    %138 = vector.extract_strided_slice %28 {offsets = [0, 80], sizes = [2, 16], strides = [1, 1]} : vector<2x256xf32> to vector<2x16xf32>
    %c2_113 = arith.constant 2 : index
    %c0_114 = arith.constant 0 : index
    %c0_115 = arith.constant 0 : index
    %139 = vector.load %arg4[%c2_113, %c0_114, %c0_115] : memref<4x16x32xf32, #tpu.memory_space<vmem>>, vector<1x16x32xf32>
    %140 = vector.shape_cast %139 : vector<1x16x32xf32> to vector<16x32xf32>
    %cst_116 = arith.constant dense<0.000000e+00> : vector<2x32xf32>
    %141 = tpu.matmul %138, %140, %cst_116 {dimension_numbers = #tpu.dot_dimension_numbers<[1], [0], [0], [1], [0, 0, 1, 1], [], []>} : vector<2x16xf32>, vector<16x32xf32>, vector<2x32xf32> -> vector<2x32xf32>
    %142 = arith.addf %137, %141 : vector<2x32xf32>
    %c0_117 = arith.constant 0 : index
    %c352 = arith.constant 352 : index
    %143 = vector.load %arg5[%c0_117, %c352] : memref<2x1024xf32, #tpu.memory_space<vmem>>, vector<2x32xf32>
    tpu.vector_store %arg5[%c0_117, %c352], %142 {strides = array<i32>} : memref<2x1024xf32, #tpu.memory_space<vmem>>, vector<2x32xf32>,
    %144 = vector.extract_strided_slice %28 {offsets = [0, 96], sizes = [2, 16], strides = [1, 1]} : vector<2x256xf32> to vector<2x16xf32>
    %c1_118 = arith.constant 1 : index
    %c0_119 = arith.constant 0 : index
    %c0_120 = arith.constant 0 : index
    %145 = vector.load %arg4[%c1_118, %c0_119, %c0_120] : memref<4x16x32xf32, #tpu.memory_space<vmem>>, vector<1x16x32xf32>
    %146 = vector.shape_cast %145 : vector<1x16x32xf32> to vector<16x32xf32>
    %cst_121 = arith.constant dense<0.000000e+00> : vector<2x32xf32>
    %147 = tpu.matmul %144, %146, %cst_121 {dimension_numbers = #tpu.dot_dimension_numbers<[1], [0], [0], [1], [0, 0, 1, 1], [], []>} : vector<2x16xf32>, vector<16x32xf32>, vector<2x32xf32> -> vector<2x32xf32>
    %148 = vector.extract_strided_slice %28 {offsets = [0, 80], sizes = [2, 16], strides = [1, 1]} : vector<2x256xf32> to vector<2x16xf32>
    %c3_122 = arith.constant 3 : index
    %c0_123 = arith.constant 0 : index
    %c0_124 = arith.constant 0 : index
    %149 = vector.load %arg4[%c3_122, %c0_123, %c0_124] : memref<4x16x32xf32, #tpu.memory_space<vmem>>, vector<1x16x32xf32>
    %150 = vector.shape_cast %149 : vector<1x16x32xf32> to vector<16x32xf32>
    %cst_125 = arith.constant dense<0.000000e+00> : vector<2x32xf32>
    %151 = tpu.matmul %148, %150, %cst_125 {dimension_numbers = #tpu.dot_dimension_numbers<[1], [0], [0], [1], [0, 0, 1, 1], [], []>} : vector<2x16xf32>, vector<16x32xf32>, vector<2x32xf32> -> vector<2x32xf32>
    %152 = arith.addf %147, %151 : vector<2x32xf32>
    %c0_126 = arith.constant 0 : index
    %c384 = arith.constant 384 : index
    %153 = vector.load %arg5[%c0_126, %c384] : memref<2x1024xf32, #tpu.memory_space<vmem>>, vector<2x32xf32>
    tpu.vector_store %arg5[%c0_126, %c384], %152 {strides = array<i32>} : memref<2x1024xf32, #tpu.memory_space<vmem>>, vector<2x32xf32>,
    %154 = vector.extract_strided_slice %28 {offsets = [0, 112], sizes = [2, 16], strides = [1, 1]} : vector<2x256xf32> to vector<2x16xf32>
    %c0_127 = arith.constant 0 : index
    %c0_128 = arith.constant 0 : index
    %c0_129 = arith.constant 0 : index
    %155 = vector.load %arg4[%c0_127, %c0_128, %c0_129] : memref<4x16x32xf32, #tpu.memory_space<vmem>>, vector<1x16x32xf32>
    %156 = vector.shape_cast %155 : vector<1x16x32xf32> to vector<16x32xf32>
    %cst_130 = arith.constant dense<0.000000e+00> : vector<2x32xf32>
    %157 = tpu.matmul %154, %156, %cst_130 {dimension_numbers = #tpu.dot_dimension_numbers<[1], [0], [0], [1], [0, 0, 1, 1], [], []>} : vector<2x16xf32>, vector<16x32xf32>, vector<2x32xf32> -> vector<2x32xf32>
    %158 = vector.extract_strided_slice %28 {offsets = [0, 96], sizes = [2, 16], strides = [1, 1]} : vector<2x256xf32> to vector<2x16xf32>
    %c2_131 = arith.constant 2 : index
    %c0_132 = arith.constant 0 : index
    %c0_133 = arith.constant 0 : index
    %159 = vector.load %arg4[%c2_131, %c0_132, %c0_133] : memref<4x16x32xf32, #tpu.memory_space<vmem>>, vector<1x16x32xf32>
    %160 = vector.shape_cast %159 : vector<1x16x32xf32> to vector<16x32xf32>
    %cst_134 = arith.constant dense<0.000000e+00> : vector<2x32xf32>
    %161 = tpu.matmul %158, %160, %cst_134 {dimension_numbers = #tpu.dot_dimension_numbers<[1], [0], [0], [1], [0, 0, 1, 1], [], []>} : vector<2x16xf32>, vector<16x32xf32>, vector<2x32xf32> -> vector<2x32xf32>
    %162 = arith.addf %157, %161 : vector<2x32xf32>
    %c0_135 = arith.constant 0 : index
    %c416 = arith.constant 416 : index
    %163 = vector.load %arg5[%c0_135, %c416] : memref<2x1024xf32, #tpu.memory_space<vmem>>, vector<2x32xf32>
    tpu.vector_store %arg5[%c0_135, %c416], %162 {strides = array<i32>} : memref<2x1024xf32, #tpu.memory_space<vmem>>, vector<2x32xf32>,
    %164 = vector.extract_strided_slice %28 {offsets = [0, 112], sizes = [2, 16], strides = [1, 1]} : vector<2x256xf32> to vector<2x16xf32>
    %c1_136 = arith.constant 1 : index
    %c0_137 = arith.constant 0 : index
    %c0_138 = arith.constant 0 : index
    %165 = vector.load %arg4[%c1_136, %c0_137, %c0_138] : memref<4x16x32xf32, #tpu.memory_space<vmem>>, vector<1x16x32xf32>
    %166 = vector.shape_cast %165 : vector<1x16x32xf32> to vector<16x32xf32>
    %cst_139 = arith.constant dense<0.000000e+00> : vector<2x32xf32>
    %167 = tpu.matmul %164, %166, %cst_139 {dimension_numbers = #tpu.dot_dimension_numbers<[1], [0], [0], [1], [0, 0, 1, 1], [], []>} : vector<2x16xf32>, vector<16x32xf32>, vector<2x32xf32> -> vector<2x32xf32>
    %168 = vector.extract_strided_slice %28 {offsets = [0, 96], sizes = [2, 16], strides = [1, 1]} : vector<2x256xf32> to vector<2x16xf32>
    %c3_140 = arith.constant 3 : index
    %c0_141 = arith.constant 0 : index
    %c0_142 = arith.constant 0 : index
    %169 = vector.load %arg4[%c3_140, %c0_141, %c0_142] : memref<4x16x32xf32, #tpu.memory_space<vmem>>, vector<1x16x32xf32>
    %170 = vector.shape_cast %169 : vector<1x16x32xf32> to vector<16x32xf32>
    %cst_143 = arith.constant dense<0.000000e+00> : vector<2x32xf32>
    %171 = tpu.matmul %168, %170, %cst_143 {dimension_numbers = #tpu.dot_dimension_numbers<[1], [0], [0], [1], [0, 0, 1, 1], [], []>} : vector<2x16xf32>, vector<16x32xf32>, vector<2x32xf32> -> vector<2x32xf32>
    %172 = arith.addf %167, %171 : vector<2x32xf32>
    %c0_144 = arith.constant 0 : index
    %c448 = arith.constant 448 : index
    %173 = vector.load %arg5[%c0_144, %c448] : memref<2x1024xf32, #tpu.memory_space<vmem>>, vector<2x32xf32>
    tpu.vector_store %arg5[%c0_144, %c448], %172 {strides = array<i32>} : memref<2x1024xf32, #tpu.memory_space<vmem>>, vector<2x32xf32>,
    %174 = vector.extract_strided_slice %28 {offsets = [0, 128], sizes = [2, 16], strides = [1, 1]} : vector<2x256xf32> to vector<2x16xf32>
    %c0_145 = arith.constant 0 : index
    %c0_146 = arith.constant 0 : index
    %c0_147 = arith.constant 0 : index
    %175 = vector.load %arg4[%c0_145, %c0_146, %c0_147] : memref<4x16x32xf32, #tpu.memory_space<vmem>>, vector<1x16x32xf32>
    %176 = vector.shape_cast %175 : vector<1x16x32xf32> to vector<16x32xf32>
    %cst_148 = arith.constant dense<0.000000e+00> : vector<2x32xf32>
    %177 = tpu.matmul %174, %176, %cst_148 {dimension_numbers = #tpu.dot_dimension_numbers<[1], [0], [0], [1], [0, 0, 1, 1], [], []>} : vector<2x16xf32>, vector<16x32xf32>, vector<2x32xf32> -> vector<2x32xf32>
    %178 = vector.extract_strided_slice %28 {offsets = [0, 112], sizes = [2, 16], strides = [1, 1]} : vector<2x256xf32> to vector<2x16xf32>
    %c2_149 = arith.constant 2 : index
    %c0_150 = arith.constant 0 : index
    %c0_151 = arith.constant 0 : index
    %179 = vector.load %arg4[%c2_149, %c0_150, %c0_151] : memref<4x16x32xf32, #tpu.memory_space<vmem>>, vector<1x16x32xf32>
    %180 = vector.shape_cast %179 : vector<1x16x32xf32> to vector<16x32xf32>
    %cst_152 = arith.constant dense<0.000000e+00> : vector<2x32xf32>
    %181 = tpu.matmul %178, %180, %cst_152 {dimension_numbers = #tpu.dot_dimension_numbers<[1], [0], [0], [1], [0, 0, 1, 1], [], []>} : vector<2x16xf32>, vector<16x32xf32>, vector<2x32xf32> -> vector<2x32xf32>
    %182 = arith.addf %177, %181 : vector<2x32xf32>
    %c0_153 = arith.constant 0 : index
    %c480 = arith.constant 480 : index
    %183 = vector.load %arg5[%c0_153, %c480] : memref<2x1024xf32, #tpu.memory_space<vmem>>, vector<2x32xf32>
    tpu.vector_store %arg5[%c0_153, %c480], %182 {strides = array<i32>} : memref<2x1024xf32, #tpu.memory_space<vmem>>, vector<2x32xf32>,
    %184 = vector.extract_strided_slice %28 {offsets = [0, 128], sizes = [2, 16], strides = [1, 1]} : vector<2x256xf32> to vector<2x16xf32>
    %c1_154 = arith.constant 1 : index
    %c0_155 = arith.constant 0 : index
    %c0_156 = arith.constant 0 : index
    %185 = vector.load %arg4[%c1_154, %c0_155, %c0_156] : memref<4x16x32xf32, #tpu.memory_space<vmem>>, vector<1x16x32xf32>
    %186 = vector.shape_cast %185 : vector<1x16x32xf32> to vector<16x32xf32>
    %cst_157 = arith.constant dense<0.000000e+00> : vector<2x32xf32>
    %187 = tpu.matmul %184, %186, %cst_157 {dimension_numbers = #tpu.dot_dimension_numbers<[1], [0], [0], [1], [0, 0, 1, 1], [], []>} : vector<2x16xf32>, vector<16x32xf32>, vector<2x32xf32> -> vector<2x32xf32>
    %188 = vector.extract_strided_slice %28 {offsets = [0, 112], sizes = [2, 16], strides = [1, 1]} : vector<2x256xf32> to vector<2x16xf32>
    %c3_158 = arith.constant 3 : index
    %c0_159 = arith.constant 0 : index
    %c0_160 = arith.constant 0 : index
    %189 = vector.load %arg4[%c3_158, %c0_159, %c0_160] : memref<4x16x32xf32, #tpu.memory_space<vmem>>, vector<1x16x32xf32>
    %190 = vector.shape_cast %189 : vector<1x16x32xf32> to vector<16x32xf32>
    %cst_161 = arith.constant dense<0.000000e+00> : vector<2x32xf32>
    %191 = tpu.matmul %188, %190, %cst_161 {dimension_numbers = #tpu.dot_dimension_numbers<[1], [0], [0], [1], [0, 0, 1, 1], [], []>} : vector<2x16xf32>, vector<16x32xf32>, vector<2x32xf32> -> vector<2x32xf32>
    %192 = arith.addf %187, %191 : vector<2x32xf32>
    %c0_162 = arith.constant 0 : index
    %c512_163 = arith.constant 512 : index
    %193 = vector.load %arg5[%c0_162, %c512_163] : memref<2x1024xf32, #tpu.memory_space<vmem>>, vector<2x32xf32>
    tpu.vector_store %arg5[%c0_162, %c512_163], %192 {strides = array<i32>} : memref<2x1024xf32, #tpu.memory_space<vmem>>, vector<2x32xf32>,
    %194 = vector.extract_strided_slice %28 {offsets = [0, 144], sizes = [2, 16], strides = [1, 1]} : vector<2x256xf32> to vector<2x16xf32>
    %c0_164 = arith.constant 0 : index
    %c0_165 = arith.constant 0 : index
    %c0_166 = arith.constant 0 : index
    %195 = vector.load %arg4[%c0_164, %c0_165, %c0_166] : memref<4x16x32xf32, #tpu.memory_space<vmem>>, vector<1x16x32xf32>
    %196 = vector.shape_cast %195 : vector<1x16x32xf32> to vector<16x32xf32>
    %cst_167 = arith.constant dense<0.000000e+00> : vector<2x32xf32>
    %197 = tpu.matmul %194, %196, %cst_167 {dimension_numbers = #tpu.dot_dimension_numbers<[1], [0], [0], [1], [0, 0, 1, 1], [], []>} : vector<2x16xf32>, vector<16x32xf32>, vector<2x32xf32> -> vector<2x32xf32>
    %198 = vector.extract_strided_slice %28 {offsets = [0, 128], sizes = [2, 16], strides = [1, 1]} : vector<2x256xf32> to vector<2x16xf32>
    %c2_168 = arith.constant 2 : index
    %c0_169 = arith.constant 0 : index
    %c0_170 = arith.constant 0 : index
    %199 = vector.load %arg4[%c2_168, %c0_169, %c0_170] : memref<4x16x32xf32, #tpu.memory_space<vmem>>, vector<1x16x32xf32>
    %200 = vector.shape_cast %199 : vector<1x16x32xf32> to vector<16x32xf32>
    %cst_171 = arith.constant dense<0.000000e+00> : vector<2x32xf32>
    %201 = tpu.matmul %198, %200, %cst_171 {dimension_numbers = #tpu.dot_dimension_numbers<[1], [0], [0], [1], [0, 0, 1, 1], [], []>} : vector<2x16xf32>, vector<16x32xf32>, vector<2x32xf32> -> vector<2x32xf32>
    %202 = arith.addf %197, %201 : vector<2x32xf32>
    %c0_172 = arith.constant 0 : index
    %c544 = arith.constant 544 : index
    %203 = vector.load %arg5[%c0_172, %c544] : memref<2x1024xf32, #tpu.memory_space<vmem>>, vector<2x32xf32>
    tpu.vector_store %arg5[%c0_172, %c544], %202 {strides = array<i32>} : memref<2x1024xf32, #tpu.memory_space<vmem>>, vector<2x32xf32>,
    %204 = vector.extract_strided_slice %28 {offsets = [0, 144], sizes = [2, 16], strides = [1, 1]} : vector<2x256xf32> to vector<2x16xf32>
    %c1_173 = arith.constant 1 : index
    %c0_174 = arith.constant 0 : index
    %c0_175 = arith.constant 0 : index
    %205 = vector.load %arg4[%c1_173, %c0_174, %c0_175] : memref<4x16x32xf32, #tpu.memory_space<vmem>>, vector<1x16x32xf32>
    %206 = vector.shape_cast %205 : vector<1x16x32xf32> to vector<16x32xf32>
    %cst_176 = arith.constant dense<0.000000e+00> : vector<2x32xf32>
    %207 = tpu.matmul %204, %206, %cst_176 {dimension_numbers = #tpu.dot_dimension_numbers<[1], [0], [0], [1], [0, 0, 1, 1], [], []>} : vector<2x16xf32>, vector<16x32xf32>, vector<2x32xf32> -> vector<2x32xf32>
    %208 = vector.extract_strided_slice %28 {offsets = [0, 128], sizes = [2, 16], strides = [1, 1]} : vector<2x256xf32> to vector<2x16xf32>
    %c3_177 = arith.constant 3 : index
    %c0_178 = arith.constant 0 : index
    %c0_179 = arith.constant 0 : index
    %209 = vector.load %arg4[%c3_177, %c0_178, %c0_179] : memref<4x16x32xf32, #tpu.memory_space<vmem>>, vector<1x16x32xf32>
    %210 = vector.shape_cast %209 : vector<1x16x32xf32> to vector<16x32xf32>
    %cst_180 = arith.constant dense<0.000000e+00> : vector<2x32xf32>
    %211 = tpu.matmul %208, %210, %cst_180 {dimension_numbers = #tpu.dot_dimension_numbers<[1], [0], [0], [1], [0, 0, 1, 1], [], []>} : vector<2x16xf32>, vector<16x32xf32>, vector<2x32xf32> -> vector<2x32xf32>
    %212 = arith.addf %207, %211 : vector<2x32xf32>
    %c0_181 = arith.constant 0 : index
    %c576 = arith.constant 576 : index
    %213 = vector.load %arg5[%c0_181, %c576] : memref<2x1024xf32, #tpu.memory_space<vmem>>, vector<2x32xf32>
    tpu.vector_store %arg5[%c0_181, %c576], %212 {strides = array<i32>} : memref<2x1024xf32, #tpu.memory_space<vmem>>, vector<2x32xf32>,
    %214 = vector.extract_strided_slice %28 {offsets = [0, 160], sizes = [2, 16], strides = [1, 1]} : vector<2x256xf32> to vector<2x16xf32>
    %c0_182 = arith.constant 0 : index
    %c0_183 = arith.constant 0 : index
    %c0_184 = arith.constant 0 : index
    %215 = vector.load %arg4[%c0_182, %c0_183, %c0_184] : memref<4x16x32xf32, #tpu.memory_space<vmem>>, vector<1x16x32xf32>
    %216 = vector.shape_cast %215 : vector<1x16x32xf32> to vector<16x32xf32>
    %cst_185 = arith.constant dense<0.000000e+00> : vector<2x32xf32>
    %217 = tpu.matmul %214, %216, %cst_185 {dimension_numbers = #tpu.dot_dimension_numbers<[1], [0], [0], [1], [0, 0, 1, 1], [], []>} : vector<2x16xf32>, vector<16x32xf32>, vector<2x32xf32> -> vector<2x32xf32>
    %218 = vector.extract_strided_slice %28 {offsets = [0, 144], sizes = [2, 16], strides = [1, 1]} : vector<2x256xf32> to vector<2x16xf32>
    %c2_186 = arith.constant 2 : index
    %c0_187 = arith.constant 0 : index
    %c0_188 = arith.constant 0 : index
    %219 = vector.load %arg4[%c2_186, %c0_187, %c0_188] : memref<4x16x32xf32, #tpu.memory_space<vmem>>, vector<1x16x32xf32>
    %220 = vector.shape_cast %219 : vector<1x16x32xf32> to vector<16x32xf32>
    %cst_189 = arith.constant dense<0.000000e+00> : vector<2x32xf32>
    %221 = tpu.matmul %218, %220, %cst_189 {dimension_numbers = #tpu.dot_dimension_numbers<[1], [0], [0], [1], [0, 0, 1, 1], [], []>} : vector<2x16xf32>, vector<16x32xf32>, vector<2x32xf32> -> vector<2x32xf32>
    %222 = arith.addf %217, %221 : vector<2x32xf32>
    %c0_190 = arith.constant 0 : index
    %c608 = arith.constant 608 : index
    %223 = vector.load %arg5[%c0_190, %c608] : memref<2x1024xf32, #tpu.memory_space<vmem>>, vector<2x32xf32>
    tpu.vector_store %arg5[%c0_190, %c608], %222 {strides = array<i32>} : memref<2x1024xf32, #tpu.memory_space<vmem>>, vector<2x32xf32>,
    %224 = vector.extract_strided_slice %28 {offsets = [0, 160], sizes = [2, 16], strides = [1, 1]} : vector<2x256xf32> to vector<2x16xf32>
    %c1_191 = arith.constant 1 : index
    %c0_192 = arith.constant 0 : index
    %c0_193 = arith.constant 0 : index
    %225 = vector.load %arg4[%c1_191, %c0_192, %c0_193] : memref<4x16x32xf32, #tpu.memory_space<vmem>>, vector<1x16x32xf32>
    %226 = vector.shape_cast %225 : vector<1x16x32xf32> to vector<16x32xf32>
    %cst_194 = arith.constant dense<0.000000e+00> : vector<2x32xf32>
    %227 = tpu.matmul %224, %226, %cst_194 {dimension_numbers = #tpu.dot_dimension_numbers<[1], [0], [0], [1], [0, 0, 1, 1], [], []>} : vector<2x16xf32>, vector<16x32xf32>, vector<2x32xf32> -> vector<2x32xf32>
    %228 = vector.extract_strided_slice %28 {offsets = [0, 144], sizes = [2, 16], strides = [1, 1]} : vector<2x256xf32> to vector<2x16xf32>
    %c3_195 = arith.constant 3 : index
    %c0_196 = arith.constant 0 : index
    %c0_197 = arith.constant 0 : index
    %229 = vector.load %arg4[%c3_195, %c0_196, %c0_197] : memref<4x16x32xf32, #tpu.memory_space<vmem>>, vector<1x16x32xf32>
    %230 = vector.shape_cast %229 : vector<1x16x32xf32> to vector<16x32xf32>
    %cst_198 = arith.constant dense<0.000000e+00> : vector<2x32xf32>
    %231 = tpu.matmul %228, %230, %cst_198 {dimension_numbers = #tpu.dot_dimension_numbers<[1], [0], [0], [1], [0, 0, 1, 1], [], []>} : vector<2x16xf32>, vector<16x32xf32>, vector<2x32xf32> -> vector<2x32xf32>
    %232 = arith.addf %227, %231 : vector<2x32xf32>
    %c0_199 = arith.constant 0 : index
    %c640 = arith.constant 640 : index
    %233 = vector.load %arg5[%c0_199, %c640] : memref<2x1024xf32, #tpu.memory_space<vmem>>, vector<2x32xf32>
    tpu.vector_store %arg5[%c0_199, %c640], %232 {strides = array<i32>} : memref<2x1024xf32, #tpu.memory_space<vmem>>, vector<2x32xf32>,
    %234 = vector.extract_strided_slice %28 {offsets = [0, 176], sizes = [2, 16], strides = [1, 1]} : vector<2x256xf32> to vector<2x16xf32>
    %c0_200 = arith.constant 0 : index
    %c0_201 = arith.constant 0 : index
    %c0_202 = arith.constant 0 : index
    %235 = vector.load %arg4[%c0_200, %c0_201, %c0_202] : memref<4x16x32xf32, #tpu.memory_space<vmem>>, vector<1x16x32xf32>
    %236 = vector.shape_cast %235 : vector<1x16x32xf32> to vector<16x32xf32>
    %cst_203 = arith.constant dense<0.000000e+00> : vector<2x32xf32>
    %237 = tpu.matmul %234, %236, %cst_203 {dimension_numbers = #tpu.dot_dimension_numbers<[1], [0], [0], [1], [0, 0, 1, 1], [], []>} : vector<2x16xf32>, vector<16x32xf32>, vector<2x32xf32> -> vector<2x32xf32>
    %238 = vector.extract_strided_slice %28 {offsets = [0, 160], sizes = [2, 16], strides = [1, 1]} : vector<2x256xf32> to vector<2x16xf32>
    %c2_204 = arith.constant 2 : index
    %c0_205 = arith.constant 0 : index
    %c0_206 = arith.constant 0 : index
    %239 = vector.load %arg4[%c2_204, %c0_205, %c0_206] : memref<4x16x32xf32, #tpu.memory_space<vmem>>, vector<1x16x32xf32>
    %240 = vector.shape_cast %239 : vector<1x16x32xf32> to vector<16x32xf32>
    %cst_207 = arith.constant dense<0.000000e+00> : vector<2x32xf32>
    %241 = tpu.matmul %238, %240, %cst_207 {dimension_numbers = #tpu.dot_dimension_numbers<[1], [0], [0], [1], [0, 0, 1, 1], [], []>} : vector<2x16xf32>, vector<16x32xf32>, vector<2x32xf32> -> vector<2x32xf32>
    %242 = arith.addf %237, %241 : vector<2x32xf32>
    %c0_208 = arith.constant 0 : index
    %c672 = arith.constant 672 : index
    %243 = vector.load %arg5[%c0_208, %c672] : memref<2x1024xf32, #tpu.memory_space<vmem>>, vector<2x32xf32>
    tpu.vector_store %arg5[%c0_208, %c672], %242 {strides = array<i32>} : memref<2x1024xf32, #tpu.memory_space<vmem>>, vector<2x32xf32>,
    %244 = vector.extract_strided_slice %28 {offsets = [0, 176], sizes = [2, 16], strides = [1, 1]} : vector<2x256xf32> to vector<2x16xf32>
    %c1_209 = arith.constant 1 : index
    %c0_210 = arith.constant 0 : index
    %c0_211 = arith.constant 0 : index
    %245 = vector.load %arg4[%c1_209, %c0_210, %c0_211] : memref<4x16x32xf32, #tpu.memory_space<vmem>>, vector<1x16x32xf32>
    %246 = vector.shape_cast %245 : vector<1x16x32xf32> to vector<16x32xf32>
    %cst_212 = arith.constant dense<0.000000e+00> : vector<2x32xf32>
    %247 = tpu.matmul %244, %246, %cst_212 {dimension_numbers = #tpu.dot_dimension_numbers<[1], [0], [0], [1], [0, 0, 1, 1], [], []>} : vector<2x16xf32>, vector<16x32xf32>, vector<2x32xf32> -> vector<2x32xf32>
    %248 = vector.extract_strided_slice %28 {offsets = [0, 160], sizes = [2, 16], strides = [1, 1]} : vector<2x256xf32> to vector<2x16xf32>
    %c3_213 = arith.constant 3 : index
    %c0_214 = arith.constant 0 : index
    %c0_215 = arith.constant 0 : index
    %249 = vector.load %arg4[%c3_213, %c0_214, %c0_215] : memref<4x16x32xf32, #tpu.memory_space<vmem>>, vector<1x16x32xf32>
    %250 = vector.shape_cast %249 : vector<1x16x32xf32> to vector<16x32xf32>
    %cst_216 = arith.constant dense<0.000000e+00> : vector<2x32xf32>
    %251 = tpu.matmul %248, %250, %cst_216 {dimension_numbers = #tpu.dot_dimension_numbers<[1], [0], [0], [1], [0, 0, 1, 1], [], []>} : vector<2x16xf32>, vector<16x32xf32>, vector<2x32xf32> -> vector<2x32xf32>
    %252 = arith.addf %247, %251 : vector<2x32xf32>
    %c0_217 = arith.constant 0 : index
    %c704 = arith.constant 704 : index
    %253 = vector.load %arg5[%c0_217, %c704] : memref<2x1024xf32, #tpu.memory_space<vmem>>, vector<2x32xf32>
    tpu.vector_store %arg5[%c0_217, %c704], %252 {strides = array<i32>} : memref<2x1024xf32, #tpu.memory_space<vmem>>, vector<2x32xf32>,
    %254 = vector.extract_strided_slice %28 {offsets = [0, 192], sizes = [2, 16], strides = [1, 1]} : vector<2x256xf32> to vector<2x16xf32>
    %c0_218 = arith.constant 0 : index
    %c0_219 = arith.constant 0 : index
    %c0_220 = arith.constant 0 : index
    %255 = vector.load %arg4[%c0_218, %c0_219, %c0_220] : memref<4x16x32xf32, #tpu.memory_space<vmem>>, vector<1x16x32xf32>
    %256 = vector.shape_cast %255 : vector<1x16x32xf32> to vector<16x32xf32>
    %cst_221 = arith.constant dense<0.000000e+00> : vector<2x32xf32>
    %257 = tpu.matmul %254, %256, %cst_221 {dimension_numbers = #tpu.dot_dimension_numbers<[1], [0], [0], [1], [0, 0, 1, 1], [], []>} : vector<2x16xf32>, vector<16x32xf32>, vector<2x32xf32> -> vector<2x32xf32>
    %258 = vector.extract_strided_slice %28 {offsets = [0, 176], sizes = [2, 16], strides = [1, 1]} : vector<2x256xf32> to vector<2x16xf32>
    %c2_222 = arith.constant 2 : index
    %c0_223 = arith.constant 0 : index
    %c0_224 = arith.constant 0 : index
    %259 = vector.load %arg4[%c2_222, %c0_223, %c0_224] : memref<4x16x32xf32, #tpu.memory_space<vmem>>, vector<1x16x32xf32>
    %260 = vector.shape_cast %259 : vector<1x16x32xf32> to vector<16x32xf32>
    %cst_225 = arith.constant dense<0.000000e+00> : vector<2x32xf32>
    %261 = tpu.matmul %258, %260, %cst_225 {dimension_numbers = #tpu.dot_dimension_numbers<[1], [0], [0], [1], [0, 0, 1, 1], [], []>} : vector<2x16xf32>, vector<16x32xf32>, vector<2x32xf32> -> vector<2x32xf32>
    %262 = arith.addf %257, %261 : vector<2x32xf32>
    %c0_226 = arith.constant 0 : index
    %c736 = arith.constant 736 : index
    %263 = vector.load %arg5[%c0_226, %c736] : memref<2x1024xf32, #tpu.memory_space<vmem>>, vector<2x32xf32>
    tpu.vector_store %arg5[%c0_226, %c736], %262 {strides = array<i32>} : memref<2x1024xf32, #tpu.memory_space<vmem>>, vector<2x32xf32>,
    %264 = vector.extract_strided_slice %28 {offsets = [0, 192], sizes = [2, 16], strides = [1, 1]} : vector<2x256xf32> to vector<2x16xf32>
    %c1_227 = arith.constant 1 : index
    %c0_228 = arith.constant 0 : index
    %c0_229 = arith.constant 0 : index
    %265 = vector.load %arg4[%c1_227, %c0_228, %c0_229] : memref<4x16x32xf32, #tpu.memory_space<vmem>>, vector<1x16x32xf32>
    %266 = vector.shape_cast %265 : vector<1x16x32xf32> to vector<16x32xf32>
    %cst_230 = arith.constant dense<0.000000e+00> : vector<2x32xf32>
    %267 = tpu.matmul %264, %266, %cst_230 {dimension_numbers = #tpu.dot_dimension_numbers<[1], [0], [0], [1], [0, 0, 1, 1], [], []>} : vector<2x16xf32>, vector<16x32xf32>, vector<2x32xf32> -> vector<2x32xf32>
    %268 = vector.extract_strided_slice %28 {offsets = [0, 176], sizes = [2, 16], strides = [1, 1]} : vector<2x256xf32> to vector<2x16xf32>
    %c3_231 = arith.constant 3 : index
    %c0_232 = arith.constant 0 : index
    %c0_233 = arith.constant 0 : index
    %269 = vector.load %arg4[%c3_231, %c0_232, %c0_233] : memref<4x16x32xf32, #tpu.memory_space<vmem>>, vector<1x16x32xf32>
    %270 = vector.shape_cast %269 : vector<1x16x32xf32> to vector<16x32xf32>
    %cst_234 = arith.constant dense<0.000000e+00> : vector<2x32xf32>
    %271 = tpu.matmul %268, %270, %cst_234 {dimension_numbers = #tpu.dot_dimension_numbers<[1], [0], [0], [1], [0, 0, 1, 1], [], []>} : vector<2x16xf32>, vector<16x32xf32>, vector<2x32xf32> -> vector<2x32xf32>
    %272 = arith.addf %267, %271 : vector<2x32xf32>
    %c0_235 = arith.constant 0 : index
    %c768_236 = arith.constant 768 : index
    %273 = vector.load %arg5[%c0_235, %c768_236] : memref<2x1024xf32, #tpu.memory_space<vmem>>, vector<2x32xf32>
    tpu.vector_store %arg5[%c0_235, %c768_236], %272 {strides = array<i32>} : memref<2x1024xf32, #tpu.memory_space<vmem>>, vector<2x32xf32>,
    %274 = vector.extract_strided_slice %28 {offsets = [0, 208], sizes = [2, 16], strides = [1, 1]} : vector<2x256xf32> to vector<2x16xf32>
    %c0_237 = arith.constant 0 : index
    %c0_238 = arith.constant 0 : index
    %c0_239 = arith.constant 0 : index
    %275 = vector.load %arg4[%c0_237, %c0_238, %c0_239] : memref<4x16x32xf32, #tpu.memory_space<vmem>>, vector<1x16x32xf32>
    %276 = vector.shape_cast %275 : vector<1x16x32xf32> to vector<16x32xf32>
    %cst_240 = arith.constant dense<0.000000e+00> : vector<2x32xf32>
    %277 = tpu.matmul %274, %276, %cst_240 {dimension_numbers = #tpu.dot_dimension_numbers<[1], [0], [0], [1], [0, 0, 1, 1], [], []>} : vector<2x16xf32>, vector<16x32xf32>, vector<2x32xf32> -> vector<2x32xf32>
    %278 = vector.extract_strided_slice %28 {offsets = [0, 192], sizes = [2, 16], strides = [1, 1]} : vector<2x256xf32> to vector<2x16xf32>
    %c2_241 = arith.constant 2 : index
    %c0_242 = arith.constant 0 : index
    %c0_243 = arith.constant 0 : index
    %279 = vector.load %arg4[%c2_241, %c0_242, %c0_243] : memref<4x16x32xf32, #tpu.memory_space<vmem>>, vector<1x16x32xf32>
    %280 = vector.shape_cast %279 : vector<1x16x32xf32> to vector<16x32xf32>
    %cst_244 = arith.constant dense<0.000000e+00> : vector<2x32xf32>
    %281 = tpu.matmul %278, %280, %cst_244 {dimension_numbers = #tpu.dot_dimension_numbers<[1], [0], [0], [1], [0, 0, 1, 1], [], []>} : vector<2x16xf32>, vector<16x32xf32>, vector<2x32xf32> -> vector<2x32xf32>
    %282 = arith.addf %277, %281 : vector<2x32xf32>
    %c0_245 = arith.constant 0 : index
    %c800 = arith.constant 800 : index
    %283 = vector.load %arg5[%c0_245, %c800] : memref<2x1024xf32, #tpu.memory_space<vmem>>, vector<2x32xf32>
    tpu.vector_store %arg5[%c0_245, %c800], %282 {strides = array<i32>} : memref<2x1024xf32, #tpu.memory_space<vmem>>, vector<2x32xf32>,
    %284 = vector.extract_strided_slice %28 {offsets = [0, 208], sizes = [2, 16], strides = [1, 1]} : vector<2x256xf32> to vector<2x16xf32>
    %c1_246 = arith.constant 1 : index
    %c0_247 = arith.constant 0 : index
    %c0_248 = arith.constant 0 : index
    %285 = vector.load %arg4[%c1_246, %c0_247, %c0_248] : memref<4x16x32xf32, #tpu.memory_space<vmem>>, vector<1x16x32xf32>
    %286 = vector.shape_cast %285 : vector<1x16x32xf32> to vector<16x32xf32>
    %cst_249 = arith.constant dense<0.000000e+00> : vector<2x32xf32>
    %287 = tpu.matmul %284, %286, %cst_249 {dimension_numbers = #tpu.dot_dimension_numbers<[1], [0], [0], [1], [0, 0, 1, 1], [], []>} : vector<2x16xf32>, vector<16x32xf32>, vector<2x32xf32> -> vector<2x32xf32>
    %288 = vector.extract_strided_slice %28 {offsets = [0, 192], sizes = [2, 16], strides = [1, 1]} : vector<2x256xf32> to vector<2x16xf32>
    %c3_250 = arith.constant 3 : index
    %c0_251 = arith.constant 0 : index
    %c0_252 = arith.constant 0 : index
    %289 = vector.load %arg4[%c3_250, %c0_251, %c0_252] : memref<4x16x32xf32, #tpu.memory_space<vmem>>, vector<1x16x32xf32>
    %290 = vector.shape_cast %289 : vector<1x16x32xf32> to vector<16x32xf32>
    %cst_253 = arith.constant dense<0.000000e+00> : vector<2x32xf32>
    %291 = tpu.matmul %288, %290, %cst_253 {dimension_numbers = #tpu.dot_dimension_numbers<[1], [0], [0], [1], [0, 0, 1, 1], [], []>} : vector<2x16xf32>, vector<16x32xf32>, vector<2x32xf32> -> vector<2x32xf32>
    %292 = arith.addf %287, %291 : vector<2x32xf32>
    %c0_254 = arith.constant 0 : index
    %c832 = arith.constant 832 : index
    %293 = vector.load %arg5[%c0_254, %c832] : memref<2x1024xf32, #tpu.memory_space<vmem>>, vector<2x32xf32>
    tpu.vector_store %arg5[%c0_254, %c832], %292 {strides = array<i32>} : memref<2x1024xf32, #tpu.memory_space<vmem>>, vector<2x32xf32>,
    %294 = vector.extract_strided_slice %28 {offsets = [0, 224], sizes = [2, 16], strides = [1, 1]} : vector<2x256xf32> to vector<2x16xf32>
    %c0_255 = arith.constant 0 : index
    %c0_256 = arith.constant 0 : index
    %c0_257 = arith.constant 0 : index
    %295 = vector.load %arg4[%c0_255, %c0_256, %c0_257] : memref<4x16x32xf32, #tpu.memory_space<vmem>>, vector<1x16x32xf32>
    %296 = vector.shape_cast %295 : vector<1x16x32xf32> to vector<16x32xf32>
    %cst_258 = arith.constant dense<0.000000e+00> : vector<2x32xf32>
    %297 = tpu.matmul %294, %296, %cst_258 {dimension_numbers = #tpu.dot_dimension_numbers<[1], [0], [0], [1], [0, 0, 1, 1], [], []>} : vector<2x16xf32>, vector<16x32xf32>, vector<2x32xf32> -> vector<2x32xf32>
    %298 = vector.extract_strided_slice %28 {offsets = [0, 208], sizes = [2, 16], strides = [1, 1]} : vector<2x256xf32> to vector<2x16xf32>
    %c2_259 = arith.constant 2 : index
    %c0_260 = arith.constant 0 : index
    %c0_261 = arith.constant 0 : index
    %299 = vector.load %arg4[%c2_259, %c0_260, %c0_261] : memref<4x16x32xf32, #tpu.memory_space<vmem>>, vector<1x16x32xf32>
    %300 = vector.shape_cast %299 : vector<1x16x32xf32> to vector<16x32xf32>
    %cst_262 = arith.constant dense<0.000000e+00> : vector<2x32xf32>
    %301 = tpu.matmul %298, %300, %cst_262 {dimension_numbers = #tpu.dot_dimension_numbers<[1], [0], [0], [1], [0, 0, 1, 1], [], []>} : vector<2x16xf32>, vector<16x32xf32>, vector<2x32xf32> -> vector<2x32xf32>
    %302 = arith.addf %297, %301 : vector<2x32xf32>
    %c0_263 = arith.constant 0 : index
    %c864 = arith.constant 864 : index
    %303 = vector.load %arg5[%c0_263, %c864] : memref<2x1024xf32, #tpu.memory_space<vmem>>, vector<2x32xf32>
    tpu.vector_store %arg5[%c0_263, %c864], %302 {strides = array<i32>} : memref<2x1024xf32, #tpu.memory_space<vmem>>, vector<2x32xf32>,
    %304 = vector.extract_strided_slice %28 {offsets = [0, 224], sizes = [2, 16], strides = [1, 1]} : vector<2x256xf32> to vector<2x16xf32>
    %c1_264 = arith.constant 1 : index
    %c0_265 = arith.constant 0 : index
    %c0_266 = arith.constant 0 : index
    %305 = vector.load %arg4[%c1_264, %c0_265, %c0_266] : memref<4x16x32xf32, #tpu.memory_space<vmem>>, vector<1x16x32xf32>
    %306 = vector.shape_cast %305 : vector<1x16x32xf32> to vector<16x32xf32>
    %cst_267 = arith.constant dense<0.000000e+00> : vector<2x32xf32>
    %307 = tpu.matmul %304, %306, %cst_267 {dimension_numbers = #tpu.dot_dimension_numbers<[1], [0], [0], [1], [0, 0, 1, 1], [], []>} : vector<2x16xf32>, vector<16x32xf32>, vector<2x32xf32> -> vector<2x32xf32>
    %308 = vector.extract_strided_slice %28 {offsets = [0, 208], sizes = [2, 16], strides = [1, 1]} : vector<2x256xf32> to vector<2x16xf32>
    %c3_268 = arith.constant 3 : index
    %c0_269 = arith.constant 0 : index
    %c0_270 = arith.constant 0 : index
    %309 = vector.load %arg4[%c3_268, %c0_269, %c0_270] : memref<4x16x32xf32, #tpu.memory_space<vmem>>, vector<1x16x32xf32>
    %310 = vector.shape_cast %309 : vector<1x16x32xf32> to vector<16x32xf32>
    %cst_271 = arith.constant dense<0.000000e+00> : vector<2x32xf32>
    %311 = tpu.matmul %308, %310, %cst_271 {dimension_numbers = #tpu.dot_dimension_numbers<[1], [0], [0], [1], [0, 0, 1, 1], [], []>} : vector<2x16xf32>, vector<16x32xf32>, vector<2x32xf32> -> vector<2x32xf32>
    %312 = arith.addf %307, %311 : vector<2x32xf32>
    %c0_272 = arith.constant 0 : index
    %c896 = arith.constant 896 : index
    %313 = vector.load %arg5[%c0_272, %c896] : memref<2x1024xf32, #tpu.memory_space<vmem>>, vector<2x32xf32>
    tpu.vector_store %arg5[%c0_272, %c896], %312 {strides = array<i32>} : memref<2x1024xf32, #tpu.memory_space<vmem>>, vector<2x32xf32>,
    %314 = vector.extract_strided_slice %28 {offsets = [0, 240], sizes = [2, 16], strides = [1, 1]} : vector<2x256xf32> to vector<2x16xf32>
    %c0_273 = arith.constant 0 : index
    %c0_274 = arith.constant 0 : index
    %c0_275 = arith.constant 0 : index
    %315 = vector.load %arg4[%c0_273, %c0_274, %c0_275] : memref<4x16x32xf32, #tpu.memory_space<vmem>>, vector<1x16x32xf32>
    %316 = vector.shape_cast %315 : vector<1x16x32xf32> to vector<16x32xf32>
    %cst_276 = arith.constant dense<0.000000e+00> : vector<2x32xf32>
    %317 = tpu.matmul %314, %316, %cst_276 {dimension_numbers = #tpu.dot_dimension_numbers<[1], [0], [0], [1], [0, 0, 1, 1], [], []>} : vector<2x16xf32>, vector<16x32xf32>, vector<2x32xf32> -> vector<2x32xf32>
    %318 = vector.extract_strided_slice %28 {offsets = [0, 224], sizes = [2, 16], strides = [1, 1]} : vector<2x256xf32> to vector<2x16xf32>
    %c2_277 = arith.constant 2 : index
    %c0_278 = arith.constant 0 : index
    %c0_279 = arith.constant 0 : index
    %319 = vector.load %arg4[%c2_277, %c0_278, %c0_279] : memref<4x16x32xf32, #tpu.memory_space<vmem>>, vector<1x16x32xf32>
    %320 = vector.shape_cast %319 : vector<1x16x32xf32> to vector<16x32xf32>
    %cst_280 = arith.constant dense<0.000000e+00> : vector<2x32xf32>
    %321 = tpu.matmul %318, %320, %cst_280 {dimension_numbers = #tpu.dot_dimension_numbers<[1], [0], [0], [1], [0, 0, 1, 1], [], []>} : vector<2x16xf32>, vector<16x32xf32>, vector<2x32xf32> -> vector<2x32xf32>
    %322 = arith.addf %317, %321 : vector<2x32xf32>
    %c0_281 = arith.constant 0 : index
    %c928 = arith.constant 928 : index
    %323 = vector.load %arg5[%c0_281, %c928] : memref<2x1024xf32, #tpu.memory_space<vmem>>, vector<2x32xf32>
    tpu.vector_store %arg5[%c0_281, %c928], %322 {strides = array<i32>} : memref<2x1024xf32, #tpu.memory_space<vmem>>, vector<2x32xf32>,
    %324 = vector.extract_strided_slice %28 {offsets = [0, 240], sizes = [2, 16], strides = [1, 1]} : vector<2x256xf32> to vector<2x16xf32>
    %c1_282 = arith.constant 1 : index
    %c0_283 = arith.constant 0 : index
    %c0_284 = arith.constant 0 : index
    %325 = vector.load %arg4[%c1_282, %c0_283, %c0_284] : memref<4x16x32xf32, #tpu.memory_space<vmem>>, vector<1x16x32xf32>
    %326 = vector.shape_cast %325 : vector<1x16x32xf32> to vector<16x32xf32>
    %cst_285 = arith.constant dense<0.000000e+00> : vector<2x32xf32>
    %327 = tpu.matmul %324, %326, %cst_285 {dimension_numbers = #tpu.dot_dimension_numbers<[1], [0], [0], [1], [0, 0, 1, 1], [], []>} : vector<2x16xf32>, vector<16x32xf32>, vector<2x32xf32> -> vector<2x32xf32>
    %328 = vector.extract_strided_slice %28 {offsets = [0, 224], sizes = [2, 16], strides = [1, 1]} : vector<2x256xf32> to vector<2x16xf32>
    %c3_286 = arith.constant 3 : index
    %c0_287 = arith.constant 0 : index
    %c0_288 = arith.constant 0 : index
    %329 = vector.load %arg4[%c3_286, %c0_287, %c0_288] : memref<4x16x32xf32, #tpu.memory_space<vmem>>, vector<1x16x32xf32>
    %330 = vector.shape_cast %329 : vector<1x16x32xf32> to vector<16x32xf32>
    %cst_289 = arith.constant dense<0.000000e+00> : vector<2x32xf32>
    %331 = tpu.matmul %328, %330, %cst_289 {dimension_numbers = #tpu.dot_dimension_numbers<[1], [0], [0], [1], [0, 0, 1, 1], [], []>} : vector<2x16xf32>, vector<16x32xf32>, vector<2x32xf32> -> vector<2x32xf32>
    %332 = arith.addf %327, %331 : vector<2x32xf32>
    %c0_290 = arith.constant 0 : index
    %c960 = arith.constant 960 : index
    %333 = vector.load %arg5[%c0_290, %c960] : memref<2x1024xf32, #tpu.memory_space<vmem>>, vector<2x32xf32>
    tpu.vector_store %arg5[%c0_290, %c960], %332 {strides = array<i32>} : memref<2x1024xf32, #tpu.memory_space<vmem>>, vector<2x32xf32>,
    %334 = vector.extract_strided_slice %28 {offsets = [0, 240], sizes = [2, 16], strides = [1, 1]} : vector<2x256xf32> to vector<2x16xf32>
    %c2_291 = arith.constant 2 : index
    %c0_292 = arith.constant 0 : index
    %c0_293 = arith.constant 0 : index
    %335 = vector.load %arg4[%c2_291, %c0_292, %c0_293] : memref<4x16x32xf32, #tpu.memory_space<vmem>>, vector<1x16x32xf32>
    %336 = vector.shape_cast %335 : vector<1x16x32xf32> to vector<16x32xf32>
    %cst_294 = arith.constant dense<0.000000e+00> : vector<2x32xf32>
    %337 = tpu.matmul %334, %336, %cst_294 {dimension_numbers = #tpu.dot_dimension_numbers<[1], [0], [0], [1], [0, 0, 1, 1], [], []>} : vector<2x16xf32>, vector<16x32xf32>, vector<2x32xf32> -> vector<2x32xf32>
    %c0_295 = arith.constant 0 : index
    %c992 = arith.constant 992 : index
    %338 = vector.load %arg5[%c0_295, %c992] : memref<2x1024xf32, #tpu.memory_space<vmem>>, vector<2x32xf32>
    tpu.vector_store %arg5[%c0_295, %c992], %337 {strides = array<i32>} : memref<2x1024xf32, #tpu.memory_space<vmem>>, vector<2x32xf32>,
    return
  }
  func.func @transform_0(%arg0: i32) -> (i32, i32) {
    %c0_i32 = arith.constant 0 : i32
    %c0_i32_0 = arith.constant 0 : i32
    return %arg0, %c0_i32 : i32, i32
  }
  func.func @transform_1(%arg0: i32) -> (i32, i32) {
    %c0_i32 = arith.constant 0 : i32
    %c0_i32_0 = arith.constant 0 : i32
    %c0_i32_1 = arith.constant 0 : i32
    return %c0_i32, %c0_i32_0 : i32, i32
  }
  func.func @transform_2(%arg0: i32) -> (i32, i32) {
    %c0_i32 = arith.constant 0 : i32
    %c0_i32_0 = arith.constant 0 : i32
    %c0_i32_1 = arith.constant 0 : i32
    return %c0_i32, %c0_i32_0 : i32, i32
  }
  func.func @transform_3(%arg0: i32) -> (i32, i32, i32) {
    %c0_i32 = arith.constant 0 : i32
    %c0_i32_0 = arith.constant 0 : i32
    %c0_i32_1 = arith.constant 0 : i32
    %c0_i32_2 = arith.constant 0 : i32
    return %c0_i32, %c0_i32_0, %c0_i32_1 : i32, i32, i32
  }
  func.func @transform_4(%arg0: i32) -> (i32, i32) {
    %c0_i32 = arith.constant 0 : i32
    %c0_i32_0 = arith.constant 0 : i32
    return %arg0, %c0_i32 : i32, i32
  }
}

</mosaic_0001>

<llo_original>
// kernel: tpu_custom_call.1
$region0: #{tpu_custom_call.1}
  #allocation0 [shape = 'u32[]', space=smem, size = 0x4, offset = 0x4, fixed_abs, tag = 'smem constant byte address 0x4 - core index']
  #allocation1 [shape = 'u32[144,128]{1,0:T(1,128)}', space=vmem, size = 0x12000, scoped, tag = 'internal scratch']
  #allocation2 [shape = 'f32[1,1]{1,0:T(1,128)S(6)}', space=smem, size = 0x200, scoped, tag = 'scoped memory for tpu_custom_call.1']
  %s0 = inlined_call_operand.hbm [shape: f32[2,1024], index: 0, kind: input, shape index: {}]
  %s1 = inlined_call_operand.vmem [shape: f32[1,4], index: 1, kind: input, shape index: {}]
  %s2 = inlined_call_operand.<no memory space> [shape: f32[1,1], index: 2, kind: input, shape index: {}]
  %s3 = inlined_call_operand.hbm [shape: f32[4,16,32], index: 3, kind: input, shape index: {}]
  %s4 = inlined_call_operand.hbm [shape: f32[2,1024], index: 4, kind: output, shape index: {}]
  %s5 = sld [smem:[#allocation0]]
  $region38: #{tpu_custom_call.1} parent=0
    _
  %s7 = ssub.s32 1, %s5
  %s8 = scalar_select 0, %s7, %s5
  %9 = sst [smem:[#allocation2]] %s2
  $region1: #{tpu_custom_call.1} parent=0
    #allocation3 [shape = 'u8[8192]{0}', space=vmem, size = 0x2000, scoped, tag = 'input window, operand 0, single buffered']
    #allocation4 [shape = 's32[1]{0}', space=sflag, size = 0x4, scoped, tag = 'scoped memory for tpu_custom_call.1']
    #allocation5 [shape = 's32[1]{0}', space=sflag, size = 0x4, scoped, tag = 'scoped memory for tpu_custom_call.1']
    #allocation6 [shape = 's32[1]{0}', space=sflag, size = 0x4, scoped, tag = 'scoped memory for tpu_custom_call.1']
    #allocation7 [shape = 'u8[512]{0}', space=smem, size = 0x200, scoped, tag = 'input window, operand 1, single buffered']
    #allocation8 [shape = 'u8[32768]{0}', space=vmem, size = 0x8000, scoped, tag = 'input window, operand 3, single buffered']
    #allocation9 [shape = 's32[1]{0}', space=sflag, size = 0x4, scoped, tag = 'scoped memory for tpu_custom_call.1']
    #allocation10 [shape = 'u8[8192]{0}', space=vmem, size = 0x2000, scoped, tag = 'output window, operand 0, single buffered']
    %10 = vsyncpa [#allocation4], 0
    %11 = vsyncpa [#allocation6], 0
    %12 = vsyncpa [#allocation9], 0
    %13 = vsyncpa [#allocation5], 0
    // Predicated region
    $region2: #{tpu_custom_call.1} parent=1 // pred_check
      _
    $region3: #{tpu_custom_call.1} parent=1 // pred_check_branch
      %15 = sbr.rel (0) target = $region5
    $region4: #{tpu_custom_call.1} parent=1 // pred_region
      %s17 = ssub.s32 256, 256
      %18 = vsyncadd [#allocation4], %s17
      %s20 = sshll.u32 [#allocation3], 4
      %s21 = int_to_ptr.vmem [resolvable:$true] %s20
      %23 = dma.hbm_to_vmem [thread:$0]  %s0, 256, %s21, [#allocation4]
    $region5: #{tpu_custom_call.1} parent=1 // pred_fallthru
      _
    // Predicated region
    $region6: #{tpu_custom_call.1} parent=1 // pred_check
      _
    $region7: #{tpu_custom_call.1} parent=1 // pred_check_branch
      %25 = sbr.rel (0) target = $region9
    $region8: #{tpu_custom_call.1} parent=1 // pred_region
      %s27 = ssub.s32 16, 16
      %28 = vsyncadd [#allocation6], %s27
      %s30 = sshll.u32 %s1, 4
      %s31 = int_to_ptr.vmem [resolvable:$true] %s30
      %33 = dma.vmem_to_smem %s31, 16, [#allocation7], [#allocation6]
    $region9: #{tpu_custom_call.1} parent=1 // pred_fallthru
      _
    // Predicated region
    $region10: #{tpu_custom_call.1} parent=1 // pred_check
      _
    $region11: #{tpu_custom_call.1} parent=1 // pred_check_branch
      %35 = sbr.rel (0) target = $region13
    $region12: #{tpu_custom_call.1} parent=1 // pred_region
      _
    $region13: #{tpu_custom_call.1} parent=1 // pred_fallthru
      _
    // Predicated region
    $region14: #{tpu_custom_call.1} parent=1 // pred_check
      _
    $region15: #{tpu_custom_call.1} parent=1 // pred_check_branch
      %37 = sbr.rel (0) target = $region17
    $region16: #{tpu_custom_call.1} parent=1 // pred_region
      %s39 = ssub.s32 1024, 1024
      %40 = vsyncadd [#allocation9], %s39
      %s41 = sshll.u32 [#allocation8], 4
      %s42 = int_to_ptr.vmem [resolvable:$true] %s41
      %47 = dma.hbm_to_vmem [thread:$0]  %s3, 1024, %s42, [#allocation9], 128, 128, 8
    $region17: #{tpu_custom_call.1} parent=1 // pred_fallthru
      _
    // Predicated region
    $region18: #{tpu_custom_call.1} parent=1 // pred_check
      _
    $region19: #{tpu_custom_call.1} parent=1 // pred_check_branch
      %49 = sbr.rel (0) target = $region21
    $region20: #{tpu_custom_call.1} parent=1 // pred_region
      %50 = dma.done [#allocation4], 256
    $region21: #{tpu_custom_call.1} parent=1 // pred_fallthru
      _
    // Predicated region
    $region22: #{tpu_custom_call.1} parent=1 // pred_check
      _
    $region23: #{tpu_custom_call.1} parent=1 // pred_check_branch
      %52 = sbr.rel (0) target = $region25
    $region24: #{tpu_custom_call.1} parent=1 // pred_region
      %53 = dma.done [#allocation6], 16
    $region25: #{tpu_custom_call.1} parent=1 // pred_fallthru
      _
    // Predicated region
    $region26: #{tpu_custom_call.1} parent=1 // pred_check
      _
    $region27: #{tpu_custom_call.1} parent=1 // pred_check_branch
      %55 = sbr.rel (0) target = $region29
    $region28: #{tpu_custom_call.1} parent=1 // pred_region
      %56 = dma.done [#allocation9], 1024
    $region29: #{tpu_custom_call.1} parent=1 // pred_fallthru
      _
    %57 = sfence
    %v58 = vld [vmem:[#allocation3] sm:$0xf]
    %s59 = sld [smem:[#allocation7]]
    %v60 = vstv %s59
    %v61 = vmul.f32 %v58, %v60
    %v62 = vld [vmem:[#allocation3 + $0x4] sm:$0xf]
    %s63 = sld [smem:[#allocation7 + $0x1]]
    %v64 = vstv %s63
    %v65 = vmul.f32 %v62, %v64
    %v66 = vadd.f32 %v61, %v65
    %v67 = vld [vmem:[#allocation3 + $0x8] sm:$0xf]
    %s68 = sld [smem:[#allocation7 + $0x2]]
    %v69 = vstv %s68
    %v70 = vmul.f32 %v67, %v69
    %v71 = vadd.f32 %v66, %v70
    %v72 = vld [vmem:[#allocation3 + $0xc] sm:$0xf]
    %s73 = sld [smem:[#allocation7 + $0x3]]
    %v74 = vstv %s73
    %v75 = vmul.f32 %v72, %v74
    %v76 = vadd.f32 %v71, %v75
    %s77 = sld [smem:[#allocation2]]
    %v78 = vstv %s77
    %v79 = vadd.f32 %v76, %v78
    %v80 = vsub.f32 0.0, %v79
    %v81 = vmul.f32 %v80, 1.442695
    %v82 = vpow.pop %v81
    %v83 = vadd.f32 %v82, 1.0
    %v84 = vrcp.pop %v83
    %v85 = vmul.f32 %v79, %v84
    %s86 = scalar_lea.vmem [#allocation8], 16
    %v87 = vld [vmem:[%s86] sm:$0xff]
    %v88 = vld [vmem:[%s86 + $0x8] sm:$0xff]
    %vm89 = vcmask 130048
    %v91 = vsel %vm89, %v85, 0
    %93 = vmatprep.subr.mxu0 0.0
    %94 = vmatpush1.msra.mxu0 %v87
    %95 = vmatprep.subr.mxu0 0.0
    %96 = vmatpush1.msra.mxu0 %v88
    %97 = vmatprep.subr.mxu0 0.0
    %98 = vmatpush1.msra.mxu0 0.0
    %99 = vmatprep.subr.mxu0 0.0
    %100 = vmatpush1.msra.mxu0 0.0
    %101 = vmatprep.subr.mxu0 0.0
    %102 = vmatpush1.msra.mxu0 0.0
    %103 = vmatprep.subr.mxu0 0.0
    %104 = vmatpush1.msra.mxu0 0.0
    %105 = vmatprep.subr.mxu0 0.0
    %106 = vmatpush1.msra.mxu0 0.0
    %107 = vmatprep.subr.mxu0 0.0
    %108 = vmatpush1.msra.mxu0 0.0
    %109 = vmatprep.subr.mxu0 0.0
    %110 = vmatpush1.msra.mxu0 0.0
    %111 = vmatprep.subr.mxu0 0.0
    %112 = vmatpush1.msra.mxu0 0.0
    %113 = vmatprep.subr.mxu0 0.0
    %114 = vmatpush1.msra.mxu0 0.0
    %115 = vmatprep.subr.mxu0 0.0
    %116 = vmatpush1.msra.mxu0 0.0
    %117 = vmatprep.subr.mxu0 0.0
    %118 = vmatpush1.msra.mxu0 0.0
    %119 = vmatprep.subr.mxu0 0.0
    %120 = vmatpush1.msra.mxu0 0.0
    %121 = vmatprep.subr.mxu0 0.0
    %122 = vmatpush1.msra.mxu0 0.0
    %123 = vmatprep.subr.mxu0 0.0
    %124 = vmatpush1.msra.mxu0 0.0
    %125 = vmatprep.subr.mxu0 0.0
    %126 = vmatpush1.msra.mxu0 0.0
    %127 = vmatprep.subr.mxu0 0.0
    %128 = vmatpush1.msra.mxu0 0.0
    %129 = vmatprep.subr.mxu0 0.0
    %130 = vmatpush1.msra.mxu0 0.0
    %131 = vmatprep.subr.mxu0 0.0
    %132 = vmatpush1.msra.mxu0 0.0
    %133 = vmatprep.subr.mxu0 0.0
    %134 = vmatpush1.msra.mxu0 0.0
    %135 = vmatprep.subr.mxu0 0.0
    %136 = vmatpush1.msra.mxu0 0.0
    %137 = vmatprep.subr.mxu0 0.0
    %138 = vmatpush1.msra.mxu0 0.0
    %139 = vmatprep.subr.mxu0 0.0
    %140 = vmatpush1.msra.mxu0 0.0
    %141 = vmatprep.subr.mxu0 0.0
    %142 = vmatpush1.msra.mxu0 0.0
    %143 = vmatprep.subr.mxu0 0.0
    %144 = vmatpush1.msra.mxu0 0.0
    %145 = vmatprep.subr.mxu0 0.0
    %146 = vmatpush1.msra.mxu0 0.0
    %147 = vmatprep.subr.mxu0 0.0
    %148 = vmatpush1.msra.mxu0 0.0
    %149 = vmatprep.subr.mxu0 0.0
    %150 = vmatpush1.msra.mxu0 0.0
    %151 = vmatprep.subr.mxu0 0.0
    %152 = vmatpush1.msra.mxu0 0.0
    %153 = vmatprep.subr.mxu0 0.0
    %154 = vmatpush1.msra.mxu0 0.0
    %155 = vmatprep.subr.mxu0 0.0
    %156 = vmatpush1.msra.mxu0 0.0
    %157 = vmatprep.mubr.f32.mxu0 0.0
    %158 = vmatmul.mubr.f32.gmra.mrb[0].mxu0 %v91
    %v159 = vpop.f32.mrb[0].mxu0
    %v160 = vadd.f32 0.0, %v159
    %v161 = vpop.f32.mrb[0].mxu0
    %162 = vdwg.mxu0
    %vm163 = vcmask 254976
    %164 = vst.msk [vmem:[#allocation10] sm:$0x3] %vm163, %v160
    %v165 = vld [vmem:[#allocation8] sm:$0xff]
    %v166 = vld [vmem:[#allocation8 + $0x8] sm:$0xff]
    %s167 = scalar_lea.vmem [#allocation8], 32
    %v168 = vld [vmem:[%s167] sm:$0xff]
    %v169 = vld [vmem:[%s167 + $0x8] sm:$0xff]
    %170 = vmatprep.subr.mxu0 0.0
    %171 = vmatpush1.msra.mxu0 %v168
    %172 = vmatprep.subr.mxu0 0.0
    %173 = vmatpush1.msra.mxu0 %v169
    %174 = vmatprep.subr.mxu0 0.0
    %175 = vmatpush1.msra.mxu0 0.0
    %176 = vmatprep.subr.mxu0 0.0
    %177 = vmatpush1.msra.mxu0 0.0
    %178 = vmatprep.subr.mxu0 0.0
    %179 = vmatpush1.msra.mxu0 0.0
    %180 = vmatprep.subr.mxu0 0.0
    %181 = vmatpush1.msra.mxu0 0.0
    %182 = vmatprep.subr.mxu0 0.0
    %183 = vmatpush1.msra.mxu0 0.0
    %184 = vmatprep.subr.mxu0 0.0
    %185 = vmatpush1.msra.mxu0 0.0
    %186 = vmatprep.subr.mxu0 0.0
    %187 = vmatpush1.msra.mxu0 0.0
    %188 = vmatprep.subr.mxu0 0.0
    %189 = vmatpush1.msra.mxu0 0.0
    %190 = vmatprep.subr.mxu0 0.0
    %191 = vmatpush1.msra.mxu0 0.0
    %192 = vmatprep.subr.mxu0 0.0
    %193 = vmatpush1.msra.mxu0 0.0
    %194 = vmatprep.subr.mxu0 0.0
    %195 = vmatpush1.msra.mxu0 0.0
    %196 = vmatprep.subr.mxu0 0.0
    %197 = vmatpush1.msra.mxu0 0.0
    %198 = vmatprep.subr.mxu0 0.0
    %199 = vmatpush1.msra.mxu0 0.0
    %200 = vmatprep.subr.mxu0 0.0
    %201 = vmatpush1.msra.mxu0 0.0
    %202 = vmatprep.subr.mxu0 0.0
    %203 = vmatpush1.msra.mxu0 0.0
    %204 = vmatprep.subr.mxu0 0.0
    %205 = vmatpush1.msra.mxu0 0.0
    %206 = vmatprep.subr.mxu0 0.0
    %207 = vmatpush1.msra.mxu0 0.0
    %208 = vmatprep.subr.mxu0 0.0
    %209 = vmatpush1.msra.mxu0 0.0
    %210 = vmatprep.subr.mxu0 0.0
    %211 = vmatpush1.msra.mxu0 0.0
    %212 = vmatprep.subr.mxu0 0.0
    %213 = vmatpush1.msra.mxu0 0.0
    %214 = vmatprep.subr.mxu0 0.0
    %215 = vmatpush1.msra.mxu0 0.0
    %216 = vmatprep.subr.mxu0 0.0
    %217 = vmatpush1.msra.mxu0 0.0
    %218 = vmatprep.subr.mxu0 0.0
    %219 = vmatpush1.msra.mxu0 0.0
    %220 = vmatprep.subr.mxu0 0.0
    %221 = vmatpush1.msra.mxu0 0.0
    %222 = vmatprep.subr.mxu0 0.0
    %223 = vmatpush1.msra.mxu0 0.0
    %224 = vmatprep.subr.mxu0 0.0
    %225 = vmatpush1.msra.mxu0 0.0
    %226 = vmatprep.subr.mxu0 0.0
    %227 = vmatpush1.msra.mxu0 0.0
    %228 = vmatprep.subr.mxu0 0.0
    %229 = vmatpush1.msra.mxu0 0.0
    %230 = vmatprep.subr.mxu0 0.0
    %231 = vmatpush1.msra.mxu0 0.0
    %232 = vmatprep.subr.mxu0 0.0
    %233 = vmatpush1.msra.mxu0 0.0
    %234 = vmatprep.mubr.f32.mxu0 0.0
    %235 = vmatmul.mubr.f32.gmra.mrb[0].mxu0 %v91
    %v236 = vpop.f32.mrb[0].mxu0
    %v237 = vadd.f32 0.0, %v236
    %v238 = vpop.f32.mrb[0].mxu0
    %239 = vdwg.mxu0
    %v241 = vunpack.c.l.s4 1983009808
    %v242 = vunpack.c.0.s8 %v241
    %v243 = vlaneseq
    %v244 = vshrl.u32 %v243, 7
    %v245 = vsub.s32 %v242, %v244
    %v246 = vrot.slane %v85, %v245
    %247 = vrot.lane.b32.xlu0 %v246, 112
    %v248 = vpop.permute.xlu0 %247
    %v249 = vsel %vm89, %v248, 0
    %251 = vmatprep.subr.mxu0 0.0
    %252 = vmatpush1.msra.mxu0 %v165
    %253 = vmatprep.subr.mxu0 0.0
    %254 = vmatpush1.msra.mxu0 %v166
    %255 = vmatprep.subr.mxu0 0.0
    %256 = vmatpush1.msra.mxu0 0.0
    %257 = vmatprep.subr.mxu0 0.0
    %258 = vmatpush1.msra.mxu0 0.0
    %259 = vmatprep.subr.mxu0 0.0
    %260 = vmatpush1.msra.mxu0 0.0
    %261 = vmatprep.subr.mxu0 0.0
    %262 = vmatpush1.msra.mxu0 0.0
    %263 = vmatprep.subr.mxu0 0.0
    %264 = vmatpush1.msra.mxu0 0.0
    %265 = vmatprep.subr.mxu0 0.0
    %266 = vmatpush1.msra.mxu0 0.0
    %267 = vmatprep.subr.mxu0 0.0
    %268 = vmatpush1.msra.mxu0 0.0
    %269 = vmatprep.subr.mxu0 0.0
    %270 = vmatpush1.msra.mxu0 0.0
    %271 = vmatprep.subr.mxu0 0.0
    %272 = vmatpush1.msra.mxu0 0.0
    %273 = vmatprep.subr.mxu0 0.0
    %274 = vmatpush1.msra.mxu0 0.0
    %275 = vmatprep.subr.mxu0 0.0
    %276 = vmatpush1.msra.mxu0 0.0
    %277 = vmatprep.subr.mxu0 0.0
    %278 = vmatpush1.msra.mxu0 0.0
    %279 = vmatprep.subr.mxu0 0.0
    %280 = vmatpush1.msra.mxu0 0.0
    %281 = vmatprep.subr.mxu0 0.0
    %282 = vmatpush1.msra.mxu0 0.0
    %283 = vmatprep.subr.mxu0 0.0
    %284 = vmatpush1.msra.mxu0 0.0
    %285 = vmatprep.subr.mxu0 0.0
    %286 = vmatpush1.msra.mxu0 0.0
    %287 = vmatprep.subr.mxu0 0.0
    %288 = vmatpush1.msra.mxu0 0.0
    %289 = vmatprep.subr.mxu0 0.0
    %290 = vmatpush1.msra.mxu0 0.0
    %291 = vmatprep.subr.mxu0 0.0
    %292 = vmatpush1.msra.mxu0 0.0
    %293 = vmatprep.subr.mxu0 0.0
    %294 = vmatpush1.msra.mxu0 0.0
    %295 = vmatprep.subr.mxu0 0.0
    %296 = vmatpush1.msra.mxu0 0.0
    %297 = vmatprep.subr.mxu0 0.0
    %298 = vmatpush1.msra.mxu0 0.0
    %299 = vmatprep.subr.mxu0 0.0
    %300 = vmatpush1.msra.mxu0 0.0
    %301 = vmatprep.subr.mxu0 0.0
    %302 = vmatpush1.msra.mxu0 0.0
    %303 = vmatprep.subr.mxu0 0.0
    %304 = vmatpush1.msra.mxu0 0.0
    %305 = vmatprep.subr.mxu0 0.0
    %306 = vmatpush1.msra.mxu0 0.0
    %307 = vmatprep.subr.mxu0 0.0
    %308 = vmatpush1.msra.mxu0 0.0
    %309 = vmatprep.subr.mxu0 0.0
    %310 = vmatpush1.msra.mxu0 0.0
    %311 = vmatprep.subr.mxu0 0.0
    %312 = vmatpush1.msra.mxu0 0.0
    %313 = vmatprep.subr.mxu0 0.0
    %314 = vmatpush1.msra.mxu0 0.0
    %315 = vmatprep.mubr.f32.mxu0 0.0
    %316 = vmatmul.mubr.f32.gmra.mrb[0].mxu0 %v249
    %v317 = vpop.f32.mrb[0].mxu0
    %v318 = vadd.f32 %v237, %v317
    %v319 = vpop.f32.mrb[0].mxu0
    %320 = vdwg.mxu0
    %v323 = vunpack.c.l.s4 1983009808
    %v324 = vunpack.c.0.s8 %v323
    %v325 = vlaneseq
    %v326 = vshrl.u32 %v325, 7
    %v327 = vsub.s32 %v324, %v326
    %v328 = vrot.slane %v318, %v327
    %329 = vrot.lane.b32.xlu0 %v328, 32
    %v330 = vpop.permute.xlu0 %329
    %vm332 = vcmask 517376
    %333 = vst.msk [vmem:[#allocation10] sm:$0x3] %vm332, %v330
    %v334 = vld [vmem:[%s86] sm:$0xff]
    %v335 = vld [vmem:[%s86 + $0x8] sm:$0xff]
    %s336 = scalar_lea.vmem [#allocation8], 48
    %v337 = vld [vmem:[%s336] sm:$0xff]
    %v338 = vld [vmem:[%s336 + $0x8] sm:$0xff]
    %339 = vmatprep.subr.mxu0 0.0
    %340 = vmatpush1.msra.mxu0 %v337
    %341 = vmatprep.subr.mxu0 0.0
    %342 = vmatpush1.msra.mxu0 %v338
    %343 = vmatprep.subr.mxu0 0.0
    %344 = vmatpush1.msra.mxu0 0.0
    %345 = vmatprep.subr.mxu0 0.0
    %346 = vmatpush1.msra.mxu0 0.0
    %347 = vmatprep.subr.mxu0 0.0
    %348 = vmatpush1.msra.mxu0 0.0
    %349 = vmatprep.subr.mxu0 0.0
    %350 = vmatpush1.msra.mxu0 0.0
    %351 = vmatprep.subr.mxu0 0.0
    %352 = vmatpush1.msra.mxu0 0.0
    %353 = vmatprep.subr.mxu0 0.0
    %354 = vmatpush1.msra.mxu0 0.0
    %355 = vmatprep.subr.mxu0 0.0
    %356 = vmatpush1.msra.mxu0 0.0
    %357 = vmatprep.subr.mxu0 0.0
    %358 = vmatpush1.msra.mxu0 0.0
    %359 = vmatprep.subr.mxu0 0.0
    %360 = vmatpush1.msra.mxu0 0.0
    %361 = vmatprep.subr.mxu0 0.0
    %362 = vmatpush1.msra.mxu0 0.0
    %363 = vmatprep.subr.mxu0 0.0
    %364 = vmatpush1.msra.mxu0 0.0
    %365 = vmatprep.subr.mxu0 0.0
    %366 = vmatpush1.msra.mxu0 0.0
    %367 = vmatprep.subr.mxu0 0.0
    %368 = vmatpush1.msra.mxu0 0.0
    %369 = vmatprep.subr.mxu0 0.0
    %370 = vmatpush1.msra.mxu0 0.0
    %371 = vmatprep.subr.mxu0 0.0
    %372 = vmatpush1.msra.mxu0 0.0
    %373 = vmatprep.subr.mxu0 0.0
    %374 = vmatpush1.msra.mxu0 0.0
    %375 = vmatprep.subr.mxu0 0.0
    %376 = vmatpush1.msra.mxu0 0.0
    %377 = vmatprep.subr.mxu0 0.0
    %378 = vmatpush1.msra.mxu0 0.0
    %379 = vmatprep.subr.mxu0 0.0
    %380 = vmatpush1.msra.mxu0 0.0
    %381 = vmatprep.subr.mxu0 0.0
    %382 = vmatpush1.msra.mxu0 0.0
    %383 = vmatprep.subr.mxu0 0.0
    %384 = vmatpush1.msra.mxu0 0.0
    %385 = vmatprep.subr.mxu0 0.0
    %386 = vmatpush1.msra.mxu0 0.0
    %387 = vmatprep.subr.mxu0 0.0
    %388 = vmatpush1.msra.mxu0 0.0
    %389 = vmatprep.subr.mxu0 0.0
    %390 = vmatpush1.msra.mxu0 0.0
    %391 = vmatprep.subr.mxu0 0.0
    %392 = vmatpush1.msra.mxu0 0.0
    %393 = vmatprep.subr.mxu0 0.0
    %394 = vmatpush1.msra.mxu0 0.0
    %395 = vmatprep.subr.mxu0 0.0
    %396 = vmatpush1.msra.mxu0 0.0
    %397 = vmatprep.subr.mxu0 0.0
    %398 = vmatpush1.msra.mxu0 0.0
    %399 = vmatprep.subr.mxu0 0.0
    %400 = vmatpush1.msra.mxu0 0.0
    %401 = vmatprep.subr.mxu0 0.0
    %402 = vmatpush1.msra.mxu0 0.0
    %403 = vmatprep.mubr.f32.mxu0 0.0
    %404 = vmatmul.mubr.f32.gmra.mrb[0].mxu0 %v91
    %v405 = vpop.f32.mrb[0].mxu0
    %v406 = vadd.f32 0.0, %v405
    %v407 = vpop.f32.mrb[0].mxu0
    %408 = vdwg.mxu0
    %409 = vmatprep.subr.mxu0 0.0
    %410 = vmatpush1.msra.mxu0 %v334
    %411 = vmatprep.subr.mxu0 0.0
    %412 = vmatpush1.msra.mxu0 %v335
    %413 = vmatprep.subr.mxu0 0.0
    %414 = vmatpush1.msra.mxu0 0.0
    %415 = vmatprep.subr.mxu0 0.0
    %416 = vmatpush1.msra.mxu0 0.0
    %417 = vmatprep.subr.mxu0 0.0
    %418 = vmatpush1.msra.mxu0 0.0
    %419 = vmatprep.subr.mxu0 0.0
    %420 = vmatpush1.msra.mxu0 0.0
    %421 = vmatprep.subr.mxu0 0.0
    %422 = vmatpush1.msra.mxu0 0.0
    %423 = vmatprep.subr.mxu0 0.0
    %424 = vmatpush1.msra.mxu0 0.0
    %425 = vmatprep.subr.mxu0 0.0
    %426 = vmatpush1.msra.mxu0 0.0
    %427 = vmatprep.subr.mxu0 0.0
    %428 = vmatpush1.msra.mxu0 0.0
    %429 = vmatprep.subr.mxu0 0.0
    %430 = vmatpush1.msra.mxu0 0.0
    %431 = vmatprep.subr.mxu0 0.0
    %432 = vmatpush1.msra.mxu0 0.0
    %433 = vmatprep.subr.mxu0 0.0
    %434 = vmatpush1.msra.mxu0 0.0
    %435 = vmatprep.subr.mxu0 0.0
    %436 = vmatpush1.msra.mxu0 0.0
    %437 = vmatprep.subr.mxu0 0.0
    %438 = vmatpush1.msra.mxu0 0.0
    %439 = vmatprep.subr.mxu0 0.0
    %440 = vmatpush1.msra.mxu0 0.0
    %441 = vmatprep.subr.mxu0 0.0
    %442 = vmatpush1.msra.mxu0 0.0
    %443 = vmatprep.subr.mxu0 0.0
    %444 = vmatpush1.msra.mxu0 0.0
    %445 = vmatprep.subr.mxu0 0.0
    %446 = vmatpush1.msra.mxu0 0.0
    %447 = vmatprep.subr.mxu0 0.0
    %448 = vmatpush1.msra.mxu0 0.0
    %449 = vmatprep.subr.mxu0 0.0
    %450 = vmatpush1.msra.mxu0 0.0
    %451 = vmatprep.subr.mxu0 0.0
    %452 = vmatpush1.msra.mxu0 0.0
    %453 = vmatprep.subr.mxu0 0.0
    %454 = vmatpush1.msra.mxu0 0.0
    %455 = vmatprep.subr.mxu0 0.0
    %456 = vmatpush1.msra.mxu0 0.0
    %457 = vmatprep.subr.mxu0 0.0
    %458 = vmatpush1.msra.mxu0 0.0
    %459 = vmatprep.subr.mxu0 0.0
    %460 = vmatpush1.msra.mxu0 0.0
    %461 = vmatprep.subr.mxu0 0.0
    %462 = vmatpush1.msra.mxu0 0.0
    %463 = vmatprep.subr.mxu0 0.0
    %464 = vmatpush1.msra.mxu0 0.0
    %465 = vmatprep.subr.mxu0 0.0
    %466 = vmatpush1.msra.mxu0 0.0
    %467 = vmatprep.subr.mxu0 0.0
    %468 = vmatpush1.msra.mxu0 0.0
    %469 = vmatprep.subr.mxu0 0.0
    %470 = vmatpush1.msra.mxu0 0.0
    %471 = vmatprep.subr.mxu0 0.0
    %472 = vmatpush1.msra.mxu0 0.0
    %473 = vmatprep.mubr.f32.mxu0 0.0
    %474 = vmatmul.mubr.f32.gmra.mrb[0].mxu0 %v249
    %v475 = vpop.f32.mrb[0].mxu0
    %v476 = vadd.f32 %v406, %v475
    %v477 = vpop.f32.mrb[0].mxu0
    %478 = vdwg.mxu0
    %v481 = vunpack.c.l.s4 1983009808
    %v482 = vunpack.c.0.s8 %v481
    %v483 = vlaneseq
    %v484 = vshrl.u32 %v483, 7
    %v485 = vsub.s32 %v482, %v484
    %v486 = vrot.slane %v476, %v485
    %487 = vrot.lane.b32.xlu0 %v486, 64
    %v488 = vpop.permute.xlu0 %487
    %vm490 = vcmask 779776
    %491 = vst.msk [vmem:[#allocation10] sm:$0x3] %vm490, %v488
    %v492 = vld [vmem:[#allocation8] sm:$0xff]
    %v493 = vld [vmem:[#allocation8 + $0x8] sm:$0xff]
    %v494 = vld [vmem:[%s167] sm:$0xff]
    %v495 = vld [vmem:[%s167 + $0x8] sm:$0xff]
    %496 = vmatprep.subr.mxu0 0.0
    %497 = vmatpush1.msra.mxu0 %v494
    %498 = vmatprep.subr.mxu0 0.0
    %499 = vmatpush1.msra.mxu0 %v495
    %500 = vmatprep.subr.mxu0 0.0
    %501 = vmatpush1.msra.mxu0 0.0
    %502 = vmatprep.subr.mxu0 0.0
    %503 = vmatpush1.msra.mxu0 0.0
    %504 = vmatprep.subr.mxu0 0.0
    %505 = vmatpush1.msra.mxu0 0.0
    %506 = vmatprep.subr.mxu0 0.0
    %507 = vmatpush1.msra.mxu0 0.0
    %508 = vmatprep.subr.mxu0 0.0
    %509 = vmatpush1.msra.mxu0 0.0
    %510 = vmatprep.subr.mxu0 0.0
    %511 = vmatpush1.msra.mxu0 0.0
    %512 = vmatprep.subr.mxu0 0.0
    %513 = vmatpush1.msra.mxu0 0.0
    %514 = vmatprep.subr.mxu0 0.0
    %515 = vmatpush1.msra.mxu0 0.0
    %516 = vmatprep.subr.mxu0 0.0
    %517 = vmatpush1.msra.mxu0 0.0
    %518 = vmatprep.subr.mxu0 0.0
    %519 = vmatpush1.msra.mxu0 0.0
    %520 = vmatprep.subr.mxu0 0.0
    %521 = vmatpush1.msra.mxu0 0.0
    %522 = vmatprep.subr.mxu0 0.0
    %523 = vmatpush1.msra.mxu0 0.0
    %524 = vmatprep.subr.mxu0 0.0
    %525 = vmatpush1.msra.mxu0 0.0
    %526 = vmatprep.subr.mxu0 0.0
    %527 = vmatpush1.msra.mxu0 0.0
    %528 = vmatprep.subr.mxu0 0.0
    %529 = vmatpush1.msra.mxu0 0.0
    %530 = vmatprep.subr.mxu0 0.0
    %531 = vmatpush1.msra.mxu0 0.0
    %532 = vmatprep.subr.mxu0 0.0
    %533 = vmatpush1.msra.mxu0 0.0
    %534 = vmatprep.subr.mxu0 0.0
    %535 = vmatpush1.msra.mxu0 0.0
    %536 = vmatprep.subr.mxu0 0.0
    %537 = vmatpush1.msra.mxu0 0.0
    %538 = vmatprep.subr.mxu0 0.0
    %539 = vmatpush1.msra.mxu0 0.0
    %540 = vmatprep.subr.mxu0 0.0
    %541 = vmatpush1.msra.mxu0 0.0
    %542 = vmatprep.subr.mxu0 0.0
    %543 = vmatpush1.msra.mxu0 0.0
    %544 = vmatprep.subr.mxu0 0.0
    %545 = vmatpush1.msra.mxu0 0.0
    %546 = vmatprep.subr.mxu0 0.0
    %547 = vmatpush1.msra.mxu0 0.0
    %548 = vmatprep.subr.mxu0 0.0
    %549 = vmatpush1.msra.mxu0 0.0
    %550 = vmatprep.subr.mxu0 0.0
    %551 = vmatpush1.msra.mxu0 0.0
    %552 = vmatprep.subr.mxu0 0.0
    %553 = vmatpush1.msra.mxu0 0.0
    %554 = vmatprep.subr.mxu0 0.0
    %555 = vmatpush1.msra.mxu0 0.0
    %556 = vmatprep.subr.mxu0 0.0
    %557 = vmatpush1.msra.mxu0 0.0
    %558 = vmatprep.subr.mxu0 0.0
    %559 = vmatpush1.msra.mxu0 0.0
    %560 = vmatprep.mubr.f32.mxu0 0.0
    %561 = vmatmul.mubr.f32.gmra.mrb[0].mxu0 %v249
    %v562 = vpop.f32.mrb[0].mxu0
    %v563 = vadd.f32 0.0, %v562
    %v564 = vpop.f32.mrb[0].mxu0
    %565 = vdwg.mxu0
    %566 = vrot.lane.b32.xlu0 %v246, 96
    %v567 = vpop.permute.xlu0 %566
    %v568 = vsel %vm89, %v567, 0
    %570 = vmatprep.subr.mxu0 0.0
    %571 = vmatpush1.msra.mxu0 %v492
    %572 = vmatprep.subr.mxu0 0.0
    %573 = vmatpush1.msra.mxu0 %v493
    %574 = vmatprep.subr.mxu0 0.0
    %575 = vmatpush1.msra.mxu0 0.0
    %576 = vmatprep.subr.mxu0 0.0
    %577 = vmatpush1.msra.mxu0 0.0
    %578 = vmatprep.subr.mxu0 0.0
    %579 = vmatpush1.msra.mxu0 0.0
    %580 = vmatprep.subr.mxu0 0.0
    %581 = vmatpush1.msra.mxu0 0.0
    %582 = vmatprep.subr.mxu0 0.0
    %583 = vmatpush1.msra.mxu0 0.0
    %584 = vmatprep.subr.mxu0 0.0
    %585 = vmatpush1.msra.mxu0 0.0
    %586 = vmatprep.subr.mxu0 0.0
    %587 = vmatpush1.msra.mxu0 0.0
    %588 = vmatprep.subr.mxu0 0.0
    %589 = vmatpush1.msra.mxu0 0.0
    %590 = vmatprep.subr.mxu0 0.0
    %591 = vmatpush1.msra.mxu0 0.0
    %592 = vmatprep.subr.mxu0 0.0
    %593 = vmatpush1.msra.mxu0 0.0
    %594 = vmatprep.subr.mxu0 0.0
    %595 = vmatpush1.msra.mxu0 0.0
    %596 = vmatprep.subr.mxu0 0.0
    %597 = vmatpush1.msra.mxu0 0.0
    %598 = vmatprep.subr.mxu0 0.0
    %599 = vmatpush1.msra.mxu0 0.0
    %600 = vmatprep.subr.mxu0 0.0
    %601 = vmatpush1.msra.mxu0 0.0
    %602 = vmatprep.subr.mxu0 0.0
    %603 = vmatpush1.msra.mxu0 0.0
    %604 = vmatprep.subr.mxu0 0.0
    %605 = vmatpush1.msra.mxu0 0.0
    %606 = vmatprep.subr.mxu0 0.0
    %607 = vmatpush1.msra.mxu0 0.0
    %608 = vmatprep.subr.mxu0 0.0
    %609 = vmatpush1.msra.mxu0 0.0
    %610 = vmatprep.subr.mxu0 0.0
    %611 = vmatpush1.msra.mxu0 0.0
    %612 = vmatprep.subr.mxu0 0.0
    %613 = vmatpush1.msra.mxu0 0.0
    %614 = vmatprep.subr.mxu0 0.0
    %615 = vmatpush1.msra.mxu0 0.0
    %616 = vmatprep.subr.mxu0 0.0
    %617 = vmatpush1.msra.mxu0 0.0
    %618 = vmatprep.subr.mxu0 0.0
    %619 = vmatpush1.msra.mxu0 0.0
    %620 = vmatprep.subr.mxu0 0.0
    %621 = vmatpush1.msra.mxu0 0.0
    %622 = vmatprep.subr.mxu0 0.0
    %623 = vmatpush1.msra.mxu0 0.0
    %624 = vmatprep.subr.mxu0 0.0
    %625 = vmatpush1.msra.mxu0 0.0
    %626 = vmatprep.subr.mxu0 0.0
    %627 = vmatpush1.msra.mxu0 0.0
    %628 = vmatprep.subr.mxu0 0.0
    %629 = vmatpush1.msra.mxu0 0.0
    %630 = vmatprep.subr.mxu0 0.0
    %631 = vmatpush1.msra.mxu0 0.0
    %632 = vmatprep.subr.mxu0 0.0
    %633 = vmatpush1.msra.mxu0 0.0
    %634 = vmatprep.mubr.f32.mxu0 0.0
    %635 = vmatmul.mubr.f32.gmra.mrb[0].mxu0 %v568
    %v636 = vpop.f32.mrb[0].mxu0
    %v637 = vadd.f32 %v563, %v636
    %v638 = vpop.f32.mrb[0].mxu0
    %639 = vdwg.mxu0
    %v642 = vunpack.c.l.s4 1983009808
    %v643 = vunpack.c.0.s8 %v642
    %v644 = vlaneseq
    %v645 = vshrl.u32 %v644, 7
    %v646 = vsub.s32 %v643, %v645
    %v647 = vrot.slane %v637, %v646
    %648 = vrot.lane.b32.xlu0 %v647, 96
    %v649 = vpop.permute.xlu0 %648
    %vm651 = vcmask 1042176
    %652 = vst.msk [vmem:[#allocation10] sm:$0x3] %vm651, %v649
    %v653 = vld [vmem:[%s86] sm:$0xff]
    %v654 = vld [vmem:[%s86 + $0x8] sm:$0xff]
    %v655 = vld [vmem:[%s336] sm:$0xff]
    %v656 = vld [vmem:[%s336 + $0x8] sm:$0xff]
    %657 = vmatprep.subr.mxu0 0.0
    %658 = vmatpush1.msra.mxu0 %v655
    %659 = vmatprep.subr.mxu0 0.0
    %660 = vmatpush1.msra.mxu0 %v656
    %661 = vmatprep.subr.mxu0 0.0
    %662 = vmatpush1.msra.mxu0 0.0
    %663 = vmatprep.subr.mxu0 0.0
    %664 = vmatpush1.msra.mxu0 0.0
    %665 = vmatprep.subr.mxu0 0.0
    %666 = vmatpush1.msra.mxu0 0.0
    %667 = vmatprep.subr.mxu0 0.0
    %668 = vmatpush1.msra.mxu0 0.0
    %669 = vmatprep.subr.mxu0 0.0
    %670 = vmatpush1.msra.mxu0 0.0
    %671 = vmatprep.subr.mxu0 0.0
    %672 = vmatpush1.msra.mxu0 0.0
    %673 = vmatprep.subr.mxu0 0.0
    %674 = vmatpush1.msra.mxu0 0.0
    %675 = vmatprep.subr.mxu0 0.0
    %676 = vmatpush1.msra.mxu0 0.0
    %677 = vmatprep.subr.mxu0 0.0
    %678 = vmatpush1.msra.mxu0 0.0
    %679 = vmatprep.subr.mxu0 0.0
    %680 = vmatpush1.msra.mxu0 0.0
    %681 = vmatprep.subr.mxu0 0.0
    %682 = vmatpush1.msra.mxu0 0.0
    %683 = vmatprep.subr.mxu0 0.0
    %684 = vmatpush1.msra.mxu0 0.0
    %685 = vmatprep.subr.mxu0 0.0
    %686 = vmatpush1.msra.mxu0 0.0
    %687 = vmatprep.subr.mxu0 0.0
    %688 = vmatpush1.msra.mxu0 0.0
    %689 = vmatprep.subr.mxu0 0.0
    %690 = vmatpush1.msra.mxu0 0.0
    %691 = vmatprep.subr.mxu0 0.0
    %692 = vmatpush1.msra.mxu0 0.0
    %693 = vmatprep.subr.mxu0 0.0
    %694 = vmatpush1.msra.mxu0 0.0
    %695 = vmatprep.subr.mxu0 0.0
    %696 = vmatpush1.msra.mxu0 0.0
    %697 = vmatprep.subr.mxu0 0.0
    %698 = vmatpush1.msra.mxu0 0.0
    %699 = vmatprep.subr.mxu0 0.0
    %700 = vmatpush1.msra.mxu0 0.0
    %701 = vmatprep.subr.mxu0 0.0
    %702 = vmatpush1.msra.mxu0 0.0
    %703 = vmatprep.subr.mxu0 0.0
    %704 = vmatpush1.msra.mxu0 0.0
    %705 = vmatprep.subr.mxu0 0.0
    %706 = vmatpush1.msra.mxu0 0.0
    %707 = vmatprep.subr.mxu0 0.0
    %708 = vmatpush1.msra.mxu0 0.0
    %709 = vmatprep.subr.mxu0 0.0
    %710 = vmatpush1.msra.mxu0 0.0
    %711 = vmatprep.subr.mxu0 0.0
    %712 = vmatpush1.msra.mxu0 0.0
    %713 = vmatprep.subr.mxu0 0.0
    %714 = vmatpush1.msra.mxu0 0.0
    %715 = vmatprep.subr.mxu0 0.0
    %716 = vmatpush1.msra.mxu0 0.0
    %717 = vmatprep.subr.mxu0 0.0
    %718 = vmatpush1.msra.mxu0 0.0
    %719 = vmatprep.subr.mxu0 0.0
    %720 = vmatpush1.msra.mxu0 0.0
    %721 = vmatprep.mubr.f32.mxu0 0.0
    %722 = vmatmul.mubr.f32.gmra.mrb[0].mxu0 %v249
    %v723 = vpop.f32.mrb[0].mxu0
    %v724 = vadd.f32 0.0, %v723
    %v725 = vpop.f32.mrb[0].mxu0
    %726 = vdwg.mxu0
    %727 = vmatprep.subr.mxu0 0.0
    %728 = vmatpush1.msra.mxu0 %v653
    %729 = vmatprep.subr.mxu0 0.0
    %730 = vmatpush1.msra.mxu0 %v654
    %731 = vmatprep.subr.mxu0 0.0
    %732 = vmatpush1.msra.mxu0 0.0
    %733 = vmatprep.subr.mxu0 0.0
    %734 = vmatpush1.msra.mxu0 0.0
    %735 = vmatprep.subr.mxu0 0.0
    %736 = vmatpush1.msra.mxu0 0.0
    %737 = vmatprep.subr.mxu0 0.0
    %738 = vmatpush1.msra.mxu0 0.0
    %739 = vmatprep.subr.mxu0 0.0
    %740 = vmatpush1.msra.mxu0 0.0
    %741 = vmatprep.subr.mxu0 0.0
    %742 = vmatpush1.msra.mxu0 0.0
    %743 = vmatprep.subr.mxu0 0.0
    %744 = vmatpush1.msra.mxu0 0.0
    %745 = vmatprep.subr.mxu0 0.0
    %746 = vmatpush1.msra.mxu0 0.0
    %747 = vmatprep.subr.mxu0 0.0
    %748 = vmatpush1.msra.mxu0 0.0
    %749 = vmatprep.subr.mxu0 0.0
    %750 = vmatpush1.msra.mxu0 0.0
    %751 = vmatprep.subr.mxu0 0.0
    %752 = vmatpush1.msra.mxu0 0.0
    %753 = vmatprep.subr.mxu0 0.0
    %754 = vmatpush1.msra.mxu0 0.0
    %755 = vmatprep.subr.mxu0 0.0
    %756 = vmatpush1.msra.mxu0 0.0
    %757 = vmatprep.subr.mxu0 0.0
    %758 = vmatpush1.msra.mxu0 0.0
    %759 = vmatprep.subr.mxu0 0.0
    %760 = vmatpush1.msra.mxu0 0.0
    %761 = vmatprep.subr.mxu0 0.0
    %762 = vmatpush1.msra.mxu0 0.0
    %763 = vmatprep.subr.mxu0 0.0
    %764 = vmatpush1.msra.mxu0 0.0
    %765 = vmatprep.subr.mxu0 0.0
    %766 = vmatpush1.msra.mxu0 0.0
    %767 = vmatprep.subr.mxu0 0.0
    %768 = vmatpush1.msra.mxu0 0.0
    %769 = vmatprep.subr.mxu0 0.0
    %770 = vmatpush1.msra.mxu0 0.0
    %771 = vmatprep.subr.mxu0 0.0
    %772 = vmatpush1.msra.mxu0 0.0
    %773 = vmatprep.subr.mxu0 0.0
    %774 = vmatpush1.msra.mxu0 0.0
    %775 = vmatprep.subr.mxu0 0.0
    %776 = vmatpush1.msra.mxu0 0.0
    %777 = vmatprep.subr.mxu0 0.0
    %778 = vmatpush1.msra.mxu0 0.0
    %779 = vmatprep.subr.mxu0 0.0
    %780 = vmatpush1.msra.mxu0 0.0
    %781 = vmatprep.subr.mxu0 0.0
    %782 = vmatpush1.msra.mxu0 0.0
    %783 = vmatprep.subr.mxu0 0.0
    %784 = vmatpush1.msra.mxu0 0.0
    %785 = vmatprep.subr.mxu0 0.0
    %786 = vmatpush1.msra.mxu0 0.0
    %787 = vmatprep.subr.mxu0 0.0
    %788 = vmatpush1.msra.mxu0 0.0
    %789 = vmatprep.subr.mxu0 0.0
    %790 = vmatpush1.msra.mxu0 0.0
    %791 = vmatprep.mubr.f32.mxu0 0.0
    %792 = vmatmul.mubr.f32.gmra.mrb[0].mxu0 %v568
    %v793 = vpop.f32.mrb[0].mxu0
    %v794 = vadd.f32 %v724, %v793
    %v795 = vpop.f32.mrb[0].mxu0
    %796 = vdwg.mxu0
    %797 = vst.msk [vmem:[#allocation10 + $0x2] sm:$0x3] %vm163, %v794
    %v798 = vld [vmem:[#allocation8] sm:$0xff]
    %v799 = vld [vmem:[#allocation8 + $0x8] sm:$0xff]
    %v800 = vld [vmem:[%s167] sm:$0xff]
    %v801 = vld [vmem:[%s167 + $0x8] sm:$0xff]
    %802 = vmatprep.subr.mxu0 0.0
    %803 = vmatpush1.msra.mxu0 %v800
    %804 = vmatprep.subr.mxu0 0.0
    %805 = vmatpush1.msra.mxu0 %v801
    %806 = vmatprep.subr.mxu0 0.0
    %807 = vmatpush1.msra.mxu0 0.0
    %808 = vmatprep.subr.mxu0 0.0
    %809 = vmatpush1.msra.mxu0 0.0
    %810 = vmatprep.subr.mxu0 0.0
    %811 = vmatpush1.msra.mxu0 0.0
    %812 = vmatprep.subr.mxu0 0.0
    %813 = vmatpush1.msra.mxu0 0.0
    %814 = vmatprep.subr.mxu0 0.0
    %815 = vmatpush1.msra.mxu0 0.0
    %816 = vmatprep.subr.mxu0 0.0
    %817 = vmatpush1.msra.mxu0 0.0
    %818 = vmatprep.subr.mxu0 0.0
    %819 = vmatpush1.msra.mxu0 0.0
    %820 = vmatprep.subr.mxu0 0.0
    %821 = vmatpush1.msra.mxu0 0.0
    %822 = vmatprep.subr.mxu0 0.0
    %823 = vmatpush1.msra.mxu0 0.0
    %824 = vmatprep.subr.mxu0 0.0
    %825 = vmatpush1.msra.mxu0 0.0
    %826 = vmatprep.subr.mxu0 0.0
    %827 = vmatpush1.msra.mxu0 0.0
    %828 = vmatprep.subr.mxu0 0.0
    %829 = vmatpush1.msra.mxu0 0.0
    %830 = vmatprep.subr.mxu0 0.0
    %831 = vmatpush1.msra.mxu0 0.0
    %832 = vmatprep.subr.mxu0 0.0
    %833 = vmatpush1.msra.mxu0 0.0
    %834 = vmatprep.subr.mxu0 0.0
    %835 = vmatpush1.msra.mxu0 0.0
    %836 = vmatprep.subr.mxu0 0.0
    %837 = vmatpush1.msra.mxu0 0.0
    %838 = vmatprep.subr.mxu0 0.0
    %839 = vmatpush1.msra.mxu0 0.0
    %840 = vmatprep.subr.mxu0 0.0
    %841 = vmatpush1.msra.mxu0 0.0
    %842 = vmatprep.subr.mxu0 0.0
    %843 = vmatpush1.msra.mxu0 0.0
    %844 = vmatprep.subr.mxu0 0.0
    %845 = vmatpush1.msra.mxu0 0.0
    %846 = vmatprep.subr.mxu0 0.0
    %847 = vmatpush1.msra.mxu0 0.0
    %848 = vmatprep.subr.mxu0 0.0
    %849 = vmatpush1.msra.mxu0 0.0
    %850 = vmatprep.subr.mxu0 0.0
    %851 = vmatpush1.msra.mxu0 0.0
    %852 = vmatprep.subr.mxu0 0.0
    %853 = vmatpush1.msra.mxu0 0.0
    %854 = vmatprep.subr.mxu0 0.0
    %855 = vmatpush1.msra.mxu0 0.0
    %856 = vmatprep.subr.mxu0 0.0
    %857 = vmatpush1.msra.mxu0 0.0
    %858 = vmatprep.subr.mxu0 0.0
    %859 = vmatpush1.msra.mxu0 0.0
    %860 = vmatprep.subr.mxu0 0.0
    %861 = vmatpush1.msra.mxu0 0.0
    %862 = vmatprep.subr.mxu0 0.0
    %863 = vmatpush1.msra.mxu0 0.0
    %864 = vmatprep.subr.mxu0 0.0
    %865 = vmatpush1.msra.mxu0 0.0
    %866 = vmatprep.mubr.f32.mxu0 0.0
    %867 = vmatmul.mubr.f32.gmra.mrb[0].mxu0 %v568
    %v868 = vpop.f32.mrb[0].mxu0
    %v869 = vadd.f32 0.0, %v868
    %v870 = vpop.f32.mrb[0].mxu0
    %871 = vdwg.mxu0
    %872 = vrot.lane.b32.xlu0 %v246, 80
    %v873 = vpop.permute.xlu0 %872
    %v874 = vsel %vm89, %v873, 0
    %876 = vmatprep.subr.mxu0 0.0
    %877 = vmatpush1.msra.mxu0 %v798
    %878 = vmatprep.subr.mxu0 0.0
    %879 = vmatpush1.msra.mxu0 %v799
    %880 = vmatprep.subr.mxu0 0.0
    %881 = vmatpush1.msra.mxu0 0.0
    %882 = vmatprep.subr.mxu0 0.0
    %883 = vmatpush1.msra.mxu0 0.0
    %884 = vmatprep.subr.mxu0 0.0
    %885 = vmatpush1.msra.mxu0 0.0
    %886 = vmatprep.subr.mxu0 0.0
    %887 = vmatpush1.msra.mxu0 0.0
    %888 = vmatprep.subr.mxu0 0.0
    %889 = vmatpush1.msra.mxu0 0.0
    %890 = vmatprep.subr.mxu0 0.0
    %891 = vmatpush1.msra.mxu0 0.0
    %892 = vmatprep.subr.mxu0 0.0
    %893 = vmatpush1.msra.mxu0 0.0
    %894 = vmatprep.subr.mxu0 0.0
    %895 = vmatpush1.msra.mxu0 0.0
    %896 = vmatprep.subr.mxu0 0.0
    %897 = vmatpush1.msra.mxu0 0.0
    %898 = vmatprep.subr.mxu0 0.0
    %899 = vmatpush1.msra.mxu0 0.0
    %900 = vmatprep.subr.mxu0 0.0
    %901 = vmatpush1.msra.mxu0 0.0
    %902 = vmatprep.subr.mxu0 0.0
    %903 = vmatpush1.msra.mxu0 0.0
    %904 = vmatprep.subr.mxu0 0.0
    %905 = vmatpush1.msra.mxu0 0.0
    %906 = vmatprep.subr.mxu0 0.0
    %907 = vmatpush1.msra.mxu0 0.0
    %908 = vmatprep.subr.mxu0 0.0
    %909 = vmatpush1.msra.mxu0 0.0
    %910 = vmatprep.subr.mxu0 0.0
    %911 = vmatpush1.msra.mxu0 0.0
    %912 = vmatprep.subr.mxu0 0.0
    %913 = vmatpush1.msra.mxu0 0.0
    %914 = vmatprep.subr.mxu0 0.0
    %915 = vmatpush1.msra.mxu0 0.0
    %916 = vmatprep.subr.mxu0 0.0
    %917 = vmatpush1.msra.mxu0 0.0
    %918 = vmatprep.subr.mxu0 0.0
    %919 = vmatpush1.msra.mxu0 0.0
    %920 = vmatprep.subr.mxu0 0.0
    %921 = vmatpush1.msra.mxu0 0.0
    %922 = vmatprep.subr.mxu0 0.0
    %923 = vmatpush1.msra.mxu0 0.0
    %924 = vmatprep.subr.mxu0 0.0
    %925 = vmatpush1.msra.mxu0 0.0
    %926 = vmatprep.subr.mxu0 0.0
    %927 = vmatpush1.msra.mxu0 0.0
    %928 = vmatprep.subr.mxu0 0.0
    %929 = vmatpush1.msra.mxu0 0.0
    %930 = vmatprep.subr.mxu0 0.0
    %931 = vmatpush1.msra.mxu0 0.0
    %932 = vmatprep.subr.mxu0 0.0
    %933 = vmatpush1.msra.mxu0 0.0
    %934 = vmatprep.subr.mxu0 0.0
    %935 = vmatpush1.msra.mxu0 0.0
    %936 = vmatprep.subr.mxu0 0.0
    %937 = vmatpush1.msra.mxu0 0.0
    %938 = vmatprep.subr.mxu0 0.0
    %939 = vmatpush1.msra.mxu0 0.0
    %940 = vmatprep.mubr.f32.mxu0 0.0
    %941 = vmatmul.mubr.f32.gmra.mrb[0].mxu0 %v874
    %v942 = vpop.f32.mrb[0].mxu0
    %v943 = vadd.f32 %v869, %v942
    %v944 = vpop.f32.mrb[0].mxu0
    %945 = vdwg.mxu0
    %v948 = vunpack.c.l.s4 1983009808
    %v949 = vunpack.c.0.s8 %v948
    %v950 = vlaneseq
    %v951 = vshrl.u32 %v950, 7
    %v952 = vsub.s32 %v949, %v951
    %v953 = vrot.slane %v943, %v952
    %954 = vrot.lane.b32.xlu0 %v953, 32
    %v955 = vpop.permute.xlu0 %954
    %957 = vst.msk [vmem:[#allocation10 + $0x2] sm:$0x3] %vm332, %v955
    %v958 = vld [vmem:[%s86] sm:$0xff]
    %v959 = vld [vmem:[%s86 + $0x8] sm:$0xff]
    %v960 = vld [vmem:[%s336] sm:$0xff]
    %v961 = vld [vmem:[%s336 + $0x8] sm:$0xff]
    %962 = vmatprep.subr.mxu0 0.0
    %963 = vmatpush1.msra.mxu0 %v960
    %964 = vmatprep.subr.mxu0 0.0
    %965 = vmatpush1.msra.mxu0 %v961
    %966 = vmatprep.subr.mxu0 0.0
    %967 = vmatpush1.msra.mxu0 0.0
    %968 = vmatprep.subr.mxu0 0.0
    %969 = vmatpush1.msra.mxu0 0.0
    %970 = vmatprep.subr.mxu0 0.0
    %971 = vmatpush1.msra.mxu0 0.0
    %972 = vmatprep.subr.mxu0 0.0
    %973 = vmatpush1.msra.mxu0 0.0
    %974 = vmatprep.subr.mxu0 0.0
    %975 = vmatpush1.msra.mxu0 0.0
    %976 = vmatprep.subr.mxu0 0.0
    %977 = vmatpush1.msra.mxu0 0.0
    %978 = vmatprep.subr.mxu0 0.0
    %979 = vmatpush1.msra.mxu0 0.0
    %980 = vmatprep.subr.mxu0 0.0
    %981 = vmatpush1.msra.mxu0 0.0
    %982 = vmatprep.subr.mxu0 0.0
    %983 = vmatpush1.msra.mxu0 0.0
    %984 = vmatprep.subr.mxu0 0.0
    %985 = vmatpush1.msra.mxu0 0.0
    %986 = vmatprep.subr.mxu0 0.0
    %987 = vmatpush1.msra.mxu0 0.0
    %988 = vmatprep.subr.mxu0 0.0
    %989 = vmatpush1.msra.mxu0 0.0
    %990 = vmatprep.subr.mxu0 0.0
    %991 = vmatpush1.msra.mxu0 0.0
    %992 = vmatprep.subr.mxu0 0.0
    %993 = vmatpush1.msra.mxu0 0.0
    %994 = vmatprep.subr.mxu0 0.0
    %995 = vmatpush1.msra.mxu0 0.0
    %996 = vmatprep.subr.mxu0 0.0
    %997 = vmatpush1.msra.mxu0 0.0
    %998 = vmatprep.subr.mxu0 0.0
    %999 = vmatpush1.msra.mxu0 0.0
    %1000 = vmatprep.subr.mxu0 0.0
    %1001 = vmatpush1.msra.mxu0 0.0
    %1002 = vmatprep.subr.mxu0 0.0
    %1003 = vmatpush1.msra.mxu0 0.0
    %1004 = vmatprep.subr.mxu0 0.0
    %1005 = vmatpush1.msra.mxu0 0.0
    %1006 = vmatprep.subr.mxu0 0.0
    %1007 = vmatpush1.msra.mxu0 0.0
    %1008 = vmatprep.subr.mxu0 0.0
    %1009 = vmatpush1.msra.mxu0 0.0
    %1010 = vmatprep.subr.mxu0 0.0
    %1011 = vmatpush1.msra.mxu0 0.0
    %1012 = vmatprep.subr.mxu0 0.0
    %1013 = vmatpush1.msra.mxu0 0.0
    %1014 = vmatprep.subr.mxu0 0.0
    %1015 = vmatpush1.msra.mxu0 0.0
    %1016 = vmatprep.subr.mxu0 0.0
    %1017 = vmatpush1.msra.mxu0 0.0
    %1018 = vmatprep.subr.mxu0 0.0
    %1019 = vmatpush1.msra.mxu0 0.0
    %1020 = vmatprep.subr.mxu0 0.0
    %1021 = vmatpush1.msra.mxu0 0.0
    %1022 = vmatprep.subr.mxu0 0.0
    %1023 = vmatpush1.msra.mxu0 0.0
    %1024 = vmatprep.subr.mxu0 0.0
    %1025 = vmatpush1.msra.mxu0 0.0
    %1026 = vmatprep.mubr.f32.mxu0 0.0
    %1027 = vmatmul.mubr.f32.gmra.mrb[0].mxu0 %v568
    %v1028 = vpop.f32.mrb[0].mxu0
    %v1029 = vadd.f32 0.0, %v1028
    %v1030 = vpop.f32.mrb[0].mxu0
    %1031 = vdwg.mxu0
    %1032 = vmatprep.subr.mxu0 0.0
    %1033 = vmatpush1.msra.mxu0 %v958
    %1034 = vmatprep.subr.mxu0 0.0
    %1035 = vmatpush1.msra.mxu0 %v959
    %1036 = vmatprep.subr.mxu0 0.0
    %1037 = vmatpush1.msra.mxu0 0.0
    %1038 = vmatprep.subr.mxu0 0.0
    %1039 = vmatpush1.msra.mxu0 0.0
    %1040 = vmatprep.subr.mxu0 0.0
    %1041 = vmatpush1.msra.mxu0 0.0
    %1042 = vmatprep.subr.mxu0 0.0
    %1043 = vmatpush1.msra.mxu0 0.0
    %1044 = vmatprep.subr.mxu0 0.0
    %1045 = vmatpush1.msra.mxu0 0.0
    %1046 = vmatprep.subr.mxu0 0.0
    %1047 = vmatpush1.msra.mxu0 0.0
    %1048 = vmatprep.subr.mxu0 0.0
    %1049 = vmatpush1.msra.mxu0 0.0
    %1050 = vmatprep.subr.mxu0 0.0
    %1051 = vmatpush1.msra.mxu0 0.0
    %1052 = vmatprep.subr.mxu0 0.0
    %1053 = vmatpush1.msra.mxu0 0.0
    %1054 = vmatprep.subr.mxu0 0.0
    %1055 = vmatpush1.msra.mxu0 0.0
    %1056 = vmatprep.subr.mxu0 0.0
    %1057 = vmatpush1.msra.mxu0 0.0
    %1058 = vmatprep.subr.mxu0 0.0
    %1059 = vmatpush1.msra.mxu0 0.0
    %1060 = vmatprep.subr.mxu0 0.0
    %1061 = vmatpush1.msra.mxu0 0.0
    %1062 = vmatprep.subr.mxu0 0.0
    %1063 = vmatpush1.msra.mxu0 0.0
    %1064 = vmatprep.subr.mxu0 0.0
    %1065 = vmatpush1.msra.mxu0 0.0
    %1066 = vmatprep.subr.mxu0 0.0
    %1067 = vmatpush1.msra.mxu0 0.0
    %1068 = vmatprep.subr.mxu0 0.0
    %1069 = vmatpush1.msra.mxu0 0.0
    %1070 = vmatprep.subr.mxu0 0.0
    %1071 = vmatpush1.msra.mxu0 0.0
    %1072 = vmatprep.subr.mxu0 0.0
    %1073 = vmatpush1.msra.mxu0 0.0
    %1074 = vmatprep.subr.mxu0 0.0
    %1075 = vmatpush1.msra.mxu0 0.0
    %1076 = vmatprep.subr.mxu0 0.0
    %1077 = vmatpush1.msra.mxu0 0.0
    %1078 = vmatprep.subr.mxu0 0.0
    %1079 = vmatpush1.msra.mxu0 0.0
    %1080 = vmatprep.subr.mxu0 0.0
    %1081 = vmatpush1.msra.mxu0 0.0
    %1082 = vmatprep.subr.mxu0 0.0
    %1083 = vmatpush1.msra.mxu0 0.0
    %1084 = vmatprep.subr.mxu0 0.0
    %1085 = vmatpush1.msra.mxu0 0.0
    %1086 = vmatprep.subr.mxu0 0.0
    %1087 = vmatpush1.msra.mxu0 0.0
    %1088 = vmatprep.subr.mxu0 0.0
    %1089 = vmatpush1.msra.mxu0 0.0
    %1090 = vmatprep.subr.mxu0 0.0
    %1091 = vmatpush1.msra.mxu0 0.0
    %1092 = vmatprep.subr.mxu0 0.0
    %1093 = vmatpush1.msra.mxu0 0.0
    %1094 = vmatprep.subr.mxu0 0.0
    %1095 = vmatpush1.msra.mxu0 0.0
    %1096 = vmatprep.mubr.f32.mxu0 0.0
    %1097 = vmatmul.mubr.f32.gmra.mrb[0].mxu0 %v874
    %v1098 = vpop.f32.mrb[0].mxu0
    %v1099 = vadd.f32 %v1029, %v1098
    %v1100 = vpop.f32.mrb[0].mxu0
    %1101 = vdwg.mxu0
    %v1104 = vunpack.c.l.s4 1983009808
    %v1105 = vunpack.c.0.s8 %v1104
    %v1106 = vlaneseq
    %v1107 = vshrl.u32 %v1106, 7
    %v1108 = vsub.s32 %v1105, %v1107
    %v1109 = vrot.slane %v1099, %v1108
    %1110 = vrot.lane.b32.xlu0 %v1109, 64
    %v1111 = vpop.permute.xlu0 %1110
    %1113 = vst.msk [vmem:[#allocation10 + $0x2] sm:$0x3] %vm490, %v1111
    %v1114 = vld [vmem:[#allocation8] sm:$0xff]
    %v1115 = vld [vmem:[#allocation8 + $0x8] sm:$0xff]
    %v1116 = vld [vmem:[%s167] sm:$0xff]
    %v1117 = vld [vmem:[%s167 + $0x8] sm:$0xff]
    %1118 = vmatprep.subr.mxu0 0.0
    %1119 = vmatpush1.msra.mxu0 %v1116
    %1120 = vmatprep.subr.mxu0 0.0
    %1121 = vmatpush1.msra.mxu0 %v1117
    %1122 = vmatprep.subr.mxu0 0.0
    %1123 = vmatpush1.msra.mxu0 0.0
    %1124 = vmatprep.subr.mxu0 0.0
    %1125 = vmatpush1.msra.mxu0 0.0
    %1126 = vmatprep.subr.mxu0 0.0
    %1127 = vmatpush1.msra.mxu0 0.0
    %1128 = vmatprep.subr.mxu0 0.0
    %1129 = vmatpush1.msra.mxu0 0.0
    %1130 = vmatprep.subr.mxu0 0.0
    %1131 = vmatpush1.msra.mxu0 0.0
    %1132 = vmatprep.subr.mxu0 0.0
    %1133 = vmatpush1.msra.mxu0 0.0
    %1134 = vmatprep.subr.mxu0 0.0
    %1135 = vmatpush1.msra.mxu0 0.0
    %1136 = vmatprep.subr.mxu0 0.0
    %1137 = vmatpush1.msra.mxu0 0.0
    %1138 = vmatprep.subr.mxu0 0.0
    %1139 = vmatpush1.msra.mxu0 0.0
    %1140 = vmatprep.subr.mxu0 0.0
    %1141 = vmatpush1.msra.mxu0 0.0
    %1142 = vmatprep.subr.mxu0 0.0
    %1143 = vmatpush1.msra.mxu0 0.0
    %1144 = vmatprep.subr.mxu0 0.0
    %1145 = vmatpush1.msra.mxu0 0.0
    %1146 = vmatprep.subr.mxu0 0.0
    %1147 = vmatpush1.msra.mxu0 0.0
    %1148 = vmatprep.subr.mxu0 0.0
    %1149 = vmatpush1.msra.mxu0 0.0
    %1150 = vmatprep.subr.mxu0 0.0
    %1151 = vmatpush1.msra.mxu0 0.0
    %1152 = vmatprep.subr.mxu0 0.0
    %1153 = vmatpush1.msra.mxu0 0.0
    %1154 = vmatprep.subr.mxu0 0.0
    %1155 = vmatpush1.msra.mxu0 0.0
    %1156 = vmatprep.subr.mxu0 0.0
    %1157 = vmatpush1.msra.mxu0 0.0
    %1158 = vmatprep.subr.mxu0 0.0
    %1159 = vmatpush1.msra.mxu0 0.0
    %1160 = vmatprep.subr.mxu0 0.0
    %1161 = vmatpush1.msra.mxu0 0.0
    %1162 = vmatprep.subr.mxu0 0.0
    %1163 = vmatpush1.msra.mxu0 0.0
    %1164 = vmatprep.subr.mxu0 0.0
    %1165 = vmatpush1.msra.mxu0 0.0
    %1166 = vmatprep.subr.mxu0 0.0
    %1167 = vmatpush1.msra.mxu0 0.0
    %1168 = vmatprep.subr.mxu0 0.0
    %1169 = vmatpush1.msra.mxu0 0.0
    %1170 = vmatprep.subr.mxu0 0.0
    %1171 = vmatpush1.msra.mxu0 0.0
    %1172 = vmatprep.subr.mxu0 0.0
    %1173 = vmatpush1.msra.mxu0 0.0
    %1174 = vmatprep.subr.mxu0 0.0
    %1175 = vmatpush1.msra.mxu0 0.0
    %1176 = vmatprep.subr.mxu0 0.0
    %1177 = vmatpush1.msra.mxu0 0.0
    %1178 = vmatprep.subr.mxu0 0.0
    %1179 = vmatpush1.msra.mxu0 0.0
    %1180 = vmatprep.subr.mxu0 0.0
    %1181 = vmatpush1.msra.mxu0 0.0
    %1182 = vmatprep.mubr.f32.mxu0 0.0
    %1183 = vmatmul.mubr.f32.gmra.mrb[0].mxu0 %v874
    %v1184 = vpop.f32.mrb[0].mxu0
    %v1185 = vadd.f32 0.0, %v1184
    %v1186 = vpop.f32.mrb[0].mxu0
    %1187 = vdwg.mxu0
    %1188 = vrot.lane.b32.xlu0 %v246, 64
    %v1189 = vpop.permute.xlu0 %1188
    %v1190 = vsel %vm89, %v1189, 0
    %1192 = vmatprep.subr.mxu0 0.0
    %1193 = vmatpush1.msra.mxu0 %v1114
    %1194 = vmatprep.subr.mxu0 0.0
    %1195 = vmatpush1.msra.mxu0 %v1115
    %1196 = vmatprep.subr.mxu0 0.0
    %1197 = vmatpush1.msra.mxu0 0.0
    %1198 = vmatprep.subr.mxu0 0.0
    %1199 = vmatpush1.msra.mxu0 0.0
    %1200 = vmatprep.subr.mxu0 0.0
    %1201 = vmatpush1.msra.mxu0 0.0
    %1202 = vmatprep.subr.mxu0 0.0
    %1203 = vmatpush1.msra.mxu0 0.0
    %1204 = vmatprep.subr.mxu0 0.0
    %1205 = vmatpush1.msra.mxu0 0.0
    %1206 = vmatprep.subr.mxu0 0.0
    %1207 = vmatpush1.msra.mxu0 0.0
    %1208 = vmatprep.subr.mxu0 0.0
    %1209 = vmatpush1.msra.mxu0 0.0
    %1210 = vmatprep.subr.mxu0 0.0
    %1211 = vmatpush1.msra.mxu0 0.0
    %1212 = vmatprep.subr.mxu0 0.0
    %1213 = vmatpush1.msra.mxu0 0.0
    %1214 = vmatprep.subr.mxu0 0.0
    %1215 = vmatpush1.msra.mxu0 0.0
    %1216 = vmatprep.subr.mxu0 0.0
    %1217 = vmatpush1.msra.mxu0 0.0
    %1218 = vmatprep.subr.mxu0 0.0
    %1219 = vmatpush1.msra.mxu0 0.0
    %1220 = vmatprep.subr.mxu0 0.0
    %1221 = vmatpush1.msra.mxu0 0.0
    %1222 = vmatprep.subr.mxu0 0.0
    %1223 = vmatpush1.msra.mxu0 0.0
    %1224 = vmatprep.subr.mxu0 0.0
    %1225 = vmatpush1.msra.mxu0 0.0
    %1226 = vmatprep.subr.mxu0 0.0
    %1227 = vmatpush1.msra.mxu0 0.0
    %1228 = vmatprep.subr.mxu0 0.0
    %1229 = vmatpush1.msra.mxu0 0.0
    %1230 = vmatprep.subr.mxu0 0.0
    %1231 = vmatpush1.msra.mxu0 0.0
    %1232 = vmatprep.subr.mxu0 0.0
    %1233 = vmatpush1.msra.mxu0 0.0
    %1234 = vmatprep.subr.mxu0 0.0
    %1235 = vmatpush1.msra.mxu0 0.0
    %1236 = vmatprep.subr.mxu0 0.0
    %1237 = vmatpush1.msra.mxu0 0.0
    %1238 = vmatprep.subr.mxu0 0.0
    %1239 = vmatpush1.msra.mxu0 0.0
    %1240 = vmatprep.subr.mxu0 0.0
    %1241 = vmatpush1.msra.mxu0 0.0
    %1242 = vmatprep.subr.mxu0 0.0
    %1243 = vmatpush1.msra.mxu0 0.0
    %1244 = vmatprep.subr.mxu0 0.0
    %1245 = vmatpush1.msra.mxu0 0.0
    %1246 = vmatprep.subr.mxu0 0.0
    %1247 = vmatpush1.msra.mxu0 0.0
    %1248 = vmatprep.subr.mxu0 0.0
    %1249 = vmatpush1.msra.mxu0 0.0
    %1250 = vmatprep.subr.mxu0 0.0
    %1251 = vmatpush1.msra.mxu0 0.0
    %1252 = vmatprep.subr.mxu0 0.0
    %1253 = vmatpush1.msra.mxu0 0.0
    %1254 = vmatprep.subr.mxu0 0.0
    %1255 = vmatpush1.msra.mxu0 0.0
    %1256 = vmatprep.mubr.f32.mxu0 0.0
    %1257 = vmatmul.mubr.f32.gmra.mrb[0].mxu0 %v1190
    %v1258 = vpop.f32.mrb[0].mxu0
    %v1259 = vadd.f32 %v1185, %v1258
    %v1260 = vpop.f32.mrb[0].mxu0
    %1261 = vdwg.mxu0
    %v1264 = vunpack.c.l.s4 1983009808
    %v1265 = vunpack.c.0.s8 %v1264
    %v1266 = vlaneseq
    %v1267 = vshrl.u32 %v1266, 7
    %v1268 = vsub.s32 %v1265, %v1267
    %v1269 = vrot.slane %v1259, %v1268
    %1270 = vrot.lane.b32.xlu0 %v1269, 96
    %v1271 = vpop.permute.xlu0 %1270
    %1273 = vst.msk [vmem:[#allocation10 + $0x2] sm:$0x3] %vm651, %v1271
    %v1274 = vld [vmem:[%s86] sm:$0xff]
    %v1275 = vld [vmem:[%s86 + $0x8] sm:$0xff]
    %v1276 = vld [vmem:[%s336] sm:$0xff]
    %v1277 = vld [vmem:[%s336 + $0x8] sm:$0xff]
    %1278 = vmatprep.subr.mxu0 0.0
    %1279 = vmatpush1.msra.mxu0 %v1276
    %1280 = vmatprep.subr.mxu0 0.0
    %1281 = vmatpush1.msra.mxu0 %v1277
    %1282 = vmatprep.subr.mxu0 0.0
    %1283 = vmatpush1.msra.mxu0 0.0
    %1284 = vmatprep.subr.mxu0 0.0
    %1285 = vmatpush1.msra.mxu0 0.0
    %1286 = vmatprep.subr.mxu0 0.0
    %1287 = vmatpush1.msra.mxu0 0.0
    %1288 = vmatprep.subr.mxu0 0.0
    %1289 = vmatpush1.msra.mxu0 0.0
    %1290 = vmatprep.subr.mxu0 0.0
    %1291 = vmatpush1.msra.mxu0 0.0
    %1292 = vmatprep.subr.mxu0 0.0
    %1293 = vmatpush1.msra.mxu0 0.0
    %1294 = vmatprep.subr.mxu0 0.0
    %1295 = vmatpush1.msra.mxu0 0.0
    %1296 = vmatprep.subr.mxu0 0.0
    %1297 = vmatpush1.msra.mxu0 0.0
    %1298 = vmatprep.subr.mxu0 0.0
    %1299 = vmatpush1.msra.mxu0 0.0
    %1300 = vmatprep.subr.mxu0 0.0
    %1301 = vmatpush1.msra.mxu0 0.0
    %1302 = vmatprep.subr.mxu0 0.0
    %1303 = vmatpush1.msra.mxu0 0.0
    %1304 = vmatprep.subr.mxu0 0.0
    %1305 = vmatpush1.msra.mxu0 0.0
    %1306 = vmatprep.subr.mxu0 0.0
    %1307 = vmatpush1.msra.mxu0 0.0
    %1308 = vmatprep.subr.mxu0 0.0
    %1309 = vmatpush1.msra.mxu0 0.0
    %1310 = vmatprep.subr.mxu0 0.0
    %1311 = vmatpush1.msra.mxu0 0.0
    %1312 = vmatprep.subr.mxu0 0.0
    %1313 = vmatpush1.msra.mxu0 0.0
    %1314 = vmatprep.subr.mxu0 0.0
    %1315 = vmatpush1.msra.mxu0 0.0
    %1316 = vmatprep.subr.mxu0 0.0
    %1317 = vmatpush1.msra.mxu0 0.0
    %1318 = vmatprep.subr.mxu0 0.0
    %1319 = vmatpush1.msra.mxu0 0.0
    %1320 = vmatprep.subr.mxu0 0.0
    %1321 = vmatpush1.msra.mxu0 0.0
    %1322 = vmatprep.subr.mxu0 0.0
    %1323 = vmatpush1.msra.mxu0 0.0
    %1324 = vmatprep.subr.mxu0 0.0
    %1325 = vmatpush1.msra.mxu0 0.0
    %1326 = vmatprep.subr.mxu0 0.0
    %1327 = vmatpush1.msra.mxu0 0.0
    %1328 = vmatprep.subr.mxu0 0.0
    %1329 = vmatpush1.msra.mxu0 0.0
    %1330 = vmatprep.subr.mxu0 0.0
    %1331 = vmatpush1.msra.mxu0 0.0
    %1332 = vmatprep.subr.mxu0 0.0
    %1333 = vmatpush1.msra.mxu0 0.0
    %1334 = vmatprep.subr.mxu0 0.0
    %1335 = vmatpush1.msra.mxu0 0.0
    %1336 = vmatprep.subr.mxu0 0.0
    %1337 = vmatpush1.msra.mxu0 0.0
    %1338 = vmatprep.subr.mxu0 0.0
    %1339 = vmatpush1.msra.mxu0 0.0
    %1340 = vmatprep.subr.mxu0 0.0
    %1341 = vmatpush1.msra.mxu0 0.0
    %1342 = vmatprep.mubr.f32.mxu0 0.0
    %1343 = vmatmul.mubr.f32.gmra.mrb[0].mxu0 %v874
    %v1344 = vpop.f32.mrb[0].mxu0
    %v1345 = vadd.f32 0.0, %v1344
    %v1346 = vpop.f32.mrb[0].mxu0
    %1347 = vdwg.mxu0
    %1348 = vmatprep.subr.mxu0 0.0
    %1349 = vmatpush1.msra.mxu0 %v1274
    %1350 = vmatprep.subr.mxu0 0.0
    %1351 = vmatpush1.msra.mxu0 %v1275
    %1352 = vmatprep.subr.mxu0 0.0
    %1353 = vmatpush1.msra.mxu0 0.0
    %1354 = vmatprep.subr.mxu0 0.0
    %1355 = vmatpush1.msra.mxu0 0.0
    %1356 = vmatprep.subr.mxu0 0.0
    %1357 = vmatpush1.msra.mxu0 0.0
    %1358 = vmatprep.subr.mxu0 0.0
    %1359 = vmatpush1.msra.mxu0 0.0
    %1360 = vmatprep.subr.mxu0 0.0
    %1361 = vmatpush1.msra.mxu0 0.0
    %1362 = vmatprep.subr.mxu0 0.0
    %1363 = vmatpush1.msra.mxu0 0.0
    %1364 = vmatprep.subr.mxu0 0.0
    %1365 = vmatpush1.msra.mxu0 0.0
    %1366 = vmatprep.subr.mxu0 0.0
    %1367 = vmatpush1.msra.mxu0 0.0
    %1368 = vmatprep.subr.mxu0 0.0
    %1369 = vmatpush1.msra.mxu0 0.0
    %1370 = vmatprep.subr.mxu0 0.0
    %1371 = vmatpush1.msra.mxu0 0.0
    %1372 = vmatprep.subr.mxu0 0.0
    %1373 = vmatpush1.msra.mxu0 0.0
    %1374 = vmatprep.subr.mxu0 0.0
    %1375 = vmatpush1.msra.mxu0 0.0
    %1376 = vmatprep.subr.mxu0 0.0
    %1377 = vmatpush1.msra.mxu0 0.0
    %1378 = vmatprep.subr.mxu0 0.0
    %1379 = vmatpush1.msra.mxu0 0.0
    %1380 = vmatprep.subr.mxu0 0.0
    %1381 = vmatpush1.msra.mxu0 0.0
    %1382 = vmatprep.subr.mxu0 0.0
    %1383 = vmatpush1.msra.mxu0 0.0
    %1384 = vmatprep.subr.mxu0 0.0
    %1385 = vmatpush1.msra.mxu0 0.0
    %1386 = vmatprep.subr.mxu0 0.0
    %1387 = vmatpush1.msra.mxu0 0.0
    %1388 = vmatprep.subr.mxu0 0.0
    %1389 = vmatpush1.msra.mxu0 0.0
    %1390 = vmatprep.subr.mxu0 0.0
    %1391 = vmatpush1.msra.mxu0 0.0
    %1392 = vmatprep.subr.mxu0 0.0
    %1393 = vmatpush1.msra.mxu0 0.0
    %1394 = vmatprep.subr.mxu0 0.0
    %1395 = vmatpush1.msra.mxu0 0.0
    %1396 = vmatprep.subr.mxu0 0.0
    %1397 = vmatpush1.msra.mxu0 0.0
    %1398 = vmatprep.subr.mxu0 0.0
    %1399 = vmatpush1.msra.mxu0 0.0
    %1400 = vmatprep.subr.mxu0 0.0
    %1401 = vmatpush1.msra.mxu0 0.0
    %1402 = vmatprep.subr.mxu0 0.0
    %1403 = vmatpush1.msra.mxu0 0.0
    %1404 = vmatprep.subr.mxu0 0.0
    %1405 = vmatpush1.msra.mxu0 0.0
    %1406 = vmatprep.subr.mxu0 0.0
    %1407 = vmatpush1.msra.mxu0 0.0
    %1408 = vmatprep.subr.mxu0 0.0
    %1409 = vmatpush1.msra.mxu0 0.0
    %1410 = vmatprep.subr.mxu0 0.0
    %1411 = vmatpush1.msra.mxu0 0.0
    %1412 = vmatprep.mubr.f32.mxu0 0.0
    %1413 = vmatmul.mubr.f32.gmra.mrb[0].mxu0 %v1190
    %v1414 = vpop.f32.mrb[0].mxu0
    %v1415 = vadd.f32 %v1345, %v1414
    %v1416 = vpop.f32.mrb[0].mxu0
    %1417 = vdwg.mxu0
    %1418 = vst.msk [vmem:[#allocation10 + $0x4] sm:$0x3] %vm163, %v1415
    %v1419 = vld [vmem:[#allocation8] sm:$0xff]
    %v1420 = vld [vmem:[#allocation8 + $0x8] sm:$0xff]
    %v1421 = vld [vmem:[%s167] sm:$0xff]
    %v1422 = vld [vmem:[%s167 + $0x8] sm:$0xff]
    %1423 = vmatprep.subr.mxu0 0.0
    %1424 = vmatpush1.msra.mxu0 %v1421
    %1425 = vmatprep.subr.mxu0 0.0
    %1426 = vmatpush1.msra.mxu0 %v1422
    %1427 = vmatprep.subr.mxu0 0.0
    %1428 = vmatpush1.msra.mxu0 0.0
    %1429 = vmatprep.subr.mxu0 0.0
    %1430 = vmatpush1.msra.mxu0 0.0
    %1431 = vmatprep.subr.mxu0 0.0
    %1432 = vmatpush1.msra.mxu0 0.0
    %1433 = vmatprep.subr.mxu0 0.0
    %1434 = vmatpush1.msra.mxu0 0.0
    %1435 = vmatprep.subr.mxu0 0.0
    %1436 = vmatpush1.msra.mxu0 0.0
    %1437 = vmatprep.subr.mxu0 0.0
    %1438 = vmatpush1.msra.mxu0 0.0
    %1439 = vmatprep.subr.mxu0 0.0
    %1440 = vmatpush1.msra.mxu0 0.0
    %1441 = vmatprep.subr.mxu0 0.0
    %1442 = vmatpush1.msra.mxu0 0.0
    %1443 = vmatprep.subr.mxu0 0.0
    %1444 = vmatpush1.msra.mxu0 0.0
    %1445 = vmatprep.subr.mxu0 0.0
    %1446 = vmatpush1.msra.mxu0 0.0
    %1447 = vmatprep.subr.mxu0 0.0
    %1448 = vmatpush1.msra.mxu0 0.0
    %1449 = vmatprep.subr.mxu0 0.0
    %1450 = vmatpush1.msra.mxu0 0.0
    %1451 = vmatprep.subr.mxu0 0.0
    %1452 = vmatpush1.msra.mxu0 0.0
    %1453 = vmatprep.subr.mxu0 0.0
    %1454 = vmatpush1.msra.mxu0 0.0
    %1455 = vmatprep.subr.mxu0 0.0
    %1456 = vmatpush1.msra.mxu0 0.0
    %1457 = vmatprep.subr.mxu0 0.0
    %1458 = vmatpush1.msra.mxu0 0.0
    %1459 = vmatprep.subr.mxu0 0.0
    %1460 = vmatpush1.msra.mxu0 0.0
    %1461 = vmatprep.subr.mxu0 0.0
    %1462 = vmatpush1.msra.mxu0 0.0
    %1463 = vmatprep.subr.mxu0 0.0
    %1464 = vmatpush1.msra.mxu0 0.0
    %1465 = vmatprep.subr.mxu0 0.0
    %1466 = vmatpush1.msra.mxu0 0.0
    %1467 = vmatprep.subr.mxu0 0.0
    %1468 = vmatpush1.msra.mxu0 0.0
    %1469 = vmatprep.subr.mxu0 0.0
    %1470 = vmatpush1.msra.mxu0 0.0
    %1471 = vmatprep.subr.mxu0 0.0
    %1472 = vmatpush1.msra.mxu0 0.0
    %1473 = vmatprep.subr.mxu0 0.0
    %1474 = vmatpush1.msra.mxu0 0.0
    %1475 = vmatprep.subr.mxu0 0.0
    %1476 = vmatpush1.msra.mxu0 0.0
    %1477 = vmatprep.subr.mxu0 0.0
    %1478 = vmatpush1.msra.mxu0 0.0
    %1479 = vmatprep.subr.mxu0 0.0
    %1480 = vmatpush1.msra.mxu0 0.0
    %1481 = vmatprep.subr.mxu0 0.0
    %1482 = vmatpush1.msra.mxu0 0.0
    %1483 = vmatprep.subr.mxu0 0.0
    %1484 = vmatpush1.msra.mxu0 0.0
    %1485 = vmatprep.subr.mxu0 0.0
    %1486 = vmatpush1.msra.mxu0 0.0
    %1487 = vmatprep.mubr.f32.mxu0 0.0
    %1488 = vmatmul.mubr.f32.gmra.mrb[0].mxu0 %v1190
    %v1489 = vpop.f32.mrb[0].mxu0
    %v1490 = vadd.f32 0.0, %v1489
    %v1491 = vpop.f32.mrb[0].mxu0
    %1492 = vdwg.mxu0
    %1493 = vrot.lane.b32.xlu0 %v246, 48
    %v1494 = vpop.permute.xlu0 %1493
    %v1495 = vsel %vm89, %v1494, 0
    %1497 = vmatprep.subr.mxu0 0.0
    %1498 = vmatpush1.msra.mxu0 %v1419
    %1499 = vmatprep.subr.mxu0 0.0
    %1500 = vmatpush1.msra.mxu0 %v1420
    %1501 = vmatprep.subr.mxu0 0.0
    %1502 = vmatpush1.msra.mxu0 0.0
    %1503 = vmatprep.subr.mxu0 0.0
    %1504 = vmatpush1.msra.mxu0 0.0
    %1505 = vmatprep.subr.mxu0 0.0
    %1506 = vmatpush1.msra.mxu0 0.0
    %1507 = vmatprep.subr.mxu0 0.0
    %1508 = vmatpush1.msra.mxu0 0.0
    %1509 = vmatprep.subr.mxu0 0.0
    %1510 = vmatpush1.msra.mxu0 0.0
    %1511 = vmatprep.subr.mxu0 0.0
    %1512 = vmatpush1.msra.mxu0 0.0
    %1513 = vmatprep.subr.mxu0 0.0
    %1514 = vmatpush1.msra.mxu0 0.0
    %1515 = vmatprep.subr.mxu0 0.0
    %1516 = vmatpush1.msra.mxu0 0.0
    %1517 = vmatprep.subr.mxu0 0.0
    %1518 = vmatpush1.msra.mxu0 0.0
    %1519 = vmatprep.subr.mxu0 0.0
    %1520 = vmatpush1.msra.mxu0 0.0
    %1521 = vmatprep.subr.mxu0 0.0
    %1522 = vmatpush1.msra.mxu0 0.0
    %1523 = vmatprep.subr.mxu0 0.0
    %1524 = vmatpush1.msra.mxu0 0.0
    %1525 = vmatprep.subr.mxu0 0.0
    %1526 = vmatpush1.msra.mxu0 0.0
    %1527 = vmatprep.subr.mxu0 0.0
    %1528 = vmatpush1.msra.mxu0 0.0
    %1529 = vmatprep.subr.mxu0 0.0
    %1530 = vmatpush1.msra.mxu0 0.0
    %1531 = vmatprep.subr.mxu0 0.0
    %1532 = vmatpush1.msra.mxu0 0.0
    %1533 = vmatprep.subr.mxu0 0.0
    %1534 = vmatpush1.msra.mxu0 0.0
    %1535 = vmatprep.subr.mxu0 0.0
    %1536 = vmatpush1.msra.mxu0 0.0
    %1537 = vmatprep.subr.mxu0 0.0
    %1538 = vmatpush1.msra.mxu0 0.0
    %1539 = vmatprep.subr.mxu0 0.0
    %1540 = vmatpush1.msra.mxu0 0.0
    %1541 = vmatprep.subr.mxu0 0.0
    %1542 = vmatpush1.msra.mxu0 0.0
    %1543 = vmatprep.subr.mxu0 0.0
    %1544 = vmatpush1.msra.mxu0 0.0
    %1545 = vmatprep.subr.mxu0 0.0
    %1546 = vmatpush1.msra.mxu0 0.0
    %1547 = vmatprep.subr.mxu0 0.0
    %1548 = vmatpush1.msra.mxu0 0.0
    %1549 = vmatprep.subr.mxu0 0.0
    %1550 = vmatpush1.msra.mxu0 0.0
    %1551 = vmatprep.subr.mxu0 0.0
    %1552 = vmatpush1.msra.mxu0 0.0
    %1553 = vmatprep.subr.mxu0 0.0
    %1554 = vmatpush1.msra.mxu0 0.0
    %1555 = vmatprep.subr.mxu0 0.0
    %1556 = vmatpush1.msra.mxu0 0.0
    %1557 = vmatprep.subr.mxu0 0.0
    %1558 = vmatpush1.msra.mxu0 0.0
    %1559 = vmatprep.subr.mxu0 0.0
    %1560 = vmatpush1.msra.mxu0 0.0
    %1561 = vmatprep.mubr.f32.mxu0 0.0
    %1562 = vmatmul.mubr.f32.gmra.mrb[0].mxu0 %v1495
    %v1563 = vpop.f32.mrb[0].mxu0
    %v1564 = vadd.f32 %v1490, %v1563
    %v1565 = vpop.f32.mrb[0].mxu0
    %1566 = vdwg.mxu0
    %v1569 = vunpack.c.l.s4 1983009808
    %v1570 = vunpack.c.0.s8 %v1569
    %v1571 = vlaneseq
    %v1572 = vshrl.u32 %v1571, 7
    %v1573 = vsub.s32 %v1570, %v1572
    %v1574 = vrot.slane %v1564, %v1573
    %1575 = vrot.lane.b32.xlu0 %v1574, 32
    %v1576 = vpop.permute.xlu0 %1575
    %1578 = vst.msk [vmem:[#allocation10 + $0x4] sm:$0x3] %vm332, %v1576
    %v1579 = vld [vmem:[%s86] sm:$0xff]
    %v1580 = vld [vmem:[%s86 + $0x8] sm:$0xff]
    %v1581 = vld [vmem:[%s336] sm:$0xff]
    %v1582 = vld [vmem:[%s336 + $0x8] sm:$0xff]
    %1583 = vmatprep.subr.mxu0 0.0
    %1584 = vmatpush1.msra.mxu0 %v1581
    %1585 = vmatprep.subr.mxu0 0.0
    %1586 = vmatpush1.msra.mxu0 %v1582
    %1587 = vmatprep.subr.mxu0 0.0
    %1588 = vmatpush1.msra.mxu0 0.0
    %1589 = vmatprep.subr.mxu0 0.0
    %1590 = vmatpush1.msra.mxu0 0.0
    %1591 = vmatprep.subr.mxu0 0.0
    %1592 = vmatpush1.msra.mxu0 0.0
    %1593 = vmatprep.subr.mxu0 0.0
    %1594 = vmatpush1.msra.mxu0 0.0
    %1595 = vmatprep.subr.mxu0 0.0
    %1596 = vmatpush1.msra.mxu0 0.0
    %1597 = vmatprep.subr.mxu0 0.0
    %1598 = vmatpush1.msra.mxu0 0.0
    %1599 = vmatprep.subr.mxu0 0.0
    %1600 = vmatpush1.msra.mxu0 0.0
    %1601 = vmatprep.subr.mxu0 0.0
    %1602 = vmatpush1.msra.mxu0 0.0
    %1603 = vmatprep.subr.mxu0 0.0
    %1604 = vmatpush1.msra.mxu0 0.0
    %1605 = vmatprep.subr.mxu0 0.0
    %1606 = vmatpush1.msra.mxu0 0.0
    %1607 = vmatprep.subr.mxu0 0.0
    %1608 = vmatpush1.msra.mxu0 0.0
    %1609 = vmatprep.subr.mxu0 0.0
    %1610 = vmatpush1.msra.mxu0 0.0
    %1611 = vmatprep.subr.mxu0 0.0
    %1612 = vmatpush1.msra.mxu0 0.0
    %1613 = vmatprep.subr.mxu0 0.0
    %1614 = vmatpush1.msra.mxu0 0.0
    %1615 = vmatprep.subr.mxu0 0.0
    %1616 = vmatpush1.msra.mxu0 0.0
    %1617 = vmatprep.subr.mxu0 0.0
    %1618 = vmatpush1.msra.mxu0 0.0
    %1619 = vmatprep.subr.mxu0 0.0
    %1620 = vmatpush1.msra.mxu0 0.0
    %1621 = vmatprep.subr.mxu0 0.0
    %1622 = vmatpush1.msra.mxu0 0.0
    %1623 = vmatprep.subr.mxu0 0.0
    %1624 = vmatpush1.msra.mxu0 0.0
    %1625 = vmatprep.subr.mxu0 0.0
    %1626 = vmatpush1.msra.mxu0 0.0
    %1627 = vmatprep.subr.mxu0 0.0
    %1628 = vmatpush1.msra.mxu0 0.0
    %1629 = vmatprep.subr.mxu0 0.0
    %1630 = vmatpush1.msra.mxu0 0.0
    %1631 = vmatprep.subr.mxu0 0.0
    %1632 = vmatpush1.msra.mxu0 0.0
    %1633 = vmatprep.subr.mxu0 0.0
    %1634 = vmatpush1.msra.mxu0 0.0
    %1635 = vmatprep.subr.mxu0 0.0
    %1636 = vmatpush1.msra.mxu0 0.0
    %1637 = vmatprep.subr.mxu0 0.0
    %1638 = vmatpush1.msra.mxu0 0.0
    %1639 = vmatprep.subr.mxu0 0.0
    %1640 = vmatpush1.msra.mxu0 0.0
    %1641 = vmatprep.subr.mxu0 0.0
    %1642 = vmatpush1.msra.mxu0 0.0
    %1643 = vmatprep.subr.mxu0 0.0
    %1644 = vmatpush1.msra.mxu0 0.0
    %1645 = vmatprep.subr.mxu0 0.0
    %1646 = vmatpush1.msra.mxu0 0.0
    %1647 = vmatprep.mubr.f32.mxu0 0.0
    %1648 = vmatmul.mubr.f32.gmra.mrb[0].mxu0 %v1190
    %v1649 = vpop.f32.mrb[0].mxu0
    %v1650 = vadd.f32 0.0, %v1649
    %v1651 = vpop.f32.mrb[0].mxu0
    %1652 = vdwg.mxu0
    %1653 = vmatprep.subr.mxu0 0.0
    %1654 = vmatpush1.msra.mxu0 %v1579
    %1655 = vmatprep.subr.mxu0 0.0
    %1656 = vmatpush1.msra.mxu0 %v1580
    %1657 = vmatprep.subr.mxu0 0.0
    %1658 = vmatpush1.msra.mxu0 0.0
    %1659 = vmatprep.subr.mxu0 0.0
    %1660 = vmatpush1.msra.mxu0 0.0
    %1661 = vmatprep.subr.mxu0 0.0
    %1662 = vmatpush1.msra.mxu0 0.0
    %1663 = vmatprep.subr.mxu0 0.0
    %1664 = vmatpush1.msra.mxu0 0.0
    %1665 = vmatprep.subr.mxu0 0.0
    %1666 = vmatpush1.msra.mxu0 0.0
    %1667 = vmatprep.subr.mxu0 0.0
    %1668 = vmatpush1.msra.mxu0 0.0
    %1669 = vmatprep.subr.mxu0 0.0
    %1670 = vmatpush1.msra.mxu0 0.0
    %1671 = vmatprep.subr.mxu0 0.0
    %1672 = vmatpush1.msra.mxu0 0.0
    %1673 = vmatprep.subr.mxu0 0.0
    %1674 = vmatpush1.msra.mxu0 0.0
    %1675 = vmatprep.subr.mxu0 0.0
    %1676 = vmatpush1.msra.mxu0 0.0
    %1677 = vmatprep.subr.mxu0 0.0
    %1678 = vmatpush1.msra.mxu0 0.0
    %1679 = vmatprep.subr.mxu0 0.0
    %1680 = vmatpush1.msra.mxu0 0.0
    %1681 = vmatprep.subr.mxu0 0.0
    %1682 = vmatpush1.msra.mxu0 0.0
    %1683 = vmatprep.subr.mxu0 0.0
    %1684 = vmatpush1.msra.mxu0 0.0
    %1685 = vmatprep.subr.mxu0 0.0
    %1686 = vmatpush1.msra.mxu0 0.0
    %1687 = vmatprep.subr.mxu0 0.0
    %1688 = vmatpush1.msra.mxu0 0.0
    %1689 = vmatprep.subr.mxu0 0.0
    %1690 = vmatpush1.msra.mxu0 0.0
    %1691 = vmatprep.subr.mxu0 0.0
    %1692 = vmatpush1.msra.mxu0 0.0
    %1693 = vmatprep.subr.mxu0 0.0
    %1694 = vmatpush1.msra.mxu0 0.0
    %1695 = vmatprep.subr.mxu0 0.0
    %1696 = vmatpush1.msra.mxu0 0.0
    %1697 = vmatprep.subr.mxu0 0.0
    %1698 = vmatpush1.msra.mxu0 0.0
    %1699 = vmatprep.subr.mxu0 0.0
    %1700 = vmatpush1.msra.mxu0 0.0
    %1701 = vmatprep.subr.mxu0 0.0
    %1702 = vmatpush1.msra.mxu0 0.0
    %1703 = vmatprep.subr.mxu0 0.0
    %1704 = vmatpush1.msra.mxu0 0.0
    %1705 = vmatprep.subr.mxu0 0.0
    %1706 = vmatpush1.msra.mxu0 0.0
    %1707 = vmatprep.subr.mxu0 0.0
    %1708 = vmatpush1.msra.mxu0 0.0
    %1709 = vmatprep.subr.mxu0 0.0
    %1710 = vmatpush1.msra.mxu0 0.0
    %1711 = vmatprep.subr.mxu0 0.0
    %1712 = vmatpush1.msra.mxu0 0.0
    %1713 = vmatprep.subr.mxu0 0.0
    %1714 = vmatpush1.msra.mxu0 0.0
    %1715 = vmatprep.subr.mxu0 0.0
    %1716 = vmatpush1.msra.mxu0 0.0
    %1717 = vmatprep.mubr.f32.mxu0 0.0
    %1718 = vmatmul.mubr.f32.gmra.mrb[0].mxu0 %v1495
    %v1719 = vpop.f32.mrb[0].mxu0
    %v1720 = vadd.f32 %v1650, %v1719
    %v1721 = vpop.f32.mrb[0].mxu0
    %1722 = vdwg.mxu0
    %v1725 = vunpack.c.l.s4 1983009808
    %v1726 = vunpack.c.0.s8 %v1725
    %v1727 = vlaneseq
    %v1728 = vshrl.u32 %v1727, 7
    %v1729 = vsub.s32 %v1726, %v1728
    %v1730 = vrot.slane %v1720, %v1729
    %1731 = vrot.lane.b32.xlu0 %v1730, 64
    %v1732 = vpop.permute.xlu0 %1731
    %1734 = vst.msk [vmem:[#allocation10 + $0x4] sm:$0x3] %vm490, %v1732
    %v1735 = vld [vmem:[#allocation8] sm:$0xff]
    %v1736 = vld [vmem:[#allocation8 + $0x8] sm:$0xff]
    %v1737 = vld [vmem:[%s167] sm:$0xff]
    %v1738 = vld [vmem:[%s167 + $0x8] sm:$0xff]
    %1739 = vmatprep.subr.mxu0 0.0
    %1740 = vmatpush1.msra.mxu0 %v1737
    %1741 = vmatprep.subr.mxu0 0.0
    %1742 = vmatpush1.msra.mxu0 %v1738
    %1743 = vmatprep.subr.mxu0 0.0
    %1744 = vmatpush1.msra.mxu0 0.0
    %1745 = vmatprep.subr.mxu0 0.0
    %1746 = vmatpush1.msra.mxu0 0.0
    %1747 = vmatprep.subr.mxu0 0.0
    %1748 = vmatpush1.msra.mxu0 0.0
    %1749 = vmatprep.subr.mxu0 0.0
    %1750 = vmatpush1.msra.mxu0 0.0
    %1751 = vmatprep.subr.mxu0 0.0
    %1752 = vmatpush1.msra.mxu0 0.0
    %1753 = vmatprep.subr.mxu0 0.0
    %1754 = vmatpush1.msra.mxu0 0.0
    %1755 = vmatprep.subr.mxu0 0.0
    %1756 = vmatpush1.msra.mxu0 0.0
    %1757 = vmatprep.subr.mxu0 0.0
    %1758 = vmatpush1.msra.mxu0 0.0
    %1759 = vmatprep.subr.mxu0 0.0
    %1760 = vmatpush1.msra.mxu0 0.0
    %1761 = vmatprep.subr.mxu0 0.0
    %1762 = vmatpush1.msra.mxu0 0.0
    %1763 = vmatprep.subr.mxu0 0.0
    %1764 = vmatpush1.msra.mxu0 0.0
    %1765 = vmatprep.subr.mxu0 0.0
    %1766 = vmatpush1.msra.mxu0 0.0
    %1767 = vmatprep.subr.mxu0 0.0
    %1768 = vmatpush1.msra.mxu0 0.0
    %1769 = vmatprep.subr.mxu0 0.0
    %1770 = vmatpush1.msra.mxu0 0.0
    %1771 = vmatprep.subr.mxu0 0.0
    %1772 = vmatpush1.msra.mxu0 0.0
    %1773 = vmatprep.subr.mxu0 0.0
    %1774 = vmatpush1.msra.mxu0 0.0
    %1775 = vmatprep.subr.mxu0 0.0
    %1776 = vmatpush1.msra.mxu0 0.0
    %1777 = vmatprep.subr.mxu0 0.0
    %1778 = vmatpush1.msra.mxu0 0.0
    %1779 = vmatprep.subr.mxu0 0.0
    %1780 = vmatpush1.msra.mxu0 0.0
    %1781 = vmatprep.subr.mxu0 0.0
    %1782 = vmatpush1.msra.mxu0 0.0
    %1783 = vmatprep.subr.mxu0 0.0
    %1784 = vmatpush1.msra.mxu0 0.0
    %1785 = vmatprep.subr.mxu0 0.0
    %1786 = vmatpush1.msra.mxu0 0.0
    %1787 = vmatprep.subr.mxu0 0.0
    %1788 = vmatpush1.msra.mxu0 0.0
    %1789 = vmatprep.subr.mxu0 0.0
    %1790 = vmatpush1.msra.mxu0 0.0
    %1791 = vmatprep.subr.mxu0 0.0
    %1792 = vmatpush1.msra.mxu0 0.0
    %1793 = vmatprep.subr.mxu0 0.0
    %1794 = vmatpush1.msra.mxu0 0.0
    %1795 = vmatprep.subr.mxu0 0.0
    %1796 = vmatpush1.msra.mxu0 0.0
    %1797 = vmatprep.subr.mxu0 0.0
    %1798 = vmatpush1.msra.mxu0 0.0
    %1799 = vmatprep.subr.mxu0 0.0
    %1800 = vmatpush1.msra.mxu0 0.0
    %1801 = vmatprep.subr.mxu0 0.0
    %1802 = vmatpush1.msra.mxu0 0.0
    %1803 = vmatprep.mubr.f32.mxu0 0.0
    %1804 = vmatmul.mubr.f32.gmra.mrb[0].mxu0 %v1495
    %v1805 = vpop.f32.mrb[0].mxu0
    %v1806 = vadd.f32 0.0, %v1805
    %v1807 = vpop.f32.mrb[0].mxu0
    %1808 = vdwg.mxu0
    %1809 = vrot.lane.b32.xlu0 %v246, 32
    %v1810 = vpop.permute.xlu0 %1809
    %v1811 = vsel %vm89, %v1810, 0
    %1813 = vmatprep.subr.mxu0 0.0
    %1814 = vmatpush1.msra.mxu0 %v1735
    %1815 = vmatprep.subr.mxu0 0.0
    %1816 = vmatpush1.msra.mxu0 %v1736
    %1817 = vmatprep.subr.mxu0 0.0
    %1818 = vmatpush1.msra.mxu0 0.0
    %1819 = vmatprep.subr.mxu0 0.0
    %1820 = vmatpush1.msra.mxu0 0.0
    %1821 = vmatprep.subr.mxu0 0.0
    %1822 = vmatpush1.msra.mxu0 0.0
    %1823 = vmatprep.subr.mxu0 0.0
    %1824 = vmatpush1.msra.mxu0 0.0
    %1825 = vmatprep.subr.mxu0 0.0
    %1826 = vmatpush1.msra.mxu0 0.0
    %1827 = vmatprep.subr.mxu0 0.0
    %1828 = vmatpush1.msra.mxu0 0.0
    %1829 = vmatprep.subr.mxu0 0.0
    %1830 = vmatpush1.msra.mxu0 0.0
    %1831 = vmatprep.subr.mxu0 0.0
    %1832 = vmatpush1.msra.mxu0 0.0
    %1833 = vmatprep.subr.mxu0 0.0
    %1834 = vmatpush1.msra.mxu0 0.0
    %1835 = vmatprep.subr.mxu0 0.0
    %1836 = vmatpush1.msra.mxu0 0.0
    %1837 = vmatprep.subr.mxu0 0.0
    %1838 = vmatpush1.msra.mxu0 0.0
    %1839 = vmatprep.subr.mxu0 0.0
    %1840 = vmatpush1.msra.mxu0 0.0
    %1841 = vmatprep.subr.mxu0 0.0
    %1842 = vmatpush1.msra.mxu0 0.0
    %1843 = vmatprep.subr.mxu0 0.0
    %1844 = vmatpush1.msra.mxu0 0.0
    %1845 = vmatprep.subr.mxu0 0.0
    %1846 = vmatpush1.msra.mxu0 0.0
    %1847 = vmatprep.subr.mxu0 0.0
    %1848 = vmatpush1.msra.mxu0 0.0
    %1849 = vmatprep.subr.mxu0 0.0
    %1850 = vmatpush1.msra.mxu0 0.0
    %1851 = vmatprep.subr.mxu0 0.0
    %1852 = vmatpush1.msra.mxu0 0.0
    %1853 = vmatprep.subr.mxu0 0.0
    %1854 = vmatpush1.msra.mxu0 0.0
    %1855 = vmatprep.subr.mxu0 0.0
    %1856 = vmatpush1.msra.mxu0 0.0
    %1857 = vmatprep.subr.mxu0 0.0
    %1858 = vmatpush1.msra.mxu0 0.0
    %1859 = vmatprep.subr.mxu0 0.0
    %1860 = vmatpush1.msra.mxu0 0.0
    %1861 = vmatprep.subr.mxu0 0.0
    %1862 = vmatpush1.msra.mxu0 0.0
    %1863 = vmatprep.subr.mxu0 0.0
    %1864 = vmatpush1.msra.mxu0 0.0
    %1865 = vmatprep.subr.mxu0 0.0
    %1866 = vmatpush1.msra.mxu0 0.0
    %1867 = vmatprep.subr.mxu0 0.0
    %1868 = vmatpush1.msra.mxu0 0.0
    %1869 = vmatprep.subr.mxu0 0.0
    %1870 = vmatpush1.msra.mxu0 0.0
    %1871 = vmatprep.subr.mxu0 0.0
    %1872 = vmatpush1.msra.mxu0 0.0
    %1873 = vmatprep.subr.mxu0 0.0
    %1874 = vmatpush1.msra.mxu0 0.0
    %1875 = vmatprep.subr.mxu0 0.0
    %1876 = vmatpush1.msra.mxu0 0.0
    %1877 = vmatprep.mubr.f32.mxu0 0.0
    %1878 = vmatmul.mubr.f32.gmra.mrb[0].mxu0 %v1811
    %v1879 = vpop.f32.mrb[0].mxu0
    %v1880 = vadd.f32 %v1806, %v1879
    %v1881 = vpop.f32.mrb[0].mxu0
    %1882 = vdwg.mxu0
    %v1885 = vunpack.c.l.s4 1983009808
    %v1886 = vunpack.c.0.s8 %v1885
    %v1887 = vlaneseq
    %v1888 = vshrl.u32 %v1887, 7
    %v1889 = vsub.s32 %v1886, %v1888
    %v1890 = vrot.slane %v1880, %v1889
    %1891 = vrot.lane.b32.xlu0 %v1890, 96
    %v1892 = vpop.permute.xlu0 %1891
    %1894 = vst.msk [vmem:[#allocation10 + $0x4] sm:$0x3] %vm651, %v1892
    %v1895 = vld [vmem:[%s86] sm:$0xff]
    %v1896 = vld [vmem:[%s86 + $0x8] sm:$0xff]
    %v1897 = vld [vmem:[%s336] sm:$0xff]
    %v1898 = vld [vmem:[%s336 + $0x8] sm:$0xff]
    %1899 = vmatprep.subr.mxu0 0.0
    %1900 = vmatpush1.msra.mxu0 %v1897
    %1901 = vmatprep.subr.mxu0 0.0
    %1902 = vmatpush1.msra.mxu0 %v1898
    %1903 = vmatprep.subr.mxu0 0.0
    %1904 = vmatpush1.msra.mxu0 0.0
    %1905 = vmatprep.subr.mxu0 0.0
    %1906 = vmatpush1.msra.mxu0 0.0
    %1907 = vmatprep.subr.mxu0 0.0
    %1908 = vmatpush1.msra.mxu0 0.0
    %1909 = vmatprep.subr.mxu0 0.0
    %1910 = vmatpush1.msra.mxu0 0.0
    %1911 = vmatprep.subr.mxu0 0.0
    %1912 = vmatpush1.msra.mxu0 0.0
    %1913 = vmatprep.subr.mxu0 0.0
    %1914 = vmatpush1.msra.mxu0 0.0
    %1915 = vmatprep.subr.mxu0 0.0
    %1916 = vmatpush1.msra.mxu0 0.0
    %1917 = vmatprep.subr.mxu0 0.0
    %1918 = vmatpush1.msra.mxu0 0.0
    %1919 = vmatprep.subr.mxu0 0.0
    %1920 = vmatpush1.msra.mxu0 0.0
    %1921 = vmatprep.subr.mxu0 0.0
    %1922 = vmatpush1.msra.mxu0 0.0
    %1923 = vmatprep.subr.mxu0 0.0
    %1924 = vmatpush1.msra.mxu0 0.0
    %1925 = vmatprep.subr.mxu0 0.0
    %1926 = vmatpush1.msra.mxu0 0.0
    %1927 = vmatprep.subr.mxu0 0.0
    %1928 = vmatpush1.msra.mxu0 0.0
    %1929 = vmatprep.subr.mxu0 0.0
    %1930 = vmatpush1.msra.mxu0 0.0
    %1931 = vmatprep.subr.mxu0 0.0
    %1932 = vmatpush1.msra.mxu0 0.0
    %1933 = vmatprep.subr.mxu0 0.0
    %1934 = vmatpush1.msra.mxu0 0.0
    %1935 = vmatprep.subr.mxu0 0.0
    %1936 = vmatpush1.msra.mxu0 0.0
    %1937 = vmatprep.subr.mxu0 0.0
    %1938 = vmatpush1.msra.mxu0 0.0
    %1939 = vmatprep.subr.mxu0 0.0
    %1940 = vmatpush1.msra.mxu0 0.0
    %1941 = vmatprep.subr.mxu0 0.0
    %1942 = vmatpush1.msra.mxu0 0.0
    %1943 = vmatprep.subr.mxu0 0.0
    %1944 = vmatpush1.msra.mxu0 0.0
    %1945 = vmatprep.subr.mxu0 0.0
    %1946 = vmatpush1.msra.mxu0 0.0
    %1947 = vmatprep.subr.mxu0 0.0
    %1948 = vmatpush1.msra.mxu0 0.0
    %1949 = vmatprep.subr.mxu0 0.0
    %1950 = vmatpush1.msra.mxu0 0.0
    %1951 = vmatprep.subr.mxu0 0.0
    %1952 = vmatpush1.msra.mxu0 0.0
    %1953 = vmatprep.subr.mxu0 0.0
    %1954 = vmatpush1.msra.mxu0 0.0
    %1955 = vmatprep.subr.mxu0 0.0
    %1956 = vmatpush1.msra.mxu0 0.0
    %1957 = vmatprep.subr.mxu0 0.0
    %1958 = vmatpush1.msra.mxu0 0.0
    %1959 = vmatprep.subr.mxu0 0.0
    %1960 = vmatpush1.msra.mxu0 0.0
    %1961 = vmatprep.subr.mxu0 0.0
    %1962 = vmatpush1.msra.mxu0 0.0
    %1963 = vmatprep.mubr.f32.mxu0 0.0
    %1964 = vmatmul.mubr.f32.gmra.mrb[0].mxu0 %v1495
    %v1965 = vpop.f32.mrb[0].mxu0
    %v1966 = vadd.f32 0.0, %v1965
    %v1967 = vpop.f32.mrb[0].mxu0
    %1968 = vdwg.mxu0
    %1969 = vmatprep.subr.mxu0 0.0
    %1970 = vmatpush1.msra.mxu0 %v1895
    %1971 = vmatprep.subr.mxu0 0.0
    %1972 = vmatpush1.msra.mxu0 %v1896
    %1973 = vmatprep.subr.mxu0 0.0
    %1974 = vmatpush1.msra.mxu0 0.0
    %1975 = vmatprep.subr.mxu0 0.0
    %1976 = vmatpush1.msra.mxu0 0.0
    %1977 = vmatprep.subr.mxu0 0.0
    %1978 = vmatpush1.msra.mxu0 0.0
    %1979 = vmatprep.subr.mxu0 0.0
    %1980 = vmatpush1.msra.mxu0 0.0
    %1981 = vmatprep.subr.mxu0 0.0
    %1982 = vmatpush1.msra.mxu0 0.0
    %1983 = vmatprep.subr.mxu0 0.0
    %1984 = vmatpush1.msra.mxu0 0.0
    %1985 = vmatprep.subr.mxu0 0.0
    %1986 = vmatpush1.msra.mxu0 0.0
    %1987 = vmatprep.subr.mxu0 0.0
    %1988 = vmatpush1.msra.mxu0 0.0
    %1989 = vmatprep.subr.mxu0 0.0
    %1990 = vmatpush1.msra.mxu0 0.0
    %1991 = vmatprep.subr.mxu0 0.0
    %1992 = vmatpush1.msra.mxu0 0.0
    %1993 = vmatprep.subr.mxu0 0.0
    %1994 = vmatpush1.msra.mxu0 0.0
    %1995 = vmatprep.subr.mxu0 0.0
    %1996 = vmatpush1.msra.mxu0 0.0
    %1997 = vmatprep.subr.mxu0 0.0
    %1998 = vmatpush1.msra.mxu0 0.0
    %1999 = vmatprep.subr.mxu0 0.0
    %2000 = vmatpush1.msra.mxu0 0.0
    %2001 = vmatprep.subr.mxu0 0.0
    %2002 = vmatpush1.msra.mxu0 0.0
    %2003 = vmatprep.subr.mxu0 0.0
    %2004 = vmatpush1.msra.mxu0 0.0
    %2005 = vmatprep.subr.mxu0 0.0
    %2006 = vmatpush1.msra.mxu0 0.0
    %2007 = vmatprep.subr.mxu0 0.0
    %2008 = vmatpush1.msra.mxu0 0.0
    %2009 = vmatprep.subr.mxu0 0.0
    %2010 = vmatpush1.msra.mxu0 0.0
    %2011 = vmatprep.subr.mxu0 0.0
    %2012 = vmatpush1.msra.mxu0 0.0
    %2013 = vmatprep.subr.mxu0 0.0
    %2014 = vmatpush1.msra.mxu0 0.0
    %2015 = vmatprep.subr.mxu0 0.0
    %2016 = vmatpush1.msra.mxu0 0.0
    %2017 = vmatprep.subr.mxu0 0.0
    %2018 = vmatpush1.msra.mxu0 0.0
    %2019 = vmatprep.subr.mxu0 0.0
    %2020 = vmatpush1.msra.mxu0 0.0
    %2021 = vmatprep.subr.mxu0 0.0
    %2022 = vmatpush1.msra.mxu0 0.0
    %2023 = vmatprep.subr.mxu0 0.0
    %2024 = vmatpush1.msra.mxu0 0.0
    %2025 = vmatprep.subr.mxu0 0.0
    %2026 = vmatpush1.msra.mxu0 0.0
    %2027 = vmatprep.subr.mxu0 0.0
    %2028 = vmatpush1.msra.mxu0 0.0
    %2029 = vmatprep.subr.mxu0 0.0
    %2030 = vmatpush1.msra.mxu0 0.0
    %2031 = vmatprep.subr.mxu0 0.0
    %2032 = vmatpush1.msra.mxu0 0.0
    %2033 = vmatprep.mubr.f32.mxu0 0.0
    %2034 = vmatmul.mubr.f32.gmra.mrb[0].mxu0 %v1811
    %v2035 = vpop.f32.mrb[0].mxu0
    %v2036 = vadd.f32 %v1966, %v2035
    %v2037 = vpop.f32.mrb[0].mxu0
    %2038 = vdwg.mxu0
    %2039 = vst.msk [vmem:[#allocation10 + $0x6] sm:$0x3] %vm163, %v2036
    %v2040 = vld [vmem:[#allocation8] sm:$0xff]
    %v2041 = vld [vmem:[#allocation8 + $0x8] sm:$0xff]
    %v2042 = vld [vmem:[%s167] sm:$0xff]
    %v2043 = vld [vmem:[%s167 + $0x8] sm:$0xff]
    %2044 = vmatprep.subr.mxu0 0.0
    %2045 = vmatpush1.msra.mxu0 %v2042
    %2046 = vmatprep.subr.mxu0 0.0
    %2047 = vmatpush1.msra.mxu0 %v2043
    %2048 = vmatprep.subr.mxu0 0.0
    %2049 = vmatpush1.msra.mxu0 0.0
    %2050 = vmatprep.subr.mxu0 0.0
    %2051 = vmatpush1.msra.mxu0 0.0
    %2052 = vmatprep.subr.mxu0 0.0
    %2053 = vmatpush1.msra.mxu0 0.0
    %2054 = vmatprep.subr.mxu0 0.0
    %2055 = vmatpush1.msra.mxu0 0.0
    %2056 = vmatprep.subr.mxu0 0.0
    %2057 = vmatpush1.msra.mxu0 0.0
    %2058 = vmatprep.subr.mxu0 0.0
    %2059 = vmatpush1.msra.mxu0 0.0
    %2060 = vmatprep.subr.mxu0 0.0
    %2061 = vmatpush1.msra.mxu0 0.0
    %2062 = vmatprep.subr.mxu0 0.0
    %2063 = vmatpush1.msra.mxu0 0.0
    %2064 = vmatprep.subr.mxu0 0.0
    %2065 = vmatpush1.msra.mxu0 0.0
    %2066 = vmatprep.subr.mxu0 0.0
    %2067 = vmatpush1.msra.mxu0 0.0
    %2068 = vmatprep.subr.mxu0 0.0
    %2069 = vmatpush1.msra.mxu0 0.0
    %2070 = vmatprep.subr.mxu0 0.0
    %2071 = vmatpush1.msra.mxu0 0.0
    %2072 = vmatprep.subr.mxu0 0.0
    %2073 = vmatpush1.msra.mxu0 0.0
    %2074 = vmatprep.subr.mxu0 0.0
    %2075 = vmatpush1.msra.mxu0 0.0
    %2076 = vmatprep.subr.mxu0 0.0
    %2077 = vmatpush1.msra.mxu0 0.0
    %2078 = vmatprep.subr.mxu0 0.0
    %2079 = vmatpush1.msra.mxu0 0.0
    %2080 = vmatprep.subr.mxu0 0.0
    %2081 = vmatpush1.msra.mxu0 0.0
    %2082 = vmatprep.subr.mxu0 0.0
    %2083 = vmatpush1.msra.mxu0 0.0
    %2084 = vmatprep.subr.mxu0 0.0
    %2085 = vmatpush1.msra.mxu0 0.0
    %2086 = vmatprep.subr.mxu0 0.0
    %2087 = vmatpush1.msra.mxu0 0.0
    %2088 = vmatprep.subr.mxu0 0.0
    %2089 = vmatpush1.msra.mxu0 0.0
    %2090 = vmatprep.subr.mxu0 0.0
    %2091 = vmatpush1.msra.mxu0 0.0
    %2092 = vmatprep.subr.mxu0 0.0
    %2093 = vmatpush1.msra.mxu0 0.0
    %2094 = vmatprep.subr.mxu0 0.0
    %2095 = vmatpush1.msra.mxu0 0.0
    %2096 = vmatprep.subr.mxu0 0.0
    %2097 = vmatpush1.msra.mxu0 0.0
    %2098 = vmatprep.subr.mxu0 0.0
    %2099 = vmatpush1.msra.mxu0 0.0
    %2100 = vmatprep.subr.mxu0 0.0
    %2101 = vmatpush1.msra.mxu0 0.0
    %2102 = vmatprep.subr.mxu0 0.0
    %2103 = vmatpush1.msra.mxu0 0.0
    %2104 = vmatprep.subr.mxu0 0.0
    %2105 = vmatpush1.msra.mxu0 0.0
    %2106 = vmatprep.subr.mxu0 0.0
    %2107 = vmatpush1.msra.mxu0 0.0
    %2108 = vmatprep.mubr.f32.mxu0 0.0
    %2109 = vmatmul.mubr.f32.gmra.mrb[0].mxu0 %v1811
    %v2110 = vpop.f32.mrb[0].mxu0
    %v2111 = vadd.f32 0.0, %v2110
    %v2112 = vpop.f32.mrb[0].mxu0
    %2113 = vdwg.mxu0
    %2114 = vrot.lane.b32.xlu0 %v246, 16
    %v2115 = vpop.permute.xlu0 %2114
    %v2116 = vsel %vm89, %v2115, 0
    %2118 = vmatprep.subr.mxu0 0.0
    %2119 = vmatpush1.msra.mxu0 %v2040
    %2120 = vmatprep.subr.mxu0 0.0
    %2121 = vmatpush1.msra.mxu0 %v2041
    %2122 = vmatprep.subr.mxu0 0.0
    %2123 = vmatpush1.msra.mxu0 0.0
    %2124 = vmatprep.subr.mxu0 0.0
    %2125 = vmatpush1.msra.mxu0 0.0
    %2126 = vmatprep.subr.mxu0 0.0
    %2127 = vmatpush1.msra.mxu0 0.0
    %2128 = vmatprep.subr.mxu0 0.0
    %2129 = vmatpush1.msra.mxu0 0.0
    %2130 = vmatprep.subr.mxu0 0.0
    %2131 = vmatpush1.msra.mxu0 0.0
    %2132 = vmatprep.subr.mxu0 0.0
    %2133 = vmatpush1.msra.mxu0 0.0
    %2134 = vmatprep.subr.mxu0 0.0
    %2135 = vmatpush1.msra.mxu0 0.0
    %2136 = vmatprep.subr.mxu0 0.0
    %2137 = vmatpush1.msra.mxu0 0.0
    %2138 = vmatprep.subr.mxu0 0.0
    %2139 = vmatpush1.msra.mxu0 0.0
    %2140 = vmatprep.subr.mxu0 0.0
    %2141 = vmatpush1.msra.mxu0 0.0
    %2142 = vmatprep.subr.mxu0 0.0
    %2143 = vmatpush1.msra.mxu0 0.0
    %2144 = vmatprep.subr.mxu0 0.0
    %2145 = vmatpush1.msra.mxu0 0.0
    %2146 = vmatprep.subr.mxu0 0.0
    %2147 = vmatpush1.msra.mxu0 0.0
    %2148 = vmatprep.subr.mxu0 0.0
    %2149 = vmatpush1.msra.mxu0 0.0
    %2150 = vmatprep.subr.mxu0 0.0
    %2151 = vmatpush1.msra.mxu0 0.0
    %2152 = vmatprep.subr.mxu0 0.0
    %2153 = vmatpush1.msra.mxu0 0.0
    %2154 = vmatprep.subr.mxu0 0.0
    %2155 = vmatpush1.msra.mxu0 0.0
    %2156 = vmatprep.subr.mxu0 0.0
    %2157 = vmatpush1.msra.mxu0 0.0
    %2158 = vmatprep.subr.mxu0 0.0
    %2159 = vmatpush1.msra.mxu0 0.0
    %2160 = vmatprep.subr.mxu0 0.0
    %2161 = vmatpush1.msra.mxu0 0.0
    %2162 = vmatprep.subr.mxu0 0.0
    %2163 = vmatpush1.msra.mxu0 0.0
    %2164 = vmatprep.subr.mxu0 0.0
    %2165 = vmatpush1.msra.mxu0 0.0
    %2166 = vmatprep.subr.mxu0 0.0
    %2167 = vmatpush1.msra.mxu0 0.0
    %2168 = vmatprep.subr.mxu0 0.0
    %2169 = vmatpush1.msra.mxu0 0.0
    %2170 = vmatprep.subr.mxu0 0.0
    %2171 = vmatpush1.msra.mxu0 0.0
    %2172 = vmatprep.subr.mxu0 0.0
    %2173 = vmatpush1.msra.mxu0 0.0
    %2174 = vmatprep.subr.mxu0 0.0
    %2175 = vmatpush1.msra.mxu0 0.0
    %2176 = vmatprep.subr.mxu0 0.0
    %2177 = vmatpush1.msra.mxu0 0.0
    %2178 = vmatprep.subr.mxu0 0.0
    %2179 = vmatpush1.msra.mxu0 0.0
    %2180 = vmatprep.subr.mxu0 0.0
    %2181 = vmatpush1.msra.mxu0 0.0
    %2182 = vmatprep.mubr.f32.mxu0 0.0
    %2183 = vmatmul.mubr.f32.gmra.mrb[0].mxu0 %v2116
    %v2184 = vpop.f32.mrb[0].mxu0
    %v2185 = vadd.f32 %v2111, %v2184
    %v2186 = vpop.f32.mrb[0].mxu0
    %2187 = vdwg.mxu0
    %v2190 = vunpack.c.l.s4 1983009808
    %v2191 = vunpack.c.0.s8 %v2190
    %v2192 = vlaneseq
    %v2193 = vshrl.u32 %v2192, 7
    %v2194 = vsub.s32 %v2191, %v2193
    %v2195 = vrot.slane %v2185, %v2194
    %2196 = vrot.lane.b32.xlu0 %v2195, 32
    %v2197 = vpop.permute.xlu0 %2196
    %2199 = vst.msk [vmem:[#allocation10 + $0x6] sm:$0x3] %vm332, %v2197
    %v2200 = vld [vmem:[%s86] sm:$0xff]
    %v2201 = vld [vmem:[%s86 + $0x8] sm:$0xff]
    %v2202 = vld [vmem:[%s336] sm:$0xff]
    %v2203 = vld [vmem:[%s336 + $0x8] sm:$0xff]
    %2204 = vmatprep.subr.mxu0 0.0
    %2205 = vmatpush1.msra.mxu0 %v2202
    %2206 = vmatprep.subr.mxu0 0.0
    %2207 = vmatpush1.msra.mxu0 %v2203
    %2208 = vmatprep.subr.mxu0 0.0
    %2209 = vmatpush1.msra.mxu0 0.0
    %2210 = vmatprep.subr.mxu0 0.0
    %2211 = vmatpush1.msra.mxu0 0.0
    %2212 = vmatprep.subr.mxu0 0.0
    %2213 = vmatpush1.msra.mxu0 0.0
    %2214 = vmatprep.subr.mxu0 0.0
    %2215 = vmatpush1.msra.mxu0 0.0
    %2216 = vmatprep.subr.mxu0 0.0
    %2217 = vmatpush1.msra.mxu0 0.0
    %2218 = vmatprep.subr.mxu0 0.0
    %2219 = vmatpush1.msra.mxu0 0.0
    %2220 = vmatprep.subr.mxu0 0.0
    %2221 = vmatpush1.msra.mxu0 0.0
    %2222 = vmatprep.subr.mxu0 0.0
    %2223 = vmatpush1.msra.mxu0 0.0
    %2224 = vmatprep.subr.mxu0 0.0
    %2225 = vmatpush1.msra.mxu0 0.0
    %2226 = vmatprep.subr.mxu0 0.0
    %2227 = vmatpush1.msra.mxu0 0.0
    %2228 = vmatprep.subr.mxu0 0.0
    %2229 = vmatpush1.msra.mxu0 0.0
    %2230 = vmatprep.subr.mxu0 0.0
    %2231 = vmatpush1.msra.mxu0 0.0
    %2232 = vmatprep.subr.mxu0 0.0
    %2233 = vmatpush1.msra.mxu0 0.0
    %2234 = vmatprep.subr.mxu0 0.0
    %2235 = vmatpush1.msra.mxu0 0.0
    %2236 = vmatprep.subr.mxu0 0.0
    %2237 = vmatpush1.msra.mxu0 0.0
    %2238 = vmatprep.subr.mxu0 0.0
    %2239 = vmatpush1.msra.mxu0 0.0
    %2240 = vmatprep.subr.mxu0 0.0
    %2241 = vmatpush1.msra.mxu0 0.0
    %2242 = vmatprep.subr.mxu0 0.0
    %2243 = vmatpush1.msra.mxu0 0.0
    %2244 = vmatprep.subr.mxu0 0.0
    %2245 = vmatpush1.msra.mxu0 0.0
    %2246 = vmatprep.subr.mxu0 0.0
    %2247 = vmatpush1.msra.mxu0 0.0
    %2248 = vmatprep.subr.mxu0 0.0
    %2249 = vmatpush1.msra.mxu0 0.0
    %2250 = vmatprep.subr.mxu0 0.0
    %2251 = vmatpush1.msra.mxu0 0.0
    %2252 = vmatprep.subr.mxu0 0.0
    %2253 = vmatpush1.msra.mxu0 0.0
    %2254 = vmatprep.subr.mxu0 0.0
    %2255 = vmatpush1.msra.mxu0 0.0
    %2256 = vmatprep.subr.mxu0 0.0
    %2257 = vmatpush1.msra.mxu0 0.0
    %2258 = vmatprep.subr.mxu0 0.0
    %2259 = vmatpush1.msra.mxu0 0.0
    %2260 = vmatprep.subr.mxu0 0.0
    %2261 = vmatpush1.msra.mxu0 0.0
    %2262 = vmatprep.subr.mxu0 0.0
    %2263 = vmatpush1.msra.mxu0 0.0
    %2264 = vmatprep.subr.mxu0 0.0
    %2265 = vmatpush1.msra.mxu0 0.0
    %2266 = vmatprep.subr.mxu0 0.0
    %2267 = vmatpush1.msra.mxu0 0.0
    %2268 = vmatprep.mubr.f32.mxu0 0.0
    %2269 = vmatmul.mubr.f32.gmra.mrb[0].mxu0 %v1811
    %v2270 = vpop.f32.mrb[0].mxu0
    %v2271 = vadd.f32 0.0, %v2270
    %v2272 = vpop.f32.mrb[0].mxu0
    %2273 = vdwg.mxu0
    %2274 = vmatprep.subr.mxu0 0.0
    %2275 = vmatpush1.msra.mxu0 %v2200
    %2276 = vmatprep.subr.mxu0 0.0
    %2277 = vmatpush1.msra.mxu0 %v2201
    %2278 = vmatprep.subr.mxu0 0.0
    %2279 = vmatpush1.msra.mxu0 0.0
    %2280 = vmatprep.subr.mxu0 0.0
    %2281 = vmatpush1.msra.mxu0 0.0
    %2282 = vmatprep.subr.mxu0 0.0
    %2283 = vmatpush1.msra.mxu0 0.0
    %2284 = vmatprep.subr.mxu0 0.0
    %2285 = vmatpush1.msra.mxu0 0.0
    %2286 = vmatprep.subr.mxu0 0.0
    %2287 = vmatpush1.msra.mxu0 0.0
    %2288 = vmatprep.subr.mxu0 0.0
    %2289 = vmatpush1.msra.mxu0 0.0
    %2290 = vmatprep.subr.mxu0 0.0
    %2291 = vmatpush1.msra.mxu0 0.0
    %2292 = vmatprep.subr.mxu0 0.0
    %2293 = vmatpush1.msra.mxu0 0.0
    %2294 = vmatprep.subr.mxu0 0.0
    %2295 = vmatpush1.msra.mxu0 0.0
    %2296 = vmatprep.subr.mxu0 0.0
    %2297 = vmatpush1.msra.mxu0 0.0
    %2298 = vmatprep.subr.mxu0 0.0
    %2299 = vmatpush1.msra.mxu0 0.0
    %2300 = vmatprep.subr.mxu0 0.0
    %2301 = vmatpush1.msra.mxu0 0.0
    %2302 = vmatprep.subr.mxu0 0.0
    %2303 = vmatpush1.msra.mxu0 0.0
    %2304 = vmatprep.subr.mxu0 0.0
    %2305 = vmatpush1.msra.mxu0 0.0
    %2306 = vmatprep.subr.mxu0 0.0
    %2307 = vmatpush1.msra.mxu0 0.0
    %2308 = vmatprep.subr.mxu0 0.0
    %2309 = vmatpush1.msra.mxu0 0.0
    %2310 = vmatprep.subr.mxu0 0.0
    %2311 = vmatpush1.msra.mxu0 0.0
    %2312 = vmatprep.subr.mxu0 0.0
    %2313 = vmatpush1.msra.mxu0 0.0
    %2314 = vmatprep.subr.mxu0 0.0
    %2315 = vmatpush1.msra.mxu0 0.0
    %2316 = vmatprep.subr.mxu0 0.0
    %2317 = vmatpush1.msra.mxu0 0.0
    %2318 = vmatprep.subr.mxu0 0.0
    %2319 = vmatpush1.msra.mxu0 0.0
    %2320 = vmatprep.subr.mxu0 0.0
    %2321 = vmatpush1.msra.mxu0 0.0
    %2322 = vmatprep.subr.mxu0 0.0
    %2323 = vmatpush1.msra.mxu0 0.0
    %2324 = vmatprep.subr.mxu0 0.0
    %2325 = vmatpush1.msra.mxu0 0.0
    %2326 = vmatprep.subr.mxu0 0.0
    %2327 = vmatpush1.msra.mxu0 0.0
    %2328 = vmatprep.subr.mxu0 0.0
    %2329 = vmatpush1.msra.mxu0 0.0
    %2330 = vmatprep.subr.mxu0 0.0
    %2331 = vmatpush1.msra.mxu0 0.0
    %2332 = vmatprep.subr.mxu0 0.0
    %2333 = vmatpush1.msra.mxu0 0.0
    %2334 = vmatprep.subr.mxu0 0.0
    %2335 = vmatpush1.msra.mxu0 0.0
    %2336 = vmatprep.subr.mxu0 0.0
    %2337 = vmatpush1.msra.mxu0 0.0
    %2338 = vmatprep.mubr.f32.mxu0 0.0
    %2339 = vmatmul.mubr.f32.gmra.mrb[0].mxu0 %v2116
    %v2340 = vpop.f32.mrb[0].mxu0
    %v2341 = vadd.f32 %v2271, %v2340
    %v2342 = vpop.f32.mrb[0].mxu0
    %2343 = vdwg.mxu0
    %v2346 = vunpack.c.l.s4 1983009808
    %v2347 = vunpack.c.0.s8 %v2346
    %v2348 = vlaneseq
    %v2349 = vshrl.u32 %v2348, 7
    %v2350 = vsub.s32 %v2347, %v2349
    %v2351 = vrot.slane %v2341, %v2350
    %2352 = vrot.lane.b32.xlu0 %v2351, 64
    %v2353 = vpop.permute.xlu0 %2352
    %2355 = vst.msk [vmem:[#allocation10 + $0x6] sm:$0x3] %vm490, %v2353
    %v2356 = vld [vmem:[#allocation8] sm:$0xff]
    %v2357 = vld [vmem:[#allocation8 + $0x8] sm:$0xff]
    %v2358 = vld [vmem:[%s167] sm:$0xff]
    %v2359 = vld [vmem:[%s167 + $0x8] sm:$0xff]
    %2360 = vmatprep.subr.mxu0 0.0
    %2361 = vmatpush1.msra.mxu0 %v2358
    %2362 = vmatprep.subr.mxu0 0.0
    %2363 = vmatpush1.msra.mxu0 %v2359
    %2364 = vmatprep.subr.mxu0 0.0
    %2365 = vmatpush1.msra.mxu0 0.0
    %2366 = vmatprep.subr.mxu0 0.0
    %2367 = vmatpush1.msra.mxu0 0.0
    %2368 = vmatprep.subr.mxu0 0.0
    %2369 = vmatpush1.msra.mxu0 0.0
    %2370 = vmatprep.subr.mxu0 0.0
    %2371 = vmatpush1.msra.mxu0 0.0
    %2372 = vmatprep.subr.mxu0 0.0
    %2373 = vmatpush1.msra.mxu0 0.0
    %2374 = vmatprep.subr.mxu0 0.0
    %2375 = vmatpush1.msra.mxu0 0.0
    %2376 = vmatprep.subr.mxu0 0.0
    %2377 = vmatpush1.msra.mxu0 0.0
    %2378 = vmatprep.subr.mxu0 0.0
    %2379 = vmatpush1.msra.mxu0 0.0
    %2380 = vmatprep.subr.mxu0 0.0
    %2381 = vmatpush1.msra.mxu0 0.0
    %2382 = vmatprep.subr.mxu0 0.0
    %2383 = vmatpush1.msra.mxu0 0.0
    %2384 = vmatprep.subr.mxu0 0.0
    %2385 = vmatpush1.msra.mxu0 0.0
    %2386 = vmatprep.subr.mxu0 0.0
    %2387 = vmatpush1.msra.mxu0 0.0
    %2388 = vmatprep.subr.mxu0 0.0
    %2389 = vmatpush1.msra.mxu0 0.0
    %2390 = vmatprep.subr.mxu0 0.0
    %2391 = vmatpush1.msra.mxu0 0.0
    %2392 = vmatprep.subr.mxu0 0.0
    %2393 = vmatpush1.msra.mxu0 0.0
    %2394 = vmatprep.subr.mxu0 0.0
    %2395 = vmatpush1.msra.mxu0 0.0
    %2396 = vmatprep.subr.mxu0 0.0
    %2397 = vmatpush1.msra.mxu0 0.0
    %2398 = vmatprep.subr.mxu0 0.0
    %2399 = vmatpush1.msra.mxu0 0.0
    %2400 = vmatprep.subr.mxu0 0.0
    %2401 = vmatpush1.msra.mxu0 0.0
    %2402 = vmatprep.subr.mxu0 0.0
    %2403 = vmatpush1.msra.mxu0 0.0
    %2404 = vmatprep.subr.mxu0 0.0
    %2405 = vmatpush1.msra.mxu0 0.0
    %2406 = vmatprep.subr.mxu0 0.0
    %2407 = vmatpush1.msra.mxu0 0.0
    %2408 = vmatprep.subr.mxu0 0.0
    %2409 = vmatpush1.msra.mxu0 0.0
    %2410 = vmatprep.subr.mxu0 0.0
    %2411 = vmatpush1.msra.mxu0 0.0
    %2412 = vmatprep.subr.mxu0 0.0
    %2413 = vmatpush1.msra.mxu0 0.0
    %2414 = vmatprep.subr.mxu0 0.0
    %2415 = vmatpush1.msra.mxu0 0.0
    %2416 = vmatprep.subr.mxu0 0.0
    %2417 = vmatpush1.msra.mxu0 0.0
    %2418 = vmatprep.subr.mxu0 0.0
    %2419 = vmatpush1.msra.mxu0 0.0
    %2420 = vmatprep.subr.mxu0 0.0
    %2421 = vmatpush1.msra.mxu0 0.0
    %2422 = vmatprep.subr.mxu0 0.0
    %2423 = vmatpush1.msra.mxu0 0.0
    %2424 = vmatprep.mubr.f32.mxu0 0.0
    %2425 = vmatmul.mubr.f32.gmra.mrb[0].mxu0 %v2116
    %v2426 = vpop.f32.mrb[0].mxu0
    %v2427 = vadd.f32 0.0, %v2426
    %v2428 = vpop.f32.mrb[0].mxu0
    %2429 = vdwg.mxu0
    %v2430 = vcombine.high %v246, %v246
    %v2431 = vsel %vm89, %v2430, 0
    %2433 = vmatprep.subr.mxu0 0.0
    %2434 = vmatpush1.msra.mxu0 %v2356
    %2435 = vmatprep.subr.mxu0 0.0
    %2436 = vmatpush1.msra.mxu0 %v2357
    %2437 = vmatprep.subr.mxu0 0.0
    %2438 = vmatpush1.msra.mxu0 0.0
    %2439 = vmatprep.subr.mxu0 0.0
    %2440 = vmatpush1.msra.mxu0 0.0
    %2441 = vmatprep.subr.mxu0 0.0
    %2442 = vmatpush1.msra.mxu0 0.0
    %2443 = vmatprep.subr.mxu0 0.0
    %2444 = vmatpush1.msra.mxu0 0.0
    %2445 = vmatprep.subr.mxu0 0.0
    %2446 = vmatpush1.msra.mxu0 0.0
    %2447 = vmatprep.subr.mxu0 0.0
    %2448 = vmatpush1.msra.mxu0 0.0
    %2449 = vmatprep.subr.mxu0 0.0
    %2450 = vmatpush1.msra.mxu0 0.0
    %2451 = vmatprep.subr.mxu0 0.0
    %2452 = vmatpush1.msra.mxu0 0.0
    %2453 = vmatprep.subr.mxu0 0.0
    %2454 = vmatpush1.msra.mxu0 0.0
    %2455 = vmatprep.subr.mxu0 0.0
    %2456 = vmatpush1.msra.mxu0 0.0
    %2457 = vmatprep.subr.mxu0 0.0
    %2458 = vmatpush1.msra.mxu0 0.0
    %2459 = vmatprep.subr.mxu0 0.0
    %2460 = vmatpush1.msra.mxu0 0.0
    %2461 = vmatprep.subr.mxu0 0.0
    %2462 = vmatpush1.msra.mxu0 0.0
    %2463 = vmatprep.subr.mxu0 0.0
    %2464 = vmatpush1.msra.mxu0 0.0
    %2465 = vmatprep.subr.mxu0 0.0
    %2466 = vmatpush1.msra.mxu0 0.0
    %2467 = vmatprep.subr.mxu0 0.0
    %2468 = vmatpush1.msra.mxu0 0.0
    %2469 = vmatprep.subr.mxu0 0.0
    %2470 = vmatpush1.msra.mxu0 0.0
    %2471 = vmatprep.subr.mxu0 0.0
    %2472 = vmatpush1.msra.mxu0 0.0
    %2473 = vmatprep.subr.mxu0 0.0
    %2474 = vmatpush1.msra.mxu0 0.0
    %2475 = vmatprep.subr.mxu0 0.0
    %2476 = vmatpush1.msra.mxu0 0.0
    %2477 = vmatprep.subr.mxu0 0.0
    %2478 = vmatpush1.msra.mxu0 0.0
    %2479 = vmatprep.subr.mxu0 0.0
    %2480 = vmatpush1.msra.mxu0 0.0
    %2481 = vmatprep.subr.mxu0 0.0
    %2482 = vmatpush1.msra.mxu0 0.0
    %2483 = vmatprep.subr.mxu0 0.0
    %2484 = vmatpush1.msra.mxu0 0.0
    %2485 = vmatprep.subr.mxu0 0.0
    %2486 = vmatpush1.msra.mxu0 0.0
    %2487 = vmatprep.subr.mxu0 0.0
    %2488 = vmatpush1.msra.mxu0 0.0
    %2489 = vmatprep.subr.mxu0 0.0
    %2490 = vmatpush1.msra.mxu0 0.0
    %2491 = vmatprep.subr.mxu0 0.0
    %2492 = vmatpush1.msra.mxu0 0.0
    %2493 = vmatprep.subr.mxu0 0.0
    %2494 = vmatpush1.msra.mxu0 0.0
    %2495 = vmatprep.subr.mxu0 0.0
    %2496 = vmatpush1.msra.mxu0 0.0
    %2497 = vmatprep.mubr.f32.mxu0 0.0
    %2498 = vmatmul.mubr.f32.gmra.mrb[0].mxu0 %v2431
    %v2499 = vpop.f32.mrb[0].mxu0
    %v2500 = vadd.f32 %v2427, %v2499
    %v2501 = vpop.f32.mrb[0].mxu0
    %2502 = vdwg.mxu0
    %v2505 = vunpack.c.l.s4 1983009808
    %v2506 = vunpack.c.0.s8 %v2505
    %v2507 = vlaneseq
    %v2508 = vshrl.u32 %v2507, 7
    %v2509 = vsub.s32 %v2506, %v2508
    %v2510 = vrot.slane %v2500, %v2509
    %2511 = vrot.lane.b32.xlu0 %v2510, 96
    %v2512 = vpop.permute.xlu0 %2511
    %2514 = vst.msk [vmem:[#allocation10 + $0x6] sm:$0x3] %vm651, %v2512
    %v2515 = vld [vmem:[%s86] sm:$0xff]
    %v2516 = vld [vmem:[%s86 + $0x8] sm:$0xff]
    %v2517 = vld [vmem:[%s336] sm:$0xff]
    %v2518 = vld [vmem:[%s336 + $0x8] sm:$0xff]
    %2519 = vmatprep.subr.mxu0 0.0
    %2520 = vmatpush1.msra.mxu0 %v2517
    %2521 = vmatprep.subr.mxu0 0.0
    %2522 = vmatpush1.msra.mxu0 %v2518
    %2523 = vmatprep.subr.mxu0 0.0
    %2524 = vmatpush1.msra.mxu0 0.0
    %2525 = vmatprep.subr.mxu0 0.0
    %2526 = vmatpush1.msra.mxu0 0.0
    %2527 = vmatprep.subr.mxu0 0.0
    %2528 = vmatpush1.msra.mxu0 0.0
    %2529 = vmatprep.subr.mxu0 0.0
    %2530 = vmatpush1.msra.mxu0 0.0
    %2531 = vmatprep.subr.mxu0 0.0
    %2532 = vmatpush1.msra.mxu0 0.0
    %2533 = vmatprep.subr.mxu0 0.0
    %2534 = vmatpush1.msra.mxu0 0.0
    %2535 = vmatprep.subr.mxu0 0.0
    %2536 = vmatpush1.msra.mxu0 0.0
    %2537 = vmatprep.subr.mxu0 0.0
    %2538 = vmatpush1.msra.mxu0 0.0
    %2539 = vmatprep.subr.mxu0 0.0
    %2540 = vmatpush1.msra.mxu0 0.0
    %2541 = vmatprep.subr.mxu0 0.0
    %2542 = vmatpush1.msra.mxu0 0.0
    %2543 = vmatprep.subr.mxu0 0.0
    %2544 = vmatpush1.msra.mxu0 0.0
    %2545 = vmatprep.subr.mxu0 0.0
    %2546 = vmatpush1.msra.mxu0 0.0
    %2547 = vmatprep.subr.mxu0 0.0
    %2548 = vmatpush1.msra.mxu0 0.0
    %2549 = vmatprep.subr.mxu0 0.0
    %2550 = vmatpush1.msra.mxu0 0.0
    %2551 = vmatprep.subr.mxu0 0.0
    %2552 = vmatpush1.msra.mxu0 0.0
    %2553 = vmatprep.subr.mxu0 0.0
    %2554 = vmatpush1.msra.mxu0 0.0
    %2555 = vmatprep.subr.mxu0 0.0
    %2556 = vmatpush1.msra.mxu0 0.0
    %2557 = vmatprep.subr.mxu0 0.0
    %2558 = vmatpush1.msra.mxu0 0.0
    %2559 = vmatprep.subr.mxu0 0.0
    %2560 = vmatpush1.msra.mxu0 0.0
    %2561 = vmatprep.subr.mxu0 0.0
    %2562 = vmatpush1.msra.mxu0 0.0
    %2563 = vmatprep.subr.mxu0 0.0
    %2564 = vmatpush1.msra.mxu0 0.0
    %2565 = vmatprep.subr.mxu0 0.0
    %2566 = vmatpush1.msra.mxu0 0.0
    %2567 = vmatprep.subr.mxu0 0.0
    %2568 = vmatpush1.msra.mxu0 0.0
    %2569 = vmatprep.subr.mxu0 0.0
    %2570 = vmatpush1.msra.mxu0 0.0
    %2571 = vmatprep.subr.mxu0 0.0
    %2572 = vmatpush1.msra.mxu0 0.0
    %2573 = vmatprep.subr.mxu0 0.0
    %2574 = vmatpush1.msra.mxu0 0.0
    %2575 = vmatprep.subr.mxu0 0.0
    %2576 = vmatpush1.msra.mxu0 0.0
    %2577 = vmatprep.subr.mxu0 0.0
    %2578 = vmatpush1.msra.mxu0 0.0
    %2579 = vmatprep.subr.mxu0 0.0
    %2580 = vmatpush1.msra.mxu0 0.0
    %2581 = vmatprep.subr.mxu0 0.0
    %2582 = vmatpush1.msra.mxu0 0.0
    %2583 = vmatprep.mubr.f32.mxu0 0.0
    %2584 = vmatmul.mubr.f32.gmra.mrb[0].mxu0 %v2116
    %v2585 = vpop.f32.mrb[0].mxu0
    %v2586 = vadd.f32 0.0, %v2585
    %v2587 = vpop.f32.mrb[0].mxu0
    %2588 = vdwg.mxu0
    %2589 = vmatprep.subr.mxu0 0.0
    %2590 = vmatpush1.msra.mxu0 %v2515
    %2591 = vmatprep.subr.mxu0 0.0
    %2592 = vmatpush1.msra.mxu0 %v2516
    %2593 = vmatprep.subr.mxu0 0.0
    %2594 = vmatpush1.msra.mxu0 0.0
    %2595 = vmatprep.subr.mxu0 0.0
    %2596 = vmatpush1.msra.mxu0 0.0
    %2597 = vmatprep.subr.mxu0 0.0
    %2598 = vmatpush1.msra.mxu0 0.0
    %2599 = vmatprep.subr.mxu0 0.0
    %2600 = vmatpush1.msra.mxu0 0.0
    %2601 = vmatprep.subr.mxu0 0.0
    %2602 = vmatpush1.msra.mxu0 0.0
    %2603 = vmatprep.subr.mxu0 0.0
    %2604 = vmatpush1.msra.mxu0 0.0
    %2605 = vmatprep.subr.mxu0 0.0
    %2606 = vmatpush1.msra.mxu0 0.0
    %2607 = vmatprep.subr.mxu0 0.0
    %2608 = vmatpush1.msra.mxu0 0.0
    %2609 = vmatprep.subr.mxu0 0.0
    %2610 = vmatpush1.msra.mxu0 0.0
    %2611 = vmatprep.subr.mxu0 0.0
    %2612 = vmatpush1.msra.mxu0 0.0
    %2613 = vmatprep.subr.mxu0 0.0
    %2614 = vmatpush1.msra.mxu0 0.0
    %2615 = vmatprep.subr.mxu0 0.0
    %2616 = vmatpush1.msra.mxu0 0.0
    %2617 = vmatprep.subr.mxu0 0.0
    %2618 = vmatpush1.msra.mxu0 0.0
    %2619 = vmatprep.subr.mxu0 0.0
    %2620 = vmatpush1.msra.mxu0 0.0
    %2621 = vmatprep.subr.mxu0 0.0
    %2622 = vmatpush1.msra.mxu0 0.0
    %2623 = vmatprep.subr.mxu0 0.0
    %2624 = vmatpush1.msra.mxu0 0.0
    %2625 = vmatprep.subr.mxu0 0.0
    %2626 = vmatpush1.msra.mxu0 0.0
    %2627 = vmatprep.subr.mxu0 0.0
    %2628 = vmatpush1.msra.mxu0 0.0
    %2629 = vmatprep.subr.mxu0 0.0
    %2630 = vmatpush1.msra.mxu0 0.0
    %2631 = vmatprep.subr.mxu0 0.0
    %2632 = vmatpush1.msra.mxu0 0.0
    %2633 = vmatprep.subr.mxu0 0.0
    %2634 = vmatpush1.msra.mxu0 0.0
    %2635 = vmatprep.subr.mxu0 0.0
    %2636 = vmatpush1.msra.mxu0 0.0
    %2637 = vmatprep.subr.mxu0 0.0
    %2638 = vmatpush1.msra.mxu0 0.0
    %2639 = vmatprep.subr.mxu0 0.0
    %2640 = vmatpush1.msra.mxu0 0.0
    %2641 = vmatprep.subr.mxu0 0.0
    %2642 = vmatpush1.msra.mxu0 0.0
    %2643 = vmatprep.subr.mxu0 0.0
    %2644 = vmatpush1.msra.mxu0 0.0
    %2645 = vmatprep.subr.mxu0 0.0
    %2646 = vmatpush1.msra.mxu0 0.0
    %2647 = vmatprep.subr.mxu0 0.0
    %2648 = vmatpush1.msra.mxu0 0.0
    %2649 = vmatprep.subr.mxu0 0.0
    %2650 = vmatpush1.msra.mxu0 0.0
    %2651 = vmatprep.subr.mxu0 0.0
    %2652 = vmatpush1.msra.mxu0 0.0
    %2653 = vmatprep.mubr.f32.mxu0 0.0
    %2654 = vmatmul.mubr.f32.gmra.mrb[0].mxu0 %v2431
    %v2655 = vpop.f32.mrb[0].mxu0
    %v2656 = vadd.f32 %v2586, %v2655
    %v2657 = vpop.f32.mrb[0].mxu0
    %2658 = vdwg.mxu0
    %2659 = vst.msk [vmem:[#allocation10 + $0x8] sm:$0x3] %vm163, %v2656
    %v2660 = vld [vmem:[#allocation8] sm:$0xff]
    %v2661 = vld [vmem:[#allocation8 + $0x8] sm:$0xff]
    %v2662 = vld [vmem:[%s167] sm:$0xff]
    %v2663 = vld [vmem:[%s167 + $0x8] sm:$0xff]
    %2664 = vmatprep.subr.mxu0 0.0
    %2665 = vmatpush1.msra.mxu0 %v2662
    %2666 = vmatprep.subr.mxu0 0.0
    %2667 = vmatpush1.msra.mxu0 %v2663
    %2668 = vmatprep.subr.mxu0 0.0
    %2669 = vmatpush1.msra.mxu0 0.0
    %2670 = vmatprep.subr.mxu0 0.0
    %2671 = vmatpush1.msra.mxu0 0.0
    %2672 = vmatprep.subr.mxu0 0.0
    %2673 = vmatpush1.msra.mxu0 0.0
    %2674 = vmatprep.subr.mxu0 0.0
    %2675 = vmatpush1.msra.mxu0 0.0
    %2676 = vmatprep.subr.mxu0 0.0
    %2677 = vmatpush1.msra.mxu0 0.0
    %2678 = vmatprep.subr.mxu0 0.0
    %2679 = vmatpush1.msra.mxu0 0.0
    %2680 = vmatprep.subr.mxu0 0.0
    %2681 = vmatpush1.msra.mxu0 0.0
    %2682 = vmatprep.subr.mxu0 0.0
    %2683 = vmatpush1.msra.mxu0 0.0
    %2684 = vmatprep.subr.mxu0 0.0
    %2685 = vmatpush1.msra.mxu0 0.0
    %2686 = vmatprep.subr.mxu0 0.0
    %2687 = vmatpush1.msra.mxu0 0.0
    %2688 = vmatprep.subr.mxu0 0.0
    %2689 = vmatpush1.msra.mxu0 0.0
    %2690 = vmatprep.subr.mxu0 0.0
    %2691 = vmatpush1.msra.mxu0 0.0
    %2692 = vmatprep.subr.mxu0 0.0
    %2693 = vmatpush1.msra.mxu0 0.0
    %2694 = vmatprep.subr.mxu0 0.0
    %2695 = vmatpush1.msra.mxu0 0.0
    %2696 = vmatprep.subr.mxu0 0.0
    %2697 = vmatpush1.msra.mxu0 0.0
    %2698 = vmatprep.subr.mxu0 0.0
    %2699 = vmatpush1.msra.mxu0 0.0
    %2700 = vmatprep.subr.mxu0 0.0
    %2701 = vmatpush1.msra.mxu0 0.0
    %2702 = vmatprep.subr.mxu0 0.0
    %2703 = vmatpush1.msra.mxu0 0.0
    %2704 = vmatprep.subr.mxu0 0.0
    %2705 = vmatpush1.msra.mxu0 0.0
    %2706 = vmatprep.subr.mxu0 0.0
    %2707 = vmatpush1.msra.mxu0 0.0
    %2708 = vmatprep.subr.mxu0 0.0
    %2709 = vmatpush1.msra.mxu0 0.0
    %2710 = vmatprep.subr.mxu0 0.0
    %2711 = vmatpush1.msra.mxu0 0.0
    %2712 = vmatprep.subr.mxu0 0.0
    %2713 = vmatpush1.msra.mxu0 0.0
    %2714 = vmatprep.subr.mxu0 0.0
    %2715 = vmatpush1.msra.mxu0 0.0
    %2716 = vmatprep.subr.mxu0 0.0
    %2717 = vmatpush1.msra.mxu0 0.0
    %2718 = vmatprep.subr.mxu0 0.0
    %2719 = vmatpush1.msra.mxu0 0.0
    %2720 = vmatprep.subr.mxu0 0.0
    %2721 = vmatpush1.msra.mxu0 0.0
    %2722 = vmatprep.subr.mxu0 0.0
    %2723 = vmatpush1.msra.mxu0 0.0
    %2724 = vmatprep.subr.mxu0 0.0
    %2725 = vmatpush1.msra.mxu0 0.0
    %2726 = vmatprep.subr.mxu0 0.0
    %2727 = vmatpush1.msra.mxu0 0.0
    %2728 = vmatprep.mubr.f32.mxu0 0.0
    %2729 = vmatmul.mubr.f32.gmra.mrb[0].mxu0 %v2431
    %v2730 = vpop.f32.mrb[0].mxu0
    %v2731 = vadd.f32 0.0, %v2730
    %v2732 = vpop.f32.mrb[0].mxu0
    %2733 = vdwg.mxu0
    %2734 = vrot.lane.b32.xlu0 %v2430, 112
    %v2735 = vpop.permute.xlu0 %2734
    %v2736 = vsel %vm89, %v2735, 0
    %2738 = vmatprep.subr.mxu0 0.0
    %2739 = vmatpush1.msra.mxu0 %v2660
    %2740 = vmatprep.subr.mxu0 0.0
    %2741 = vmatpush1.msra.mxu0 %v2661
    %2742 = vmatprep.subr.mxu0 0.0
    %2743 = vmatpush1.msra.mxu0 0.0
    %2744 = vmatprep.subr.mxu0 0.0
    %2745 = vmatpush1.msra.mxu0 0.0
    %2746 = vmatprep.subr.mxu0 0.0
    %2747 = vmatpush1.msra.mxu0 0.0
    %2748 = vmatprep.subr.mxu0 0.0
    %2749 = vmatpush1.msra.mxu0 0.0
    %2750 = vmatprep.subr.mxu0 0.0
    %2751 = vmatpush1.msra.mxu0 0.0
    %2752 = vmatprep.subr.mxu0 0.0
    %2753 = vmatpush1.msra.mxu0 0.0
    %2754 = vmatprep.subr.mxu0 0.0
    %2755 = vmatpush1.msra.mxu0 0.0
    %2756 = vmatprep.subr.mxu0 0.0
    %2757 = vmatpush1.msra.mxu0 0.0
    %2758 = vmatprep.subr.mxu0 0.0
    %2759 = vmatpush1.msra.mxu0 0.0
    %2760 = vmatprep.subr.mxu0 0.0
    %2761 = vmatpush1.msra.mxu0 0.0
    %2762 = vmatprep.subr.mxu0 0.0
    %2763 = vmatpush1.msra.mxu0 0.0
    %2764 = vmatprep.subr.mxu0 0.0
    %2765 = vmatpush1.msra.mxu0 0.0
    %2766 = vmatprep.subr.mxu0 0.0
    %2767 = vmatpush1.msra.mxu0 0.0
    %2768 = vmatprep.subr.mxu0 0.0
    %2769 = vmatpush1.msra.mxu0 0.0
    %2770 = vmatprep.subr.mxu0 0.0
    %2771 = vmatpush1.msra.mxu0 0.0
    %2772 = vmatprep.subr.mxu0 0.0
    %2773 = vmatpush1.msra.mxu0 0.0
    %2774 = vmatprep.subr.mxu0 0.0
    %2775 = vmatpush1.msra.mxu0 0.0
    %2776 = vmatprep.subr.mxu0 0.0
    %2777 = vmatpush1.msra.mxu0 0.0
    %2778 = vmatprep.subr.mxu0 0.0
    %2779 = vmatpush1.msra.mxu0 0.0
    %2780 = vmatprep.subr.mxu0 0.0
    %2781 = vmatpush1.msra.mxu0 0.0
    %2782 = vmatprep.subr.mxu0 0.0
    %2783 = vmatpush1.msra.mxu0 0.0
    %2784 = vmatprep.subr.mxu0 0.0
    %2785 = vmatpush1.msra.mxu0 0.0
    %2786 = vmatprep.subr.mxu0 0.0
    %2787 = vmatpush1.msra.mxu0 0.0
    %2788 = vmatprep.subr.mxu0 0.0
    %2789 = vmatpush1.msra.mxu0 0.0
    %2790 = vmatprep.subr.mxu0 0.0
    %2791 = vmatpush1.msra.mxu0 0.0
    %2792 = vmatprep.subr.mxu0 0.0
    %2793 = vmatpush1.msra.mxu0 0.0
    %2794 = vmatprep.subr.mxu0 0.0
    %2795 = vmatpush1.msra.mxu0 0.0
    %2796 = vmatprep.subr.mxu0 0.0
    %2797 = vmatpush1.msra.mxu0 0.0
    %2798 = vmatprep.subr.mxu0 0.0
    %2799 = vmatpush1.msra.mxu0 0.0
    %2800 = vmatprep.subr.mxu0 0.0
    %2801 = vmatpush1.msra.mxu0 0.0
    %2802 = vmatprep.mubr.f32.mxu0 0.0
    %2803 = vmatmul.mubr.f32.gmra.mrb[0].mxu0 %v2736
    %v2804 = vpop.f32.mrb[0].mxu0
    %v2805 = vadd.f32 %v2731, %v2804
    %v2806 = vpop.f32.mrb[0].mxu0
    %2807 = vdwg.mxu0
    %v2810 = vunpack.c.l.s4 1983009808
    %v2811 = vunpack.c.0.s8 %v2810
    %v2812 = vlaneseq
    %v2813 = vshrl.u32 %v2812, 7
    %v2814 = vsub.s32 %v2811, %v2813
    %v2815 = vrot.slane %v2805, %v2814
    %2816 = vrot.lane.b32.xlu0 %v2815, 32
    %v2817 = vpop.permute.xlu0 %2816
    %2819 = vst.msk [vmem:[#allocation10 + $0x8] sm:$0x3] %vm332, %v2817
    %v2820 = vld [vmem:[%s86] sm:$0xff]
    %v2821 = vld [vmem:[%s86 + $0x8] sm:$0xff]
    %v2822 = vld [vmem:[%s336] sm:$0xff]
    %v2823 = vld [vmem:[%s336 + $0x8] sm:$0xff]
    %2824 = vmatprep.subr.mxu0 0.0
    %2825 = vmatpush1.msra.mxu0 %v2822
    %2826 = vmatprep.subr.mxu0 0.0
    %2827 = vmatpush1.msra.mxu0 %v2823
    %2828 = vmatprep.subr.mxu0 0.0
    %2829 = vmatpush1.msra.mxu0 0.0
    %2830 = vmatprep.subr.mxu0 0.0
    %2831 = vmatpush1.msra.mxu0 0.0
    %2832 = vmatprep.subr.mxu0 0.0
    %2833 = vmatpush1.msra.mxu0 0.0
    %2834 = vmatprep.subr.mxu0 0.0
    %2835 = vmatpush1.msra.mxu0 0.0
    %2836 = vmatprep.subr.mxu0 0.0
    %2837 = vmatpush1.msra.mxu0 0.0
    %2838 = vmatprep.subr.mxu0 0.0
    %2839 = vmatpush1.msra.mxu0 0.0
    %2840 = vmatprep.subr.mxu0 0.0
    %2841 = vmatpush1.msra.mxu0 0.0
    %2842 = vmatprep.subr.mxu0 0.0
    %2843 = vmatpush1.msra.mxu0 0.0
    %2844 = vmatprep.subr.mxu0 0.0
    %2845 = vmatpush1.msra.mxu0 0.0
    %2846 = vmatprep.subr.mxu0 0.0
    %2847 = vmatpush1.msra.mxu0 0.0
    %2848 = vmatprep.subr.mxu0 0.0
    %2849 = vmatpush1.msra.mxu0 0.0
    %2850 = vmatprep.subr.mxu0 0.0
    %2851 = vmatpush1.msra.mxu0 0.0
    %2852 = vmatprep.subr.mxu0 0.0
    %2853 = vmatpush1.msra.mxu0 0.0
    %2854 = vmatprep.subr.mxu0 0.0
    %2855 = vmatpush1.msra.mxu0 0.0
    %2856 = vmatprep.subr.mxu0 0.0
    %2857 = vmatpush1.msra.mxu0 0.0
    %2858 = vmatprep.subr.mxu0 0.0
    %2859 = vmatpush1.msra.mxu0 0.0
    %2860 = vmatprep.subr.mxu0 0.0
    %2861 = vmatpush1.msra.mxu0 0.0
    %2862 = vmatprep.subr.mxu0 0.0
    %2863 = vmatpush1.msra.mxu0 0.0
    %2864 = vmatprep.subr.mxu0 0.0
    %2865 = vmatpush1.msra.mxu0 0.0
    %2866 = vmatprep.subr.mxu0 0.0
    %2867 = vmatpush1.msra.mxu0 0.0
    %2868 = vmatprep.subr.mxu0 0.0
    %2869 = vmatpush1.msra.mxu0 0.0
    %2870 = vmatprep.subr.mxu0 0.0
    %2871 = vmatpush1.msra.mxu0 0.0
    %2872 = vmatprep.subr.mxu0 0.0
    %2873 = vmatpush1.msra.mxu0 0.0
    %2874 = vmatprep.subr.mxu0 0.0
    %2875 = vmatpush1.msra.mxu0 0.0
    %2876 = vmatprep.subr.mxu0 0.0
    %2877 = vmatpush1.msra.mxu0 0.0
    %2878 = vmatprep.subr.mxu0 0.0
    %2879 = vmatpush1.msra.mxu0 0.0
    %2880 = vmatprep.subr.mxu0 0.0
    %2881 = vmatpush1.msra.mxu0 0.0
    %2882 = vmatprep.subr.mxu0 0.0
    %2883 = vmatpush1.msra.mxu0 0.0
    %2884 = vmatprep.subr.mxu0 0.0
    %2885 = vmatpush1.msra.mxu0 0.0
    %2886 = vmatprep.subr.mxu0 0.0
    %2887 = vmatpush1.msra.mxu0 0.0
    %2888 = vmatprep.mubr.f32.mxu0 0.0
    %2889 = vmatmul.mubr.f32.gmra.mrb[0].mxu0 %v2431
    %v2890 = vpop.f32.mrb[0].mxu0
    %v2891 = vadd.f32 0.0, %v2890
    %v2892 = vpop.f32.mrb[0].mxu0
    %2893 = vdwg.mxu0
    %2894 = vmatprep.subr.mxu0 0.0
    %2895 = vmatpush1.msra.mxu0 %v2820
    %2896 = vmatprep.subr.mxu0 0.0
    %2897 = vmatpush1.msra.mxu0 %v2821
    %2898 = vmatprep.subr.mxu0 0.0
    %2899 = vmatpush1.msra.mxu0 0.0
    %2900 = vmatprep.subr.mxu0 0.0
    %2901 = vmatpush1.msra.mxu0 0.0
    %2902 = vmatprep.subr.mxu0 0.0
    %2903 = vmatpush1.msra.mxu0 0.0
    %2904 = vmatprep.subr.mxu0 0.0
    %2905 = vmatpush1.msra.mxu0 0.0
    %2906 = vmatprep.subr.mxu0 0.0
    %2907 = vmatpush1.msra.mxu0 0.0
    %2908 = vmatprep.subr.mxu0 0.0
    %2909 = vmatpush1.msra.mxu0 0.0
    %2910 = vmatprep.subr.mxu0 0.0
    %2911 = vmatpush1.msra.mxu0 0.0
    %2912 = vmatprep.subr.mxu0 0.0
    %2913 = vmatpush1.msra.mxu0 0.0
    %2914 = vmatprep.subr.mxu0 0.0
    %2915 = vmatpush1.msra.mxu0 0.0
    %2916 = vmatprep.subr.mxu0 0.0
    %2917 = vmatpush1.msra.mxu0 0.0
    %2918 = vmatprep.subr.mxu0 0.0
    %2919 = vmatpush1.msra.mxu0 0.0
    %2920 = vmatprep.subr.mxu0 0.0
    %2921 = vmatpush1.msra.mxu0 0.0
    %2922 = vmatprep.subr.mxu0 0.0
    %2923 = vmatpush1.msra.mxu0 0.0
    %2924 = vmatprep.subr.mxu0 0.0
    %2925 = vmatpush1.msra.mxu0 0.0
    %2926 = vmatprep.subr.mxu0 0.0
    %2927 = vmatpush1.msra.mxu0 0.0
    %2928 = vmatprep.subr.mxu0 0.0
    %2929 = vmatpush1.msra.mxu0 0.0
    %2930 = vmatprep.subr.mxu0 0.0
    %2931 = vmatpush1.msra.mxu0 0.0
    %2932 = vmatprep.subr.mxu0 0.0
    %2933 = vmatpush1.msra.mxu0 0.0
    %2934 = vmatprep.subr.mxu0 0.0
    %2935 = vmatpush1.msra.mxu0 0.0
    %2936 = vmatprep.subr.mxu0 0.0
    %2937 = vmatpush1.msra.mxu0 0.0
    %2938 = vmatprep.subr.mxu0 0.0
    %2939 = vmatpush1.msra.mxu0 0.0
    %2940 = vmatprep.subr.mxu0 0.0
    %2941 = vmatpush1.msra.mxu0 0.0
    %2942 = vmatprep.subr.mxu0 0.0
    %2943 = vmatpush1.msra.mxu0 0.0
    %2944 = vmatprep.subr.mxu0 0.0
    %2945 = vmatpush1.msra.mxu0 0.0
    %2946 = vmatprep.subr.mxu0 0.0
    %2947 = vmatpush1.msra.mxu0 0.0
    %2948 = vmatprep.subr.mxu0 0.0
    %2949 = vmatpush1.msra.mxu0 0.0
    %2950 = vmatprep.subr.mxu0 0.0
    %2951 = vmatpush1.msra.mxu0 0.0
    %2952 = vmatprep.subr.mxu0 0.0
    %2953 = vmatpush1.msra.mxu0 0.0
    %2954 = vmatprep.subr.mxu0 0.0
    %2955 = vmatpush1.msra.mxu0 0.0
    %2956 = vmatprep.subr.mxu0 0.0
    %2957 = vmatpush1.msra.mxu0 0.0
    %2958 = vmatprep.mubr.f32.mxu0 0.0
    %2959 = vmatmul.mubr.f32.gmra.mrb[0].mxu0 %v2736
    %v2960 = vpop.f32.mrb[0].mxu0
    %v2961 = vadd.f32 %v2891, %v2960
    %v2962 = vpop.f32.mrb[0].mxu0
    %2963 = vdwg.mxu0
    %v2966 = vunpack.c.l.s4 1983009808
    %v2967 = vunpack.c.0.s8 %v2966
    %v2968 = vlaneseq
    %v2969 = vshrl.u32 %v2968, 7
    %v2970 = vsub.s32 %v2967, %v2969
    %v2971 = vrot.slane %v2961, %v2970
    %2972 = vrot.lane.b32.xlu0 %v2971, 64
    %v2973 = vpop.permute.xlu0 %2972
    %2975 = vst.msk [vmem:[#allocation10 + $0x8] sm:$0x3] %vm490, %v2973
    %v2976 = vld [vmem:[#allocation8] sm:$0xff]
    %v2977 = vld [vmem:[#allocation8 + $0x8] sm:$0xff]
    %v2978 = vld [vmem:[%s167] sm:$0xff]
    %v2979 = vld [vmem:[%s167 + $0x8] sm:$0xff]
    %2980 = vmatprep.subr.mxu0 0.0
    %2981 = vmatpush1.msra.mxu0 %v2978
    %2982 = vmatprep.subr.mxu0 0.0
    %2983 = vmatpush1.msra.mxu0 %v2979
    %2984 = vmatprep.subr.mxu0 0.0
    %2985 = vmatpush1.msra.mxu0 0.0
    %2986 = vmatprep.subr.mxu0 0.0
    %2987 = vmatpush1.msra.mxu0 0.0
    %2988 = vmatprep.subr.mxu0 0.0
    %2989 = vmatpush1.msra.mxu0 0.0
    %2990 = vmatprep.subr.mxu0 0.0
    %2991 = vmatpush1.msra.mxu0 0.0
    %2992 = vmatprep.subr.mxu0 0.0
    %2993 = vmatpush1.msra.mxu0 0.0
    %2994 = vmatprep.subr.mxu0 0.0
    %2995 = vmatpush1.msra.mxu0 0.0
    %2996 = vmatprep.subr.mxu0 0.0
    %2997 = vmatpush1.msra.mxu0 0.0
    %2998 = vmatprep.subr.mxu0 0.0
    %2999 = vmatpush1.msra.mxu0 0.0
    %3000 = vmatprep.subr.mxu0 0.0
    %3001 = vmatpush1.msra.mxu0 0.0
    %3002 = vmatprep.subr.mxu0 0.0
    %3003 = vmatpush1.msra.mxu0 0.0
    %3004 = vmatprep.subr.mxu0 0.0
    %3005 = vmatpush1.msra.mxu0 0.0
    %3006 = vmatprep.subr.mxu0 0.0
    %3007 = vmatpush1.msra.mxu0 0.0
    %3008 = vmatprep.subr.mxu0 0.0
    %3009 = vmatpush1.msra.mxu0 0.0
    %3010 = vmatprep.subr.mxu0 0.0
    %3011 = vmatpush1.msra.mxu0 0.0
    %3012 = vmatprep.subr.mxu0 0.0
    %3013 = vmatpush1.msra.mxu0 0.0
    %3014 = vmatprep.subr.mxu0 0.0
    %3015 = vmatpush1.msra.mxu0 0.0
    %3016 = vmatprep.subr.mxu0 0.0
    %3017 = vmatpush1.msra.mxu0 0.0
    %3018 = vmatprep.subr.mxu0 0.0
    %3019 = vmatpush1.msra.mxu0 0.0
    %3020 = vmatprep.subr.mxu0 0.0
    %3021 = vmatpush1.msra.mxu0 0.0
    %3022 = vmatprep.subr.mxu0 0.0
    %3023 = vmatpush1.msra.mxu0 0.0
    %3024 = vmatprep.subr.mxu0 0.0
    %3025 = vmatpush1.msra.mxu0 0.0
    %3026 = vmatprep.subr.mxu0 0.0
    %3027 = vmatpush1.msra.mxu0 0.0
    %3028 = vmatprep.subr.mxu0 0.0
    %3029 = vmatpush1.msra.mxu0 0.0
    %3030 = vmatprep.subr.mxu0 0.0
    %3031 = vmatpush1.msra.mxu0 0.0
    %3032 = vmatprep.subr.mxu0 0.0
    %3033 = vmatpush1.msra.mxu0 0.0
    %3034 = vmatprep.subr.mxu0 0.0
    %3035 = vmatpush1.msra.mxu0 0.0
    %3036 = vmatprep.subr.mxu0 0.0
    %3037 = vmatpush1.msra.mxu0 0.0
    %3038 = vmatprep.subr.mxu0 0.0
    %3039 = vmatpush1.msra.mxu0 0.0
    %3040 = vmatprep.subr.mxu0 0.0
    %3041 = vmatpush1.msra.mxu0 0.0
    %3042 = vmatprep.subr.mxu0 0.0
    %3043 = vmatpush1.msra.mxu0 0.0
    %3044 = vmatprep.mubr.f32.mxu0 0.0
    %3045 = vmatmul.mubr.f32.gmra.mrb[0].mxu0 %v2736
    %v3046 = vpop.f32.mrb[0].mxu0
    %v3047 = vadd.f32 0.0, %v3046
    %v3048 = vpop.f32.mrb[0].mxu0
    %3049 = vdwg.mxu0
    %3050 = vrot.lane.b32.xlu0 %v2430, 96
    %v3051 = vpop.permute.xlu0 %3050
    %v3052 = vsel %vm89, %v3051, 0
    %3054 = vmatprep.subr.mxu0 0.0
    %3055 = vmatpush1.msra.mxu0 %v2976
    %3056 = vmatprep.subr.mxu0 0.0
    %3057 = vmatpush1.msra.mxu0 %v2977
    %3058 = vmatprep.subr.mxu0 0.0
    %3059 = vmatpush1.msra.mxu0 0.0
    %3060 = vmatprep.subr.mxu0 0.0
    %3061 = vmatpush1.msra.mxu0 0.0
    %3062 = vmatprep.subr.mxu0 0.0
    %3063 = vmatpush1.msra.mxu0 0.0
    %3064 = vmatprep.subr.mxu0 0.0
    %3065 = vmatpush1.msra.mxu0 0.0
    %3066 = vmatprep.subr.mxu0 0.0
    %3067 = vmatpush1.msra.mxu0 0.0
    %3068 = vmatprep.subr.mxu0 0.0
    %3069 = vmatpush1.msra.mxu0 0.0
    %3070 = vmatprep.subr.mxu0 0.0
    %3071 = vmatpush1.msra.mxu0 0.0
    %3072 = vmatprep.subr.mxu0 0.0
    %3073 = vmatpush1.msra.mxu0 0.0
    %3074 = vmatprep.subr.mxu0 0.0
    %3075 = vmatpush1.msra.mxu0 0.0
    %3076 = vmatprep.subr.mxu0 0.0
    %3077 = vmatpush1.msra.mxu0 0.0
    %3078 = vmatprep.subr.mxu0 0.0
    %3079 = vmatpush1.msra.mxu0 0.0
    %3080 = vmatprep.subr.mxu0 0.0
    %3081 = vmatpush1.msra.mxu0 0.0
    %3082 = vmatprep.subr.mxu0 0.0
    %3083 = vmatpush1.msra.mxu0 0.0
    %3084 = vmatprep.subr.mxu0 0.0
    %3085 = vmatpush1.msra.mxu0 0.0
    %3086 = vmatprep.subr.mxu0 0.0
    %3087 = vmatpush1.msra.mxu0 0.0
    %3088 = vmatprep.subr.mxu0 0.0
    %3089 = vmatpush1.msra.mxu0 0.0
    %3090 = vmatprep.subr.mxu0 0.0
    %3091 = vmatpush1.msra.mxu0 0.0
    %3092 = vmatprep.subr.mxu0 0.0
    %3093 = vmatpush1.msra.mxu0 0.0
    %3094 = vmatprep.subr.mxu0 0.0
    %3095 = vmatpush1.msra.mxu0 0.0
    %3096 = vmatprep.subr.mxu0 0.0
    %3097 = vmatpush1.msra.mxu0 0.0
    %3098 = vmatprep.subr.mxu0 0.0
    %3099 = vmatpush1.msra.mxu0 0.0
    %3100 = vmatprep.subr.mxu0 0.0
    %3101 = vmatpush1.msra.mxu0 0.0
    %3102 = vmatprep.subr.mxu0 0.0
    %3103 = vmatpush1.msra.mxu0 0.0
    %3104 = vmatprep.subr.mxu0 0.0
    %3105 = vmatpush1.msra.mxu0 0.0
    %3106 = vmatprep.subr.mxu0 0.0
    %3107 = vmatpush1.msra.mxu0 0.0
    %3108 = vmatprep.subr.mxu0 0.0
    %3109 = vmatpush1.msra.mxu0 0.0
    %3110 = vmatprep.subr.mxu0 0.0
    %3111 = vmatpush1.msra.mxu0 0.0
    %3112 = vmatprep.subr.mxu0 0.0
    %3113 = vmatpush1.msra.mxu0 0.0
    %3114 = vmatprep.subr.mxu0 0.0
    %3115 = vmatpush1.msra.mxu0 0.0
    %3116 = vmatprep.subr.mxu0 0.0
    %3117 = vmatpush1.msra.mxu0 0.0
    %3118 = vmatprep.mubr.f32.mxu0 0.0
    %3119 = vmatmul.mubr.f32.gmra.mrb[0].mxu0 %v3052
    %v3120 = vpop.f32.mrb[0].mxu0
    %v3121 = vadd.f32 %v3047, %v3120
    %v3122 = vpop.f32.mrb[0].mxu0
    %3123 = vdwg.mxu0
    %v3126 = vunpack.c.l.s4 1983009808
    %v3127 = vunpack.c.0.s8 %v3126
    %v3128 = vlaneseq
    %v3129 = vshrl.u32 %v3128, 7
    %v3130 = vsub.s32 %v3127, %v3129
    %v3131 = vrot.slane %v3121, %v3130
    %3132 = vrot.lane.b32.xlu0 %v3131, 96
    %v3133 = vpop.permute.xlu0 %3132
    %3135 = vst.msk [vmem:[#allocation10 + $0x8] sm:$0x3] %vm651, %v3133
    %v3136 = vld [vmem:[%s86] sm:$0xff]
    %v3137 = vld [vmem:[%s86 + $0x8] sm:$0xff]
    %v3138 = vld [vmem:[%s336] sm:$0xff]
    %v3139 = vld [vmem:[%s336 + $0x8] sm:$0xff]
    %3140 = vmatprep.subr.mxu0 0.0
    %3141 = vmatpush1.msra.mxu0 %v3138
    %3142 = vmatprep.subr.mxu0 0.0
    %3143 = vmatpush1.msra.mxu0 %v3139
    %3144 = vmatprep.subr.mxu0 0.0
    %3145 = vmatpush1.msra.mxu0 0.0
    %3146 = vmatprep.subr.mxu0 0.0
    %3147 = vmatpush1.msra.mxu0 0.0
    %3148 = vmatprep.subr.mxu0 0.0
    %3149 = vmatpush1.msra.mxu0 0.0
    %3150 = vmatprep.subr.mxu0 0.0
    %3151 = vmatpush1.msra.mxu0 0.0
    %3152 = vmatprep.subr.mxu0 0.0
    %3153 = vmatpush1.msra.mxu0 0.0
    %3154 = vmatprep.subr.mxu0 0.0
    %3155 = vmatpush1.msra.mxu0 0.0
    %3156 = vmatprep.subr.mxu0 0.0
    %3157 = vmatpush1.msra.mxu0 0.0
    %3158 = vmatprep.subr.mxu0 0.0
    %3159 = vmatpush1.msra.mxu0 0.0
    %3160 = vmatprep.subr.mxu0 0.0
    %3161 = vmatpush1.msra.mxu0 0.0
    %3162 = vmatprep.subr.mxu0 0.0
    %3163 = vmatpush1.msra.mxu0 0.0
    %3164 = vmatprep.subr.mxu0 0.0
    %3165 = vmatpush1.msra.mxu0 0.0
    %3166 = vmatprep.subr.mxu0 0.0
    %3167 = vmatpush1.msra.mxu0 0.0
    %3168 = vmatprep.subr.mxu0 0.0
    %3169 = vmatpush1.msra.mxu0 0.0
    %3170 = vmatprep.subr.mxu0 0.0
    %3171 = vmatpush1.msra.mxu0 0.0
    %3172 = vmatprep.subr.mxu0 0.0
    %3173 = vmatpush1.msra.mxu0 0.0
    %3174 = vmatprep.subr.mxu0 0.0
    %3175 = vmatpush1.msra.mxu0 0.0
    %3176 = vmatprep.subr.mxu0 0.0
    %3177 = vmatpush1.msra.mxu0 0.0
    %3178 = vmatprep.subr.mxu0 0.0
    %3179 = vmatpush1.msra.mxu0 0.0
    %3180 = vmatprep.subr.mxu0 0.0
    %3181 = vmatpush1.msra.mxu0 0.0
    %3182 = vmatprep.subr.mxu0 0.0
    %3183 = vmatpush1.msra.mxu0 0.0
    %3184 = vmatprep.subr.mxu0 0.0
    %3185 = vmatpush1.msra.mxu0 0.0
    %3186 = vmatprep.subr.mxu0 0.0
    %3187 = vmatpush1.msra.mxu0 0.0
    %3188 = vmatprep.subr.mxu0 0.0
    %3189 = vmatpush1.msra.mxu0 0.0
    %3190 = vmatprep.subr.mxu0 0.0
    %3191 = vmatpush1.msra.mxu0 0.0
    %3192 = vmatprep.subr.mxu0 0.0
    %3193 = vmatpush1.msra.mxu0 0.0
    %3194 = vmatprep.subr.mxu0 0.0
    %3195 = vmatpush1.msra.mxu0 0.0
    %3196 = vmatprep.subr.mxu0 0.0
    %3197 = vmatpush1.msra.mxu0 0.0
    %3198 = vmatprep.subr.mxu0 0.0
    %3199 = vmatpush1.msra.mxu0 0.0
    %3200 = vmatprep.subr.mxu0 0.0
    %3201 = vmatpush1.msra.mxu0 0.0
    %3202 = vmatprep.subr.mxu0 0.0
    %3203 = vmatpush1.msra.mxu0 0.0
    %3204 = vmatprep.mubr.f32.mxu0 0.0
    %3205 = vmatmul.mubr.f32.gmra.mrb[0].mxu0 %v2736
    %v3206 = vpop.f32.mrb[0].mxu0
    %v3207 = vadd.f32 0.0, %v3206
    %v3208 = vpop.f32.mrb[0].mxu0
    %3209 = vdwg.mxu0
    %3210 = vmatprep.subr.mxu0 0.0
    %3211 = vmatpush1.msra.mxu0 %v3136
    %3212 = vmatprep.subr.mxu0 0.0
    %3213 = vmatpush1.msra.mxu0 %v3137
    %3214 = vmatprep.subr.mxu0 0.0
    %3215 = vmatpush1.msra.mxu0 0.0
    %3216 = vmatprep.subr.mxu0 0.0
    %3217 = vmatpush1.msra.mxu0 0.0
    %3218 = vmatprep.subr.mxu0 0.0
    %3219 = vmatpush1.msra.mxu0 0.0
    %3220 = vmatprep.subr.mxu0 0.0
    %3221 = vmatpush1.msra.mxu0 0.0
    %3222 = vmatprep.subr.mxu0 0.0
    %3223 = vmatpush1.msra.mxu0 0.0
    %3224 = vmatprep.subr.mxu0 0.0
    %3225 = vmatpush1.msra.mxu0 0.0
    %3226 = vmatprep.subr.mxu0 0.0
    %3227 = vmatpush1.msra.mxu0 0.0
    %3228 = vmatprep.subr.mxu0 0.0
    %3229 = vmatpush1.msra.mxu0 0.0
    %3230 = vmatprep.subr.mxu0 0.0
    %3231 = vmatpush1.msra.mxu0 0.0
    %3232 = vmatprep.subr.mxu0 0.0
    %3233 = vmatpush1.msra.mxu0 0.0
    %3234 = vmatprep.subr.mxu0 0.0
    %3235 = vmatpush1.msra.mxu0 0.0
    %3236 = vmatprep.subr.mxu0 0.0
    %3237 = vmatpush1.msra.mxu0 0.0
    %3238 = vmatprep.subr.mxu0 0.0
    %3239 = vmatpush1.msra.mxu0 0.0
    %3240 = vmatprep.subr.mxu0 0.0
    %3241 = vmatpush1.msra.mxu0 0.0
    %3242 = vmatprep.subr.mxu0 0.0
    %3243 = vmatpush1.msra.mxu0 0.0
    %3244 = vmatprep.subr.mxu0 0.0
    %3245 = vmatpush1.msra.mxu0 0.0
    %3246 = vmatprep.subr.mxu0 0.0
    %3247 = vmatpush1.msra.mxu0 0.0
    %3248 = vmatprep.subr.mxu0 0.0
    %3249 = vmatpush1.msra.mxu0 0.0
    %3250 = vmatprep.subr.mxu0 0.0
    %3251 = vmatpush1.msra.mxu0 0.0
    %3252 = vmatprep.subr.mxu0 0.0
    %3253 = vmatpush1.msra.mxu0 0.0
    %3254 = vmatprep.subr.mxu0 0.0
    %3255 = vmatpush1.msra.mxu0 0.0
    %3256 = vmatprep.subr.mxu0 0.0
    %3257 = vmatpush1.msra.mxu0 0.0
    %3258 = vmatprep.subr.mxu0 0.0
    %3259 = vmatpush1.msra.mxu0 0.0
    %3260 = vmatprep.subr.mxu0 0.0
    %3261 = vmatpush1.msra.mxu0 0.0
    %3262 = vmatprep.subr.mxu0 0.0
    %3263 = vmatpush1.msra.mxu0 0.0
    %3264 = vmatprep.subr.mxu0 0.0
    %3265 = vmatpush1.msra.mxu0 0.0
    %3266 = vmatprep.subr.mxu0 0.0
    %3267 = vmatpush1.msra.mxu0 0.0
    %3268 = vmatprep.subr.mxu0 0.0
    %3269 = vmatpush1.msra.mxu0 0.0
    %3270 = vmatprep.subr.mxu0 0.0
    %3271 = vmatpush1.msra.mxu0 0.0
    %3272 = vmatprep.subr.mxu0 0.0
    %3273 = vmatpush1.msra.mxu0 0.0
    %3274 = vmatprep.mubr.f32.mxu0 0.0
    %3275 = vmatmul.mubr.f32.gmra.mrb[0].mxu0 %v3052
    %v3276 = vpop.f32.mrb[0].mxu0
    %v3277 = vadd.f32 %v3207, %v3276
    %v3278 = vpop.f32.mrb[0].mxu0
    %3279 = vdwg.mxu0
    %3280 = vst.msk [vmem:[#allocation10 + $0xa] sm:$0x3] %vm163, %v3277
    %v3281 = vld [vmem:[#allocation8] sm:$0xff]
    %v3282 = vld [vmem:[#allocation8 + $0x8] sm:$0xff]
    %v3283 = vld [vmem:[%s167] sm:$0xff]
    %v3284 = vld [vmem:[%s167 + $0x8] sm:$0xff]
    %3285 = vmatprep.subr.mxu0 0.0
    %3286 = vmatpush1.msra.mxu0 %v3283
    %3287 = vmatprep.subr.mxu0 0.0
    %3288 = vmatpush1.msra.mxu0 %v3284
    %3289 = vmatprep.subr.mxu0 0.0
    %3290 = vmatpush1.msra.mxu0 0.0
    %3291 = vmatprep.subr.mxu0 0.0
    %3292 = vmatpush1.msra.mxu0 0.0
    %3293 = vmatprep.subr.mxu0 0.0
    %3294 = vmatpush1.msra.mxu0 0.0
    %3295 = vmatprep.subr.mxu0 0.0
    %3296 = vmatpush1.msra.mxu0 0.0
    %3297 = vmatprep.subr.mxu0 0.0
    %3298 = vmatpush1.msra.mxu0 0.0
    %3299 = vmatprep.subr.mxu0 0.0
    %3300 = vmatpush1.msra.mxu0 0.0
    %3301 = vmatprep.subr.mxu0 0.0
    %3302 = vmatpush1.msra.mxu0 0.0
    %3303 = vmatprep.subr.mxu0 0.0
    %3304 = vmatpush1.msra.mxu0 0.0
    %3305 = vmatprep.subr.mxu0 0.0
    %3306 = vmatpush1.msra.mxu0 0.0
    %3307 = vmatprep.subr.mxu0 0.0
    %3308 = vmatpush1.msra.mxu0 0.0
    %3309 = vmatprep.subr.mxu0 0.0
    %3310 = vmatpush1.msra.mxu0 0.0
    %3311 = vmatprep.subr.mxu0 0.0
    %3312 = vmatpush1.msra.mxu0 0.0
    %3313 = vmatprep.subr.mxu0 0.0
    %3314 = vmatpush1.msra.mxu0 0.0
    %3315 = vmatprep.subr.mxu0 0.0
    %3316 = vmatpush1.msra.mxu0 0.0
    %3317 = vmatprep.subr.mxu0 0.0
    %3318 = vmatpush1.msra.mxu0 0.0
    %3319 = vmatprep.subr.mxu0 0.0
    %3320 = vmatpush1.msra.mxu0 0.0
    %3321 = vmatprep.subr.mxu0 0.0
    %3322 = vmatpush1.msra.mxu0 0.0
    %3323 = vmatprep.subr.mxu0 0.0
    %3324 = vmatpush1.msra.mxu0 0.0
    %3325 = vmatprep.subr.mxu0 0.0
    %3326 = vmatpush1.msra.mxu0 0.0
    %3327 = vmatprep.subr.mxu0 0.0
    %3328 = vmatpush1.msra.mxu0 0.0
    %3329 = vmatprep.subr.mxu0 0.0
    %3330 = vmatpush1.msra.mxu0 0.0
    %3331 = vmatprep.subr.mxu0 0.0
    %3332 = vmatpush1.msra.mxu0 0.0
    %3333 = vmatprep.subr.mxu0 0.0
    %3334 = vmatpush1.msra.mxu0 0.0
    %3335 = vmatprep.subr.mxu0 0.0
    %3336 = vmatpush1.msra.mxu0 0.0
    %3337 = vmatprep.subr.mxu0 0.0
    %3338 = vmatpush1.msra.mxu0 0.0
    %3339 = vmatprep.subr.mxu0 0.0
    %3340 = vmatpush1.msra.mxu0 0.0
    %3341 = vmatprep.subr.mxu0 0.0
    %3342 = vmatpush1.msra.mxu0 0.0
    %3343 = vmatprep.subr.mxu0 0.0
    %3344 = vmatpush1.msra.mxu0 0.0
    %3345 = vmatprep.subr.mxu0 0.0
    %3346 = vmatpush1.msra.mxu0 0.0
    %3347 = vmatprep.subr.mxu0 0.0
    %3348 = vmatpush1.msra.mxu0 0.0
    %3349 = vmatprep.mubr.f32.mxu0 0.0
    %3350 = vmatmul.mubr.f32.gmra.mrb[0].mxu0 %v3052
    %v3351 = vpop.f32.mrb[0].mxu0
    %v3352 = vadd.f32 0.0, %v3351
    %v3353 = vpop.f32.mrb[0].mxu0
    %3354 = vdwg.mxu0
    %3355 = vrot.lane.b32.xlu0 %v2430, 80
    %v3356 = vpop.permute.xlu0 %3355
    %v3357 = vsel %vm89, %v3356, 0
    %3359 = vmatprep.subr.mxu0 0.0
    %3360 = vmatpush1.msra.mxu0 %v3281
    %3361 = vmatprep.subr.mxu0 0.0
    %3362 = vmatpush1.msra.mxu0 %v3282
    %3363 = vmatprep.subr.mxu0 0.0
    %3364 = vmatpush1.msra.mxu0 0.0
    %3365 = vmatprep.subr.mxu0 0.0
    %3366 = vmatpush1.msra.mxu0 0.0
    %3367 = vmatprep.subr.mxu0 0.0
    %3368 = vmatpush1.msra.mxu0 0.0
    %3369 = vmatprep.subr.mxu0 0.0
    %3370 = vmatpush1.msra.mxu0 0.0
    %3371 = vmatprep.subr.mxu0 0.0
    %3372 = vmatpush1.msra.mxu0 0.0
    %3373 = vmatprep.subr.mxu0 0.0
    %3374 = vmatpush1.msra.mxu0 0.0
    %3375 = vmatprep.subr.mxu0 0.0
    %3376 = vmatpush1.msra.mxu0 0.0
    %3377 = vmatprep.subr.mxu0 0.0
    %3378 = vmatpush1.msra.mxu0 0.0
    %3379 = vmatprep.subr.mxu0 0.0
    %3380 = vmatpush1.msra.mxu0 0.0
    %3381 = vmatprep.subr.mxu0 0.0
    %3382 = vmatpush1.msra.mxu0 0.0
    %3383 = vmatprep.subr.mxu0 0.0
    %3384 = vmatpush1.msra.mxu0 0.0
    %3385 = vmatprep.subr.mxu0 0.0
    %3386 = vmatpush1.msra.mxu0 0.0
    %3387 = vmatprep.subr.mxu0 0.0
    %3388 = vmatpush1.msra.mxu0 0.0
    %3389 = vmatprep.subr.mxu0 0.0
    %3390 = vmatpush1.msra.mxu0 0.0
    %3391 = vmatprep.subr.mxu0 0.0
    %3392 = vmatpush1.msra.mxu0 0.0
    %3393 = vmatprep.subr.mxu0 0.0
    %3394 = vmatpush1.msra.mxu0 0.0
    %3395 = vmatprep.subr.mxu0 0.0
    %3396 = vmatpush1.msra.mxu0 0.0
    %3397 = vmatprep.subr.mxu0 0.0
    %3398 = vmatpush1.msra.mxu0 0.0
    %3399 = vmatprep.subr.mxu0 0.0
    %3400 = vmatpush1.msra.mxu0 0.0
    %3401 = vmatprep.subr.mxu0 0.0
    %3402 = vmatpush1.msra.mxu0 0.0
    %3403 = vmatprep.subr.mxu0 0.0
    %3404 = vmatpush1.msra.mxu0 0.0
    %3405 = vmatprep.subr.mxu0 0.0
    %3406 = vmatpush1.msra.mxu0 0.0
    %3407 = vmatprep.subr.mxu0 0.0
    %3408 = vmatpush1.msra.mxu0 0.0
    %3409 = vmatprep.subr.mxu0 0.0
    %3410 = vmatpush1.msra.mxu0 0.0
    %3411 = vmatprep.subr.mxu0 0.0
    %3412 = vmatpush1.msra.mxu0 0.0
    %3413 = vmatprep.subr.mxu0 0.0
    %3414 = vmatpush1.msra.mxu0 0.0
    %3415 = vmatprep.subr.mxu0 0.0
    %3416 = vmatpush1.msra.mxu0 0.0
    %3417 = vmatprep.subr.mxu0 0.0
    %3418 = vmatpush1.msra.mxu0 0.0
    %3419 = vmatprep.subr.mxu0 0.0
    %3420 = vmatpush1.msra.mxu0 0.0
    %3421 = vmatprep.subr.mxu0 0.0
    %3422 = vmatpush1.msra.mxu0 0.0
    %3423 = vmatprep.mubr.f32.mxu0 0.0
    %3424 = vmatmul.mubr.f32.gmra.mrb[0].mxu0 %v3357
    %v3425 = vpop.f32.mrb[0].mxu0
    %v3426 = vadd.f32 %v3352, %v3425
    %v3427 = vpop.f32.mrb[0].mxu0
    %3428 = vdwg.mxu0
    %v3431 = vunpack.c.l.s4 1983009808
    %v3432 = vunpack.c.0.s8 %v3431
    %v3433 = vlaneseq
    %v3434 = vshrl.u32 %v3433, 7
    %v3435 = vsub.s32 %v3432, %v3434
    %v3436 = vrot.slane %v3426, %v3435
    %3437 = vrot.lane.b32.xlu0 %v3436, 32
    %v3438 = vpop.permute.xlu0 %3437
    %3440 = vst.msk [vmem:[#allocation10 + $0xa] sm:$0x3] %vm332, %v3438
    %v3441 = vld [vmem:[%s86] sm:$0xff]
    %v3442 = vld [vmem:[%s86 + $0x8] sm:$0xff]
    %v3443 = vld [vmem:[%s336] sm:$0xff]
    %v3444 = vld [vmem:[%s336 + $0x8] sm:$0xff]
    %3445 = vmatprep.subr.mxu0 0.0
    %3446 = vmatpush1.msra.mxu0 %v3443
    %3447 = vmatprep.subr.mxu0 0.0
    %3448 = vmatpush1.msra.mxu0 %v3444
    %3449 = vmatprep.subr.mxu0 0.0
    %3450 = vmatpush1.msra.mxu0 0.0
    %3451 = vmatprep.subr.mxu0 0.0
    %3452 = vmatpush1.msra.mxu0 0.0
    %3453 = vmatprep.subr.mxu0 0.0
    %3454 = vmatpush1.msra.mxu0 0.0
    %3455 = vmatprep.subr.mxu0 0.0
    %3456 = vmatpush1.msra.mxu0 0.0
    %3457 = vmatprep.subr.mxu0 0.0
    %3458 = vmatpush1.msra.mxu0 0.0
    %3459 = vmatprep.subr.mxu0 0.0
    %3460 = vmatpush1.msra.mxu0 0.0
    %3461 = vmatprep.subr.mxu0 0.0
    %3462 = vmatpush1.msra.mxu0 0.0
    %3463 = vmatprep.subr.mxu0 0.0
    %3464 = vmatpush1.msra.mxu0 0.0
    %3465 = vmatprep.subr.mxu0 0.0
    %3466 = vmatpush1.msra.mxu0 0.0
    %3467 = vmatprep.subr.mxu0 0.0
    %3468 = vmatpush1.msra.mxu0 0.0
    %3469 = vmatprep.subr.mxu0 0.0
    %3470 = vmatpush1.msra.mxu0 0.0
    %3471 = vmatprep.subr.mxu0 0.0
    %3472 = vmatpush1.msra.mxu0 0.0
    %3473 = vmatprep.subr.mxu0 0.0
    %3474 = vmatpush1.msra.mxu0 0.0
    %3475 = vmatprep.subr.mxu0 0.0
    %3476 = vmatpush1.msra.mxu0 0.0
    %3477 = vmatprep.subr.mxu0 0.0
    %3478 = vmatpush1.msra.mxu0 0.0
    %3479 = vmatprep.subr.mxu0 0.0
    %3480 = vmatpush1.msra.mxu0 0.0
    %3481 = vmatprep.subr.mxu0 0.0
    %3482 = vmatpush1.msra.mxu0 0.0
    %3483 = vmatprep.subr.mxu0 0.0
    %3484 = vmatpush1.msra.mxu0 0.0
    %3485 = vmatprep.subr.mxu0 0.0
    %3486 = vmatpush1.msra.mxu0 0.0
    %3487 = vmatprep.subr.mxu0 0.0
    %3488 = vmatpush1.msra.mxu0 0.0
    %3489 = vmatprep.subr.mxu0 0.0
    %3490 = vmatpush1.msra.mxu0 0.0
    %3491 = vmatprep.subr.mxu0 0.0
    %3492 = vmatpush1.msra.mxu0 0.0
    %3493 = vmatprep.subr.mxu0 0.0
    %3494 = vmatpush1.msra.mxu0 0.0
    %3495 = vmatprep.subr.mxu0 0.0
    %3496 = vmatpush1.msra.mxu0 0.0
    %3497 = vmatprep.subr.mxu0 0.0
    %3498 = vmatpush1.msra.mxu0 0.0
    %3499 = vmatprep.subr.mxu0 0.0
    %3500 = vmatpush1.msra.mxu0 0.0
    %3501 = vmatprep.subr.mxu0 0.0
    %3502 = vmatpush1.msra.mxu0 0.0
    %3503 = vmatprep.subr.mxu0 0.0
    %3504 = vmatpush1.msra.mxu0 0.0
    %3505 = vmatprep.subr.mxu0 0.0
    %3506 = vmatpush1.msra.mxu0 0.0
    %3507 = vmatprep.subr.mxu0 0.0
    %3508 = vmatpush1.msra.mxu0 0.0
    %3509 = vmatprep.mubr.f32.mxu0 0.0
    %3510 = vmatmul.mubr.f32.gmra.mrb[0].mxu0 %v3052
    %v3511 = vpop.f32.mrb[0].mxu0
    %v3512 = vadd.f32 0.0, %v3511
    %v3513 = vpop.f32.mrb[0].mxu0
    %3514 = vdwg.mxu0
    %3515 = vmatprep.subr.mxu0 0.0
    %3516 = vmatpush1.msra.mxu0 %v3441
    %3517 = vmatprep.subr.mxu0 0.0
    %3518 = vmatpush1.msra.mxu0 %v3442
    %3519 = vmatprep.subr.mxu0 0.0
    %3520 = vmatpush1.msra.mxu0 0.0
    %3521 = vmatprep.subr.mxu0 0.0
    %3522 = vmatpush1.msra.mxu0 0.0
    %3523 = vmatprep.subr.mxu0 0.0
    %3524 = vmatpush1.msra.mxu0 0.0
    %3525 = vmatprep.subr.mxu0 0.0
    %3526 = vmatpush1.msra.mxu0 0.0
    %3527 = vmatprep.subr.mxu0 0.0
    %3528 = vmatpush1.msra.mxu0 0.0
    %3529 = vmatprep.subr.mxu0 0.0
    %3530 = vmatpush1.msra.mxu0 0.0
    %3531 = vmatprep.subr.mxu0 0.0
    %3532 = vmatpush1.msra.mxu0 0.0
    %3533 = vmatprep.subr.mxu0 0.0
    %3534 = vmatpush1.msra.mxu0 0.0
    %3535 = vmatprep.subr.mxu0 0.0
    %3536 = vmatpush1.msra.mxu0 0.0
    %3537 = vmatprep.subr.mxu0 0.0
    %3538 = vmatpush1.msra.mxu0 0.0
    %3539 = vmatprep.subr.mxu0 0.0
    %3540 = vmatpush1.msra.mxu0 0.0
    %3541 = vmatprep.subr.mxu0 0.0
    %3542 = vmatpush1.msra.mxu0 0.0
    %3543 = vmatprep.subr.mxu0 0.0
    %3544 = vmatpush1.msra.mxu0 0.0
    %3545 = vmatprep.subr.mxu0 0.0
    %3546 = vmatpush1.msra.mxu0 0.0
    %3547 = vmatprep.subr.mxu0 0.0
    %3548 = vmatpush1.msra.mxu0 0.0
    %3549 = vmatprep.subr.mxu0 0.0
    %3550 = vmatpush1.msra.mxu0 0.0
    %3551 = vmatprep.subr.mxu0 0.0
    %3552 = vmatpush1.msra.mxu0 0.0
    %3553 = vmatprep.subr.mxu0 0.0
    %3554 = vmatpush1.msra.mxu0 0.0
    %3555 = vmatprep.subr.mxu0 0.0
    %3556 = vmatpush1.msra.mxu0 0.0
    %3557 = vmatprep.subr.mxu0 0.0
    %3558 = vmatpush1.msra.mxu0 0.0
    %3559 = vmatprep.subr.mxu0 0.0
    %3560 = vmatpush1.msra.mxu0 0.0
    %3561 = vmatprep.subr.mxu0 0.0
    %3562 = vmatpush1.msra.mxu0 0.0
    %3563 = vmatprep.subr.mxu0 0.0
    %3564 = vmatpush1.msra.mxu0 0.0
    %3565 = vmatprep.subr.mxu0 0.0
    %3566 = vmatpush1.msra.mxu0 0.0
    %3567 = vmatprep.subr.mxu0 0.0
    %3568 = vmatpush1.msra.mxu0 0.0
    %3569 = vmatprep.subr.mxu0 0.0
    %3570 = vmatpush1.msra.mxu0 0.0
    %3571 = vmatprep.subr.mxu0 0.0
    %3572 = vmatpush1.msra.mxu0 0.0
    %3573 = vmatprep.subr.mxu0 0.0
    %3574 = vmatpush1.msra.mxu0 0.0
    %3575 = vmatprep.subr.mxu0 0.0
    %3576 = vmatpush1.msra.mxu0 0.0
    %3577 = vmatprep.subr.mxu0 0.0
    %3578 = vmatpush1.msra.mxu0 0.0
    %3579 = vmatprep.mubr.f32.mxu0 0.0
    %3580 = vmatmul.mubr.f32.gmra.mrb[0].mxu0 %v3357
    %v3581 = vpop.f32.mrb[0].mxu0
    %v3582 = vadd.f32 %v3512, %v3581
    %v3583 = vpop.f32.mrb[0].mxu0
    %3584 = vdwg.mxu0
    %v3587 = vunpack.c.l.s4 1983009808
    %v3588 = vunpack.c.0.s8 %v3587
    %v3589 = vlaneseq
    %v3590 = vshrl.u32 %v3589, 7
    %v3591 = vsub.s32 %v3588, %v3590
    %v3592 = vrot.slane %v3582, %v3591
    %3593 = vrot.lane.b32.xlu0 %v3592, 64
    %v3594 = vpop.permute.xlu0 %3593
    %3596 = vst.msk [vmem:[#allocation10 + $0xa] sm:$0x3] %vm490, %v3594
    %v3597 = vld [vmem:[#allocation8] sm:$0xff]
    %v3598 = vld [vmem:[#allocation8 + $0x8] sm:$0xff]
    %v3599 = vld [vmem:[%s167] sm:$0xff]
    %v3600 = vld [vmem:[%s167 + $0x8] sm:$0xff]
    %3601 = vmatprep.subr.mxu0 0.0
    %3602 = vmatpush1.msra.mxu0 %v3599
    %3603 = vmatprep.subr.mxu0 0.0
    %3604 = vmatpush1.msra.mxu0 %v3600
    %3605 = vmatprep.subr.mxu0 0.0
    %3606 = vmatpush1.msra.mxu0 0.0
    %3607 = vmatprep.subr.mxu0 0.0
    %3608 = vmatpush1.msra.mxu0 0.0
    %3609 = vmatprep.subr.mxu0 0.0
    %3610 = vmatpush1.msra.mxu0 0.0
    %3611 = vmatprep.subr.mxu0 0.0
    %3612 = vmatpush1.msra.mxu0 0.0
    %3613 = vmatprep.subr.mxu0 0.0
    %3614 = vmatpush1.msra.mxu0 0.0
    %3615 = vmatprep.subr.mxu0 0.0
    %3616 = vmatpush1.msra.mxu0 0.0
    %3617 = vmatprep.subr.mxu0 0.0
    %3618 = vmatpush1.msra.mxu0 0.0
    %3619 = vmatprep.subr.mxu0 0.0
    %3620 = vmatpush1.msra.mxu0 0.0
    %3621 = vmatprep.subr.mxu0 0.0
    %3622 = vmatpush1.msra.mxu0 0.0
    %3623 = vmatprep.subr.mxu0 0.0
    %3624 = vmatpush1.msra.mxu0 0.0
    %3625 = vmatprep.subr.mxu0 0.0
    %3626 = vmatpush1.msra.mxu0 0.0
    %3627 = vmatprep.subr.mxu0 0.0
    %3628 = vmatpush1.msra.mxu0 0.0
    %3629 = vmatprep.subr.mxu0 0.0
    %3630 = vmatpush1.msra.mxu0 0.0
    %3631 = vmatprep.subr.mxu0 0.0
    %3632 = vmatpush1.msra.mxu0 0.0
    %3633 = vmatprep.subr.mxu0 0.0
    %3634 = vmatpush1.msra.mxu0 0.0
    %3635 = vmatprep.subr.mxu0 0.0
    %3636 = vmatpush1.msra.mxu0 0.0
    %3637 = vmatprep.subr.mxu0 0.0
    %3638 = vmatpush1.msra.mxu0 0.0
    %3639 = vmatprep.subr.mxu0 0.0
    %3640 = vmatpush1.msra.mxu0 0.0
    %3641 = vmatprep.subr.mxu0 0.0
    %3642 = vmatpush1.msra.mxu0 0.0
    %3643 = vmatprep.subr.mxu0 0.0
    %3644 = vmatpush1.msra.mxu0 0.0
    %3645 = vmatprep.subr.mxu0 0.0
    %3646 = vmatpush1.msra.mxu0 0.0
    %3647 = vmatprep.subr.mxu0 0.0
    %3648 = vmatpush1.msra.mxu0 0.0
    %3649 = vmatprep.subr.mxu0 0.0
    %3650 = vmatpush1.msra.mxu0 0.0
    %3651 = vmatprep.subr.mxu0 0.0
    %3652 = vmatpush1.msra.mxu0 0.0
    %3653 = vmatprep.subr.mxu0 0.0
    %3654 = vmatpush1.msra.mxu0 0.0
    %3655 = vmatprep.subr.mxu0 0.0
    %3656 = vmatpush1.msra.mxu0 0.0
    %3657 = vmatprep.subr.mxu0 0.0
    %3658 = vmatpush1.msra.mxu0 0.0
    %3659 = vmatprep.subr.mxu0 0.0
    %3660 = vmatpush1.msra.mxu0 0.0
    %3661 = vmatprep.subr.mxu0 0.0
    %3662 = vmatpush1.msra.mxu0 0.0
    %3663 = vmatprep.subr.mxu0 0.0
    %3664 = vmatpush1.msra.mxu0 0.0
    %3665 = vmatprep.mubr.f32.mxu0 0.0
    %3666 = vmatmul.mubr.f32.gmra.mrb[0].mxu0 %v3357
    %v3667 = vpop.f32.mrb[0].mxu0
    %v3668 = vadd.f32 0.0, %v3667
    %v3669 = vpop.f32.mrb[0].mxu0
    %3670 = vdwg.mxu0
    %3671 = vrot.lane.b32.xlu0 %v2430, 64
    %v3672 = vpop.permute.xlu0 %3671
    %v3673 = vsel %vm89, %v3672, 0
    %3675 = vmatprep.subr.mxu0 0.0
    %3676 = vmatpush1.msra.mxu0 %v3597
    %3677 = vmatprep.subr.mxu0 0.0
    %3678 = vmatpush1.msra.mxu0 %v3598
    %3679 = vmatprep.subr.mxu0 0.0
    %3680 = vmatpush1.msra.mxu0 0.0
    %3681 = vmatprep.subr.mxu0 0.0
    %3682 = vmatpush1.msra.mxu0 0.0
    %3683 = vmatprep.subr.mxu0 0.0
    %3684 = vmatpush1.msra.mxu0 0.0
    %3685 = vmatprep.subr.mxu0 0.0
    %3686 = vmatpush1.msra.mxu0 0.0
    %3687 = vmatprep.subr.mxu0 0.0
    %3688 = vmatpush1.msra.mxu0 0.0
    %3689 = vmatprep.subr.mxu0 0.0
    %3690 = vmatpush1.msra.mxu0 0.0
    %3691 = vmatprep.subr.mxu0 0.0
    %3692 = vmatpush1.msra.mxu0 0.0
    %3693 = vmatprep.subr.mxu0 0.0
    %3694 = vmatpush1.msra.mxu0 0.0
    %3695 = vmatprep.subr.mxu0 0.0
    %3696 = vmatpush1.msra.mxu0 0.0
    %3697 = vmatprep.subr.mxu0 0.0
    %3698 = vmatpush1.msra.mxu0 0.0
    %3699 = vmatprep.subr.mxu0 0.0
    %3700 = vmatpush1.msra.mxu0 0.0
    %3701 = vmatprep.subr.mxu0 0.0
    %3702 = vmatpush1.msra.mxu0 0.0
    %3703 = vmatprep.subr.mxu0 0.0
    %3704 = vmatpush1.msra.mxu0 0.0
    %3705 = vmatprep.subr.mxu0 0.0
    %3706 = vmatpush1.msra.mxu0 0.0
    %3707 = vmatprep.subr.mxu0 0.0
    %3708 = vmatpush1.msra.mxu0 0.0
    %3709 = vmatprep.subr.mxu0 0.0
    %3710 = vmatpush1.msra.mxu0 0.0
    %3711 = vmatprep.subr.mxu0 0.0
    %3712 = vmatpush1.msra.mxu0 0.0
    %3713 = vmatprep.subr.mxu0 0.0
    %3714 = vmatpush1.msra.mxu0 0.0
    %3715 = vmatprep.subr.mxu0 0.0
    %3716 = vmatpush1.msra.mxu0 0.0
    %3717 = vmatprep.subr.mxu0 0.0
    %3718 = vmatpush1.msra.mxu0 0.0
    %3719 = vmatprep.subr.mxu0 0.0
    %3720 = vmatpush1.msra.mxu0 0.0
    %3721 = vmatprep.subr.mxu0 0.0
    %3722 = vmatpush1.msra.mxu0 0.0
    %3723 = vmatprep.subr.mxu0 0.0
    %3724 = vmatpush1.msra.mxu0 0.0
    %3725 = vmatprep.subr.mxu0 0.0
    %3726 = vmatpush1.msra.mxu0 0.0
    %3727 = vmatprep.subr.mxu0 0.0
    %3728 = vmatpush1.msra.mxu0 0.0
    %3729 = vmatprep.subr.mxu0 0.0
    %3730 = vmatpush1.msra.mxu0 0.0
    %3731 = vmatprep.subr.mxu0 0.0
    %3732 = vmatpush1.msra.mxu0 0.0
    %3733 = vmatprep.subr.mxu0 0.0
    %3734 = vmatpush1.msra.mxu0 0.0
    %3735 = vmatprep.subr.mxu0 0.0
    %3736 = vmatpush1.msra.mxu0 0.0
    %3737 = vmatprep.subr.mxu0 0.0
    %3738 = vmatpush1.msra.mxu0 0.0
    %3739 = vmatprep.mubr.f32.mxu0 0.0
    %3740 = vmatmul.mubr.f32.gmra.mrb[0].mxu0 %v3673
    %v3741 = vpop.f32.mrb[0].mxu0
    %v3742 = vadd.f32 %v3668, %v3741
    %v3743 = vpop.f32.mrb[0].mxu0
    %3744 = vdwg.mxu0
    %v3747 = vunpack.c.l.s4 1983009808
    %v3748 = vunpack.c.0.s8 %v3747
    %v3749 = vlaneseq
    %v3750 = vshrl.u32 %v3749, 7
    %v3751 = vsub.s32 %v3748, %v3750
    %v3752 = vrot.slane %v3742, %v3751
    %3753 = vrot.lane.b32.xlu0 %v3752, 96
    %v3754 = vpop.permute.xlu0 %3753
    %3756 = vst.msk [vmem:[#allocation10 + $0xa] sm:$0x3] %vm651, %v3754
    %v3757 = vld [vmem:[%s86] sm:$0xff]
    %v3758 = vld [vmem:[%s86 + $0x8] sm:$0xff]
    %v3759 = vld [vmem:[%s336] sm:$0xff]
    %v3760 = vld [vmem:[%s336 + $0x8] sm:$0xff]
    %3761 = vmatprep.subr.mxu0 0.0
    %3762 = vmatpush1.msra.mxu0 %v3759
    %3763 = vmatprep.subr.mxu0 0.0
    %3764 = vmatpush1.msra.mxu0 %v3760
    %3765 = vmatprep.subr.mxu0 0.0
    %3766 = vmatpush1.msra.mxu0 0.0
    %3767 = vmatprep.subr.mxu0 0.0
    %3768 = vmatpush1.msra.mxu0 0.0
    %3769 = vmatprep.subr.mxu0 0.0
    %3770 = vmatpush1.msra.mxu0 0.0
    %3771 = vmatprep.subr.mxu0 0.0
    %3772 = vmatpush1.msra.mxu0 0.0
    %3773 = vmatprep.subr.mxu0 0.0
    %3774 = vmatpush1.msra.mxu0 0.0
    %3775 = vmatprep.subr.mxu0 0.0
    %3776 = vmatpush1.msra.mxu0 0.0
    %3777 = vmatprep.subr.mxu0 0.0
    %3778 = vmatpush1.msra.mxu0 0.0
    %3779 = vmatprep.subr.mxu0 0.0
    %3780 = vmatpush1.msra.mxu0 0.0
    %3781 = vmatprep.subr.mxu0 0.0
    %3782 = vmatpush1.msra.mxu0 0.0
    %3783 = vmatprep.subr.mxu0 0.0
    %3784 = vmatpush1.msra.mxu0 0.0
    %3785 = vmatprep.subr.mxu0 0.0
    %3786 = vmatpush1.msra.mxu0 0.0
    %3787 = vmatprep.subr.mxu0 0.0
    %3788 = vmatpush1.msra.mxu0 0.0
    %3789 = vmatprep.subr.mxu0 0.0
    %3790 = vmatpush1.msra.mxu0 0.0
    %3791 = vmatprep.subr.mxu0 0.0
    %3792 = vmatpush1.msra.mxu0 0.0
    %3793 = vmatprep.subr.mxu0 0.0
    %3794 = vmatpush1.msra.mxu0 0.0
    %3795 = vmatprep.subr.mxu0 0.0
    %3796 = vmatpush1.msra.mxu0 0.0
    %3797 = vmatprep.subr.mxu0 0.0
    %3798 = vmatpush1.msra.mxu0 0.0
    %3799 = vmatprep.subr.mxu0 0.0
    %3800 = vmatpush1.msra.mxu0 0.0
    %3801 = vmatprep.subr.mxu0 0.0
    %3802 = vmatpush1.msra.mxu0 0.0
    %3803 = vmatprep.subr.mxu0 0.0
    %3804 = vmatpush1.msra.mxu0 0.0
    %3805 = vmatprep.subr.mxu0 0.0
    %3806 = vmatpush1.msra.mxu0 0.0
    %3807 = vmatprep.subr.mxu0 0.0
    %3808 = vmatpush1.msra.mxu0 0.0
    %3809 = vmatprep.subr.mxu0 0.0
    %3810 = vmatpush1.msra.mxu0 0.0
    %3811 = vmatprep.subr.mxu0 0.0
    %3812 = vmatpush1.msra.mxu0 0.0
    %3813 = vmatprep.subr.mxu0 0.0
    %3814 = vmatpush1.msra.mxu0 0.0
    %3815 = vmatprep.subr.mxu0 0.0
    %3816 = vmatpush1.msra.mxu0 0.0
    %3817 = vmatprep.subr.mxu0 0.0
    %3818 = vmatpush1.msra.mxu0 0.0
    %3819 = vmatprep.subr.mxu0 0.0
    %3820 = vmatpush1.msra.mxu0 0.0
    %3821 = vmatprep.subr.mxu0 0.0
    %3822 = vmatpush1.msra.mxu0 0.0
    %3823 = vmatprep.subr.mxu0 0.0
    %3824 = vmatpush1.msra.mxu0 0.0
    %3825 = vmatprep.mubr.f32.mxu0 0.0
    %3826 = vmatmul.mubr.f32.gmra.mrb[0].mxu0 %v3357
    %v3827 = vpop.f32.mrb[0].mxu0
    %v3828 = vadd.f32 0.0, %v3827
    %v3829 = vpop.f32.mrb[0].mxu0
    %3830 = vdwg.mxu0
    %3831 = vmatprep.subr.mxu0 0.0
    %3832 = vmatpush1.msra.mxu0 %v3757
    %3833 = vmatprep.subr.mxu0 0.0
    %3834 = vmatpush1.msra.mxu0 %v3758
    %3835 = vmatprep.subr.mxu0 0.0
    %3836 = vmatpush1.msra.mxu0 0.0
    %3837 = vmatprep.subr.mxu0 0.0
    %3838 = vmatpush1.msra.mxu0 0.0
    %3839 = vmatprep.subr.mxu0 0.0
    %3840 = vmatpush1.msra.mxu0 0.0
    %3841 = vmatprep.subr.mxu0 0.0
    %3842 = vmatpush1.msra.mxu0 0.0
    %3843 = vmatprep.subr.mxu0 0.0
    %3844 = vmatpush1.msra.mxu0 0.0
    %3845 = vmatprep.subr.mxu0 0.0
    %3846 = vmatpush1.msra.mxu0 0.0
    %3847 = vmatprep.subr.mxu0 0.0
    %3848 = vmatpush1.msra.mxu0 0.0
    %3849 = vmatprep.subr.mxu0 0.0
    %3850 = vmatpush1.msra.mxu0 0.0
    %3851 = vmatprep.subr.mxu0 0.0
    %3852 = vmatpush1.msra.mxu0 0.0
    %3853 = vmatprep.subr.mxu0 0.0
    %3854 = vmatpush1.msra.mxu0 0.0
    %3855 = vmatprep.subr.mxu0 0.0
    %3856 = vmatpush1.msra.mxu0 0.0
    %3857 = vmatprep.subr.mxu0 0.0
    %3858 = vmatpush1.msra.mxu0 0.0
    %3859 = vmatprep.subr.mxu0 0.0
    %3860 = vmatpush1.msra.mxu0 0.0
    %3861 = vmatprep.subr.mxu0 0.0
    %3862 = vmatpush1.msra.mxu0 0.0
    %3863 = vmatprep.subr.mxu0 0.0
    %3864 = vmatpush1.msra.mxu0 0.0
    %3865 = vmatprep.subr.mxu0 0.0
    %3866 = vmatpush1.msra.mxu0 0.0
    %3867 = vmatprep.subr.mxu0 0.0
    %3868 = vmatpush1.msra.mxu0 0.0
    %3869 = vmatprep.subr.mxu0 0.0
    %3870 = vmatpush1.msra.mxu0 0.0
    %3871 = vmatprep.subr.mxu0 0.0
    %3872 = vmatpush1.msra.mxu0 0.0
    %3873 = vmatprep.subr.mxu0 0.0
    %3874 = vmatpush1.msra.mxu0 0.0
    %3875 = vmatprep.subr.mxu0 0.0
    %3876 = vmatpush1.msra.mxu0 0.0
    %3877 = vmatprep.subr.mxu0 0.0
    %3878 = vmatpush1.msra.mxu0 0.0
    %3879 = vmatprep.subr.mxu0 0.0
    %3880 = vmatpush1.msra.mxu0 0.0
    %3881 = vmatprep.subr.mxu0 0.0
    %3882 = vmatpush1.msra.mxu0 0.0
    %3883 = vmatprep.subr.mxu0 0.0
    %3884 = vmatpush1.msra.mxu0 0.0
    %3885 = vmatprep.subr.mxu0 0.0
    %3886 = vmatpush1.msra.mxu0 0.0
    %3887 = vmatprep.subr.mxu0 0.0
    %3888 = vmatpush1.msra.mxu0 0.0
    %3889 = vmatprep.subr.mxu0 0.0
    %3890 = vmatpush1.msra.mxu0 0.0
    %3891 = vmatprep.subr.mxu0 0.0
    %3892 = vmatpush1.msra.mxu0 0.0
    %3893 = vmatprep.subr.mxu0 0.0
    %3894 = vmatpush1.msra.mxu0 0.0
    %3895 = vmatprep.mubr.f32.mxu0 0.0
    %3896 = vmatmul.mubr.f32.gmra.mrb[0].mxu0 %v3673
    %v3897 = vpop.f32.mrb[0].mxu0
    %v3898 = vadd.f32 %v3828, %v3897
    %v3899 = vpop.f32.mrb[0].mxu0
    %3900 = vdwg.mxu0
    %3901 = vst.msk [vmem:[#allocation10 + $0xc] sm:$0x3] %vm163, %v3898
    %v3902 = vld [vmem:[#allocation8] sm:$0xff]
    %v3903 = vld [vmem:[#allocation8 + $0x8] sm:$0xff]
    %v3904 = vld [vmem:[%s167] sm:$0xff]
    %v3905 = vld [vmem:[%s167 + $0x8] sm:$0xff]
    %3906 = vmatprep.subr.mxu0 0.0
    %3907 = vmatpush1.msra.mxu0 %v3904
    %3908 = vmatprep.subr.mxu0 0.0
    %3909 = vmatpush1.msra.mxu0 %v3905
    %3910 = vmatprep.subr.mxu0 0.0
    %3911 = vmatpush1.msra.mxu0 0.0
    %3912 = vmatprep.subr.mxu0 0.0
    %3913 = vmatpush1.msra.mxu0 0.0
    %3914 = vmatprep.subr.mxu0 0.0
    %3915 = vmatpush1.msra.mxu0 0.0
    %3916 = vmatprep.subr.mxu0 0.0
    %3917 = vmatpush1.msra.mxu0 0.0
    %3918 = vmatprep.subr.mxu0 0.0
    %3919 = vmatpush1.msra.mxu0 0.0
    %3920 = vmatprep.subr.mxu0 0.0
    %3921 = vmatpush1.msra.mxu0 0.0
    %3922 = vmatprep.subr.mxu0 0.0
    %3923 = vmatpush1.msra.mxu0 0.0
    %3924 = vmatprep.subr.mxu0 0.0
    %3925 = vmatpush1.msra.mxu0 0.0
    %3926 = vmatprep.subr.mxu0 0.0
    %3927 = vmatpush1.msra.mxu0 0.0
    %3928 = vmatprep.subr.mxu0 0.0
    %3929 = vmatpush1.msra.mxu0 0.0
    %3930 = vmatprep.subr.mxu0 0.0
    %3931 = vmatpush1.msra.mxu0 0.0
    %3932 = vmatprep.subr.mxu0 0.0
    %3933 = vmatpush1.msra.mxu0 0.0
    %3934 = vmatprep.subr.mxu0 0.0
    %3935 = vmatpush1.msra.mxu0 0.0
    %3936 = vmatprep.subr.mxu0 0.0
    %3937 = vmatpush1.msra.mxu0 0.0
    %3938 = vmatprep.subr.mxu0 0.0
    %3939 = vmatpush1.msra.mxu0 0.0
    %3940 = vmatprep.subr.mxu0 0.0
    %3941 = vmatpush1.msra.mxu0 0.0
    %3942 = vmatprep.subr.mxu0 0.0
    %3943 = vmatpush1.msra.mxu0 0.0
    %3944 = vmatprep.subr.mxu0 0.0
    %3945 = vmatpush1.msra.mxu0 0.0
    %3946 = vmatprep.subr.mxu0 0.0
    %3947 = vmatpush1.msra.mxu0 0.0
    %3948 = vmatprep.subr.mxu0 0.0
    %3949 = vmatpush1.msra.mxu0 0.0
    %3950 = vmatprep.subr.mxu0 0.0
    %3951 = vmatpush1.msra.mxu0 0.0
    %3952 = vmatprep.subr.mxu0 0.0
    %3953 = vmatpush1.msra.mxu0 0.0
    %3954 = vmatprep.subr.mxu0 0.0
    %3955 = vmatpush1.msra.mxu0 0.0
    %3956 = vmatprep.subr.mxu0 0.0
    %3957 = vmatpush1.msra.mxu0 0.0
    %3958 = vmatprep.subr.mxu0 0.0
    %3959 = vmatpush1.msra.mxu0 0.0
    %3960 = vmatprep.subr.mxu0 0.0
    %3961 = vmatpush1.msra.mxu0 0.0
    %3962 = vmatprep.subr.mxu0 0.0
    %3963 = vmatpush1.msra.mxu0 0.0
    %3964 = vmatprep.subr.mxu0 0.0
    %3965 = vmatpush1.msra.mxu0 0.0
    %3966 = vmatprep.subr.mxu0 0.0
    %3967 = vmatpush1.msra.mxu0 0.0
    %3968 = vmatprep.subr.mxu0 0.0
    %3969 = vmatpush1.msra.mxu0 0.0
    %3970 = vmatprep.mubr.f32.mxu0 0.0
    %3971 = vmatmul.mubr.f32.gmra.mrb[0].mxu0 %v3673
    %v3972 = vpop.f32.mrb[0].mxu0
    %v3973 = vadd.f32 0.0, %v3972
    %v3974 = vpop.f32.mrb[0].mxu0
    %3975 = vdwg.mxu0
    %3976 = vrot.lane.b32.xlu0 %v2430, 48
    %v3977 = vpop.permute.xlu0 %3976
    %v3978 = vsel %vm89, %v3977, 0
    %3980 = vmatprep.subr.mxu0 0.0
    %3981 = vmatpush1.msra.mxu0 %v3902
    %3982 = vmatprep.subr.mxu0 0.0
    %3983 = vmatpush1.msra.mxu0 %v3903
    %3984 = vmatprep.subr.mxu0 0.0
    %3985 = vmatpush1.msra.mxu0 0.0
    %3986 = vmatprep.subr.mxu0 0.0
    %3987 = vmatpush1.msra.mxu0 0.0
    %3988 = vmatprep.subr.mxu0 0.0
    %3989 = vmatpush1.msra.mxu0 0.0
    %3990 = vmatprep.subr.mxu0 0.0
    %3991 = vmatpush1.msra.mxu0 0.0
    %3992 = vmatprep.subr.mxu0 0.0
    %3993 = vmatpush1.msra.mxu0 0.0
    %3994 = vmatprep.subr.mxu0 0.0
    %3995 = vmatpush1.msra.mxu0 0.0
    %3996 = vmatprep.subr.mxu0 0.0
    %3997 = vmatpush1.msra.mxu0 0.0
    %3998 = vmatprep.subr.mxu0 0.0
    %3999 = vmatpush1.msra.mxu0 0.0
    %4000 = vmatprep.subr.mxu0 0.0
    %4001 = vmatpush1.msra.mxu0 0.0
    %4002 = vmatprep.subr.mxu0 0.0
    %4003 = vmatpush1.msra.mxu0 0.0
    %4004 = vmatprep.subr.mxu0 0.0
    %4005 = vmatpush1.msra.mxu0 0.0
    %4006 = vmatprep.subr.mxu0 0.0
    %4007 = vmatpush1.msra.mxu0 0.0
    %4008 = vmatprep.subr.mxu0 0.0
    %4009 = vmatpush1.msra.mxu0 0.0
    %4010 = vmatprep.subr.mxu0 0.0
    %4011 = vmatpush1.msra.mxu0 0.0
    %4012 = vmatprep.subr.mxu0 0.0
    %4013 = vmatpush1.msra.mxu0 0.0
    %4014 = vmatprep.subr.mxu0 0.0
    %4015 = vmatpush1.msra.mxu0 0.0
    %4016 = vmatprep.subr.mxu0 0.0
    %4017 = vmatpush1.msra.mxu0 0.0
    %4018 = vmatprep.subr.mxu0 0.0
    %4019 = vmatpush1.msra.mxu0 0.0
    %4020 = vmatprep.subr.mxu0 0.0
    %4021 = vmatpush1.msra.mxu0 0.0
    %4022 = vmatprep.subr.mxu0 0.0
    %4023 = vmatpush1.msra.mxu0 0.0
    %4024 = vmatprep.subr.mxu0 0.0
    %4025 = vmatpush1.msra.mxu0 0.0
    %4026 = vmatprep.subr.mxu0 0.0
    %4027 = vmatpush1.msra.mxu0 0.0
    %4028 = vmatprep.subr.mxu0 0.0
    %4029 = vmatpush1.msra.mxu0 0.0
    %4030 = vmatprep.subr.mxu0 0.0
    %4031 = vmatpush1.msra.mxu0 0.0
    %4032 = vmatprep.subr.mxu0 0.0
    %4033 = vmatpush1.msra.mxu0 0.0
    %4034 = vmatprep.subr.mxu0 0.0
    %4035 = vmatpush1.msra.mxu0 0.0
    %4036 = vmatprep.subr.mxu0 0.0
    %4037 = vmatpush1.msra.mxu0 0.0
    %4038 = vmatprep.subr.mxu0 0.0
    %4039 = vmatpush1.msra.mxu0 0.0
    %4040 = vmatprep.subr.mxu0 0.0
    %4041 = vmatpush1.msra.mxu0 0.0
    %4042 = vmatprep.subr.mxu0 0.0
    %4043 = vmatpush1.msra.mxu0 0.0
    %4044 = vmatprep.mubr.f32.mxu0 0.0
    %4045 = vmatmul.mubr.f32.gmra.mrb[0].mxu0 %v3978
    %v4046 = vpop.f32.mrb[0].mxu0
    %v4047 = vadd.f32 %v3973, %v4046
    %v4048 = vpop.f32.mrb[0].mxu0
    %4049 = vdwg.mxu0
    %v4052 = vunpack.c.l.s4 1983009808
    %v4053 = vunpack.c.0.s8 %v4052
    %v4054 = vlaneseq
    %v4055 = vshrl.u32 %v4054, 7
    %v4056 = vsub.s32 %v4053, %v4055
    %v4057 = vrot.slane %v4047, %v4056
    %4058 = vrot.lane.b32.xlu0 %v4057, 32
    %v4059 = vpop.permute.xlu0 %4058
    %4061 = vst.msk [vmem:[#allocation10 + $0xc] sm:$0x3] %vm332, %v4059
    %v4062 = vld [vmem:[%s86] sm:$0xff]
    %v4063 = vld [vmem:[%s86 + $0x8] sm:$0xff]
    %v4064 = vld [vmem:[%s336] sm:$0xff]
    %v4065 = vld [vmem:[%s336 + $0x8] sm:$0xff]
    %4066 = vmatprep.subr.mxu0 0.0
    %4067 = vmatpush1.msra.mxu0 %v4064
    %4068 = vmatprep.subr.mxu0 0.0
    %4069 = vmatpush1.msra.mxu0 %v4065
    %4070 = vmatprep.subr.mxu0 0.0
    %4071 = vmatpush1.msra.mxu0 0.0
    %4072 = vmatprep.subr.mxu0 0.0
    %4073 = vmatpush1.msra.mxu0 0.0
    %4074 = vmatprep.subr.mxu0 0.0
    %4075 = vmatpush1.msra.mxu0 0.0
    %4076 = vmatprep.subr.mxu0 0.0
    %4077 = vmatpush1.msra.mxu0 0.0
    %4078 = vmatprep.subr.mxu0 0.0
    %4079 = vmatpush1.msra.mxu0 0.0
    %4080 = vmatprep.subr.mxu0 0.0
    %4081 = vmatpush1.msra.mxu0 0.0
    %4082 = vmatprep.subr.mxu0 0.0
    %4083 = vmatpush1.msra.mxu0 0.0
    %4084 = vmatprep.subr.mxu0 0.0
    %4085 = vmatpush1.msra.mxu0 0.0
    %4086 = vmatprep.subr.mxu0 0.0
    %4087 = vmatpush1.msra.mxu0 0.0
    %4088 = vmatprep.subr.mxu0 0.0
    %4089 = vmatpush1.msra.mxu0 0.0
    %4090 = vmatprep.subr.mxu0 0.0
    %4091 = vmatpush1.msra.mxu0 0.0
    %4092 = vmatprep.subr.mxu0 0.0
    %4093 = vmatpush1.msra.mxu0 0.0
    %4094 = vmatprep.subr.mxu0 0.0
    %4095 = vmatpush1.msra.mxu0 0.0
    %4096 = vmatprep.subr.mxu0 0.0
    %4097 = vmatpush1.msra.mxu0 0.0
    %4098 = vmatprep.subr.mxu0 0.0
    %4099 = vmatpush1.msra.mxu0 0.0
    %4100 = vmatprep.subr.mxu0 0.0
    %4101 = vmatpush1.msra.mxu0 0.0
    %4102 = vmatprep.subr.mxu0 0.0
    %4103 = vmatpush1.msra.mxu0 0.0
    %4104 = vmatprep.subr.mxu0 0.0
    %4105 = vmatpush1.msra.mxu0 0.0
    %4106 = vmatprep.subr.mxu0 0.0
    %4107 = vmatpush1.msra.mxu0 0.0
    %4108 = vmatprep.subr.mxu0 0.0
    %4109 = vmatpush1.msra.mxu0 0.0
    %4110 = vmatprep.subr.mxu0 0.0
    %4111 = vmatpush1.msra.mxu0 0.0
    %4112 = vmatprep.subr.mxu0 0.0
    %4113 = vmatpush1.msra.mxu0 0.0
    %4114 = vmatprep.subr.mxu0 0.0
    %4115 = vmatpush1.msra.mxu0 0.0
    %4116 = vmatprep.subr.mxu0 0.0
    %4117 = vmatpush1.msra.mxu0 0.0
    %4118 = vmatprep.subr.mxu0 0.0
    %4119 = vmatpush1.msra.mxu0 0.0
    %4120 = vmatprep.subr.mxu0 0.0
    %4121 = vmatpush1.msra.mxu0 0.0
    %4122 = vmatprep.subr.mxu0 0.0
    %4123 = vmatpush1.msra.mxu0 0.0
    %4124 = vmatprep.subr.mxu0 0.0
    %4125 = vmatpush1.msra.mxu0 0.0
    %4126 = vmatprep.subr.mxu0 0.0
    %4127 = vmatpush1.msra.mxu0 0.0
    %4128 = vmatprep.subr.mxu0 0.0
    %4129 = vmatpush1.msra.mxu0 0.0
    %4130 = vmatprep.mubr.f32.mxu0 0.0
    %4131 = vmatmul.mubr.f32.gmra.mrb[0].mxu0 %v3673
    %v4132 = vpop.f32.mrb[0].mxu0
    %v4133 = vadd.f32 0.0, %v4132
    %v4134 = vpop.f32.mrb[0].mxu0
    %4135 = vdwg.mxu0
    %4136 = vmatprep.subr.mxu0 0.0
    %4137 = vmatpush1.msra.mxu0 %v4062
    %4138 = vmatprep.subr.mxu0 0.0
    %4139 = vmatpush1.msra.mxu0 %v4063
    %4140 = vmatprep.subr.mxu0 0.0
    %4141 = vmatpush1.msra.mxu0 0.0
    %4142 = vmatprep.subr.mxu0 0.0
    %4143 = vmatpush1.msra.mxu0 0.0
    %4144 = vmatprep.subr.mxu0 0.0
    %4145 = vmatpush1.msra.mxu0 0.0
    %4146 = vmatprep.subr.mxu0 0.0
    %4147 = vmatpush1.msra.mxu0 0.0
    %4148 = vmatprep.subr.mxu0 0.0
    %4149 = vmatpush1.msra.mxu0 0.0
    %4150 = vmatprep.subr.mxu0 0.0
    %4151 = vmatpush1.msra.mxu0 0.0
    %4152 = vmatprep.subr.mxu0 0.0
    %4153 = vmatpush1.msra.mxu0 0.0
    %4154 = vmatprep.subr.mxu0 0.0
    %4155 = vmatpush1.msra.mxu0 0.0
    %4156 = vmatprep.subr.mxu0 0.0
    %4157 = vmatpush1.msra.mxu0 0.0
    %4158 = vmatprep.subr.mxu0 0.0
    %4159 = vmatpush1.msra.mxu0 0.0
    %4160 = vmatprep.subr.mxu0 0.0
    %4161 = vmatpush1.msra.mxu0 0.0
    %4162 = vmatprep.subr.mxu0 0.0
    %4163 = vmatpush1.msra.mxu0 0.0
    %4164 = vmatprep.subr.mxu0 0.0
    %4165 = vmatpush1.msra.mxu0 0.0
    %4166 = vmatprep.subr.mxu0 0.0
    %4167 = vmatpush1.msra.mxu0 0.0
    %4168 = vmatprep.subr.mxu0 0.0
    %4169 = vmatpush1.msra.mxu0 0.0
    %4170 = vmatprep.subr.mxu0 0.0
    %4171 = vmatpush1.msra.mxu0 0.0
    %4172 = vmatprep.subr.mxu0 0.0
    %4173 = vmatpush1.msra.mxu0 0.0
    %4174 = vmatprep.subr.mxu0 0.0
    %4175 = vmatpush1.msra.mxu0 0.0
    %4176 = vmatprep.subr.mxu0 0.0
    %4177 = vmatpush1.msra.mxu0 0.0
    %4178 = vmatprep.subr.mxu0 0.0
    %4179 = vmatpush1.msra.mxu0 0.0
    %4180 = vmatprep.subr.mxu0 0.0
    %4181 = vmatpush1.msra.mxu0 0.0
    %4182 = vmatprep.subr.mxu0 0.0
    %4183 = vmatpush1.msra.mxu0 0.0
    %4184 = vmatprep.subr.mxu0 0.0
    %4185 = vmatpush1.msra.mxu0 0.0
    %4186 = vmatprep.subr.mxu0 0.0
    %4187 = vmatpush1.msra.mxu0 0.0
    %4188 = vmatprep.subr.mxu0 0.0
    %4189 = vmatpush1.msra.mxu0 0.0
    %4190 = vmatprep.subr.mxu0 0.0
    %4191 = vmatpush1.msra.mxu0 0.0
    %4192 = vmatprep.subr.mxu0 0.0
    %4193 = vmatpush1.msra.mxu0 0.0
    %4194 = vmatprep.subr.mxu0 0.0
    %4195 = vmatpush1.msra.mxu0 0.0
    %4196 = vmatprep.subr.mxu0 0.0
    %4197 = vmatpush1.msra.mxu0 0.0
    %4198 = vmatprep.subr.mxu0 0.0
    %4199 = vmatpush1.msra.mxu0 0.0
    %4200 = vmatprep.mubr.f32.mxu0 0.0
    %4201 = vmatmul.mubr.f32.gmra.mrb[0].mxu0 %v3978
    %v4202 = vpop.f32.mrb[0].mxu0
    %v4203 = vadd.f32 %v4133, %v4202
    %v4204 = vpop.f32.mrb[0].mxu0
    %4205 = vdwg.mxu0
    %v4208 = vunpack.c.l.s4 1983009808
    %v4209 = vunpack.c.0.s8 %v4208
    %v4210 = vlaneseq
    %v4211 = vshrl.u32 %v4210, 7
    %v4212 = vsub.s32 %v4209, %v4211
    %v4213 = vrot.slane %v4203, %v4212
    %4214 = vrot.lane.b32.xlu0 %v4213, 64
    %v4215 = vpop.permute.xlu0 %4214
    %4217 = vst.msk [vmem:[#allocation10 + $0xc] sm:$0x3] %vm490, %v4215
    %v4218 = vld [vmem:[#allocation8] sm:$0xff]
    %v4219 = vld [vmem:[#allocation8 + $0x8] sm:$0xff]
    %v4220 = vld [vmem:[%s167] sm:$0xff]
    %v4221 = vld [vmem:[%s167 + $0x8] sm:$0xff]
    %4222 = vmatprep.subr.mxu0 0.0
    %4223 = vmatpush1.msra.mxu0 %v4220
    %4224 = vmatprep.subr.mxu0 0.0
    %4225 = vmatpush1.msra.mxu0 %v4221
    %4226 = vmatprep.subr.mxu0 0.0
    %4227 = vmatpush1.msra.mxu0 0.0
    %4228 = vmatprep.subr.mxu0 0.0
    %4229 = vmatpush1.msra.mxu0 0.0
    %4230 = vmatprep.subr.mxu0 0.0
    %4231 = vmatpush1.msra.mxu0 0.0
    %4232 = vmatprep.subr.mxu0 0.0
    %4233 = vmatpush1.msra.mxu0 0.0
    %4234 = vmatprep.subr.mxu0 0.0
    %4235 = vmatpush1.msra.mxu0 0.0
    %4236 = vmatprep.subr.mxu0 0.0
    %4237 = vmatpush1.msra.mxu0 0.0
    %4238 = vmatprep.subr.mxu0 0.0
    %4239 = vmatpush1.msra.mxu0 0.0
    %4240 = vmatprep.subr.mxu0 0.0
    %4241 = vmatpush1.msra.mxu0 0.0
    %4242 = vmatprep.subr.mxu0 0.0
    %4243 = vmatpush1.msra.mxu0 0.0
    %4244 = vmatprep.subr.mxu0 0.0
    %4245 = vmatpush1.msra.mxu0 0.0
    %4246 = vmatprep.subr.mxu0 0.0
    %4247 = vmatpush1.msra.mxu0 0.0
    %4248 = vmatprep.subr.mxu0 0.0
    %4249 = vmatpush1.msra.mxu0 0.0
    %4250 = vmatprep.subr.mxu0 0.0
    %4251 = vmatpush1.msra.mxu0 0.0
    %4252 = vmatprep.subr.mxu0 0.0
    %4253 = vmatpush1.msra.mxu0 0.0
    %4254 = vmatprep.subr.mxu0 0.0
    %4255 = vmatpush1.msra.mxu0 0.0
    %4256 = vmatprep.subr.mxu0 0.0
    %4257 = vmatpush1.msra.mxu0 0.0
    %4258 = vmatprep.subr.mxu0 0.0
    %4259 = vmatpush1.msra.mxu0 0.0
    %4260 = vmatprep.subr.mxu0 0.0
    %4261 = vmatpush1.msra.mxu0 0.0
    %4262 = vmatprep.subr.mxu0 0.0
    %4263 = vmatpush1.msra.mxu0 0.0
    %4264 = vmatprep.subr.mxu0 0.0
    %4265 = vmatpush1.msra.mxu0 0.0
    %4266 = vmatprep.subr.mxu0 0.0
    %4267 = vmatpush1.msra.mxu0 0.0
    %4268 = vmatprep.subr.mxu0 0.0
    %4269 = vmatpush1.msra.mxu0 0.0
    %4270 = vmatprep.subr.mxu0 0.0
    %4271 = vmatpush1.msra.mxu0 0.0
    %4272 = vmatprep.subr.mxu0 0.0
    %4273 = vmatpush1.msra.mxu0 0.0
    %4274 = vmatprep.subr.mxu0 0.0
    %4275 = vmatpush1.msra.mxu0 0.0
    %4276 = vmatprep.subr.mxu0 0.0
    %4277 = vmatpush1.msra.mxu0 0.0
    %4278 = vmatprep.subr.mxu0 0.0
    %4279 = vmatpush1.msra.mxu0 0.0
    %4280 = vmatprep.subr.mxu0 0.0
    %4281 = vmatpush1.msra.mxu0 0.0
    %4282 = vmatprep.subr.mxu0 0.0
    %4283 = vmatpush1.msra.mxu0 0.0
    %4284 = vmatprep.subr.mxu0 0.0
    %4285 = vmatpush1.msra.mxu0 0.0
    %4286 = vmatprep.mubr.f32.mxu0 0.0
    %4287 = vmatmul.mubr.f32.gmra.mrb[0].mxu0 %v3978
    %v4288 = vpop.f32.mrb[0].mxu0
    %v4289 = vadd.f32 0.0, %v4288
    %v4290 = vpop.f32.mrb[0].mxu0
    %4291 = vdwg.mxu0
    %4292 = vrot.lane.b32.xlu0 %v2430, 32
    %v4293 = vpop.permute.xlu0 %4292
    %v4294 = vsel %vm89, %v4293, 0
    %4296 = vmatprep.subr.mxu0 0.0
    %4297 = vmatpush1.msra.mxu0 %v4218
    %4298 = vmatprep.subr.mxu0 0.0
    %4299 = vmatpush1.msra.mxu0 %v4219
    %4300 = vmatprep.subr.mxu0 0.0
    %4301 = vmatpush1.msra.mxu0 0.0
    %4302 = vmatprep.subr.mxu0 0.0
    %4303 = vmatpush1.msra.mxu0 0.0
    %4304 = vmatprep.subr.mxu0 0.0
    %4305 = vmatpush1.msra.mxu0 0.0
    %4306 = vmatprep.subr.mxu0 0.0
    %4307 = vmatpush1.msra.mxu0 0.0
    %4308 = vmatprep.subr.mxu0 0.0
    %4309 = vmatpush1.msra.mxu0 0.0
    %4310 = vmatprep.subr.mxu0 0.0
    %4311 = vmatpush1.msra.mxu0 0.0
    %4312 = vmatprep.subr.mxu0 0.0
    %4313 = vmatpush1.msra.mxu0 0.0
    %4314 = vmatprep.subr.mxu0 0.0
    %4315 = vmatpush1.msra.mxu0 0.0
    %4316 = vmatprep.subr.mxu0 0.0
    %4317 = vmatpush1.msra.mxu0 0.0
    %4318 = vmatprep.subr.mxu0 0.0
    %4319 = vmatpush1.msra.mxu0 0.0
    %4320 = vmatprep.subr.mxu0 0.0
    %4321 = vmatpush1.msra.mxu0 0.0
    %4322 = vmatprep.subr.mxu0 0.0
    %4323 = vmatpush1.msra.mxu0 0.0
    %4324 = vmatprep.subr.mxu0 0.0
    %4325 = vmatpush1.msra.mxu0 0.0
    %4326 = vmatprep.subr.mxu0 0.0
    %4327 = vmatpush1.msra.mxu0 0.0
    %4328 = vmatprep.subr.mxu0 0.0
    %4329 = vmatpush1.msra.mxu0 0.0
    %4330 = vmatprep.subr.mxu0 0.0
    %4331 = vmatpush1.msra.mxu0 0.0
    %4332 = vmatprep.subr.mxu0 0.0
    %4333 = vmatpush1.msra.mxu0 0.0
    %4334 = vmatprep.subr.mxu0 0.0
    %4335 = vmatpush1.msra.mxu0 0.0
    %4336 = vmatprep.subr.mxu0 0.0
    %4337 = vmatpush1.msra.mxu0 0.0
    %4338 = vmatprep.subr.mxu0 0.0
    %4339 = vmatpush1.msra.mxu0 0.0
    %4340 = vmatprep.subr.mxu0 0.0
    %4341 = vmatpush1.msra.mxu0 0.0
    %4342 = vmatprep.subr.mxu0 0.0
    %4343 = vmatpush1.msra.mxu0 0.0
    %4344 = vmatprep.subr.mxu0 0.0
    %4345 = vmatpush1.msra.mxu0 0.0
    %4346 = vmatprep.subr.mxu0 0.0
    %4347 = vmatpush1.msra.mxu0 0.0
    %4348 = vmatprep.subr.mxu0 0.0
    %4349 = vmatpush1.msra.mxu0 0.0
    %4350 = vmatprep.subr.mxu0 0.0
    %4351 = vmatpush1.msra.mxu0 0.0
    %4352 = vmatprep.subr.mxu0 0.0
    %4353 = vmatpush1.msra.mxu0 0.0
    %4354 = vmatprep.subr.mxu0 0.0
    %4355 = vmatpush1.msra.mxu0 0.0
    %4356 = vmatprep.subr.mxu0 0.0
    %4357 = vmatpush1.msra.mxu0 0.0
    %4358 = vmatprep.subr.mxu0 0.0
    %4359 = vmatpush1.msra.mxu0 0.0
    %4360 = vmatprep.mubr.f32.mxu0 0.0
    %4361 = vmatmul.mubr.f32.gmra.mrb[0].mxu0 %v4294
    %v4362 = vpop.f32.mrb[0].mxu0
    %v4363 = vadd.f32 %v4289, %v4362
    %v4364 = vpop.f32.mrb[0].mxu0
    %4365 = vdwg.mxu0
    %v4368 = vunpack.c.l.s4 1983009808
    %v4369 = vunpack.c.0.s8 %v4368
    %v4370 = vlaneseq
    %v4371 = vshrl.u32 %v4370, 7
    %v4372 = vsub.s32 %v4369, %v4371
    %v4373 = vrot.slane %v4363, %v4372
    %4374 = vrot.lane.b32.xlu0 %v4373, 96
    %v4375 = vpop.permute.xlu0 %4374
    %4377 = vst.msk [vmem:[#allocation10 + $0xc] sm:$0x3] %vm651, %v4375
    %v4378 = vld [vmem:[%s86] sm:$0xff]
    %v4379 = vld [vmem:[%s86 + $0x8] sm:$0xff]
    %v4380 = vld [vmem:[%s336] sm:$0xff]
    %v4381 = vld [vmem:[%s336 + $0x8] sm:$0xff]
    %4382 = vmatprep.subr.mxu0 0.0
    %4383 = vmatpush1.msra.mxu0 %v4380
    %4384 = vmatprep.subr.mxu0 0.0
    %4385 = vmatpush1.msra.mxu0 %v4381
    %4386 = vmatprep.subr.mxu0 0.0
    %4387 = vmatpush1.msra.mxu0 0.0
    %4388 = vmatprep.subr.mxu0 0.0
    %4389 = vmatpush1.msra.mxu0 0.0
    %4390 = vmatprep.subr.mxu0 0.0
    %4391 = vmatpush1.msra.mxu0 0.0
    %4392 = vmatprep.subr.mxu0 0.0
    %4393 = vmatpush1.msra.mxu0 0.0
    %4394 = vmatprep.subr.mxu0 0.0
    %4395 = vmatpush1.msra.mxu0 0.0
    %4396 = vmatprep.subr.mxu0 0.0
    %4397 = vmatpush1.msra.mxu0 0.0
    %4398 = vmatprep.subr.mxu0 0.0
    %4399 = vmatpush1.msra.mxu0 0.0
    %4400 = vmatprep.subr.mxu0 0.0
    %4401 = vmatpush1.msra.mxu0 0.0
    %4402 = vmatprep.subr.mxu0 0.0
    %4403 = vmatpush1.msra.mxu0 0.0
    %4404 = vmatprep.subr.mxu0 0.0
    %4405 = vmatpush1.msra.mxu0 0.0
    %4406 = vmatprep.subr.mxu0 0.0
    %4407 = vmatpush1.msra.mxu0 0.0
    %4408 = vmatprep.subr.mxu0 0.0
    %4409 = vmatpush1.msra.mxu0 0.0
    %4410 = vmatprep.subr.mxu0 0.0
    %4411 = vmatpush1.msra.mxu0 0.0
    %4412 = vmatprep.subr.mxu0 0.0
    %4413 = vmatpush1.msra.mxu0 0.0
    %4414 = vmatprep.subr.mxu0 0.0
    %4415 = vmatpush1.msra.mxu0 0.0
    %4416 = vmatprep.subr.mxu0 0.0
    %4417 = vmatpush1.msra.mxu0 0.0
    %4418 = vmatprep.subr.mxu0 0.0
    %4419 = vmatpush1.msra.mxu0 0.0
    %4420 = vmatprep.subr.mxu0 0.0
    %4421 = vmatpush1.msra.mxu0 0.0
    %4422 = vmatprep.subr.mxu0 0.0
    %4423 = vmatpush1.msra.mxu0 0.0
    %4424 = vmatprep.subr.mxu0 0.0
    %4425 = vmatpush1.msra.mxu0 0.0
    %4426 = vmatprep.subr.mxu0 0.0
    %4427 = vmatpush1.msra.mxu0 0.0
    %4428 = vmatprep.subr.mxu0 0.0
    %4429 = vmatpush1.msra.mxu0 0.0
    %4430 = vmatprep.subr.mxu0 0.0
    %4431 = vmatpush1.msra.mxu0 0.0
    %4432 = vmatprep.subr.mxu0 0.0
    %4433 = vmatpush1.msra.mxu0 0.0
    %4434 = vmatprep.subr.mxu0 0.0
    %4435 = vmatpush1.msra.mxu0 0.0
    %4436 = vmatprep.subr.mxu0 0.0
    %4437 = vmatpush1.msra.mxu0 0.0
    %4438 = vmatprep.subr.mxu0 0.0
    %4439 = vmatpush1.msra.mxu0 0.0
    %4440 = vmatprep.subr.mxu0 0.0
    %4441 = vmatpush1.msra.mxu0 0.0
    %4442 = vmatprep.subr.mxu0 0.0
    %4443 = vmatpush1.msra.mxu0 0.0
    %4444 = vmatprep.subr.mxu0 0.0
    %4445 = vmatpush1.msra.mxu0 0.0
    %4446 = vmatprep.mubr.f32.mxu0 0.0
    %4447 = vmatmul.mubr.f32.gmra.mrb[0].mxu0 %v3978
    %v4448 = vpop.f32.mrb[0].mxu0
    %v4449 = vadd.f32 0.0, %v4448
    %v4450 = vpop.f32.mrb[0].mxu0
    %4451 = vdwg.mxu0
    %4452 = vmatprep.subr.mxu0 0.0
    %4453 = vmatpush1.msra.mxu0 %v4378
    %4454 = vmatprep.subr.mxu0 0.0
    %4455 = vmatpush1.msra.mxu0 %v4379
    %4456 = vmatprep.subr.mxu0 0.0
    %4457 = vmatpush1.msra.mxu0 0.0
    %4458 = vmatprep.subr.mxu0 0.0
    %4459 = vmatpush1.msra.mxu0 0.0
    %4460 = vmatprep.subr.mxu0 0.0
    %4461 = vmatpush1.msra.mxu0 0.0
    %4462 = vmatprep.subr.mxu0 0.0
    %4463 = vmatpush1.msra.mxu0 0.0
    %4464 = vmatprep.subr.mxu0 0.0
    %4465 = vmatpush1.msra.mxu0 0.0
    %4466 = vmatprep.subr.mxu0 0.0
    %4467 = vmatpush1.msra.mxu0 0.0
    %4468 = vmatprep.subr.mxu0 0.0
    %4469 = vmatpush1.msra.mxu0 0.0
    %4470 = vmatprep.subr.mxu0 0.0
    %4471 = vmatpush1.msra.mxu0 0.0
    %4472 = vmatprep.subr.mxu0 0.0
    %4473 = vmatpush1.msra.mxu0 0.0
    %4474 = vmatprep.subr.mxu0 0.0
    %4475 = vmatpush1.msra.mxu0 0.0
    %4476 = vmatprep.subr.mxu0 0.0
    %4477 = vmatpush1.msra.mxu0 0.0
    %4478 = vmatprep.subr.mxu0 0.0
    %4479 = vmatpush1.msra.mxu0 0.0
    %4480 = vmatprep.subr.mxu0 0.0
    %4481 = vmatpush1.msra.mxu0 0.0
    %4482 = vmatprep.subr.mxu0 0.0
    %4483 = vmatpush1.msra.mxu0 0.0
    %4484 = vmatprep.subr.mxu0 0.0
    %4485 = vmatpush1.msra.mxu0 0.0
    %4486 = vmatprep.subr.mxu0 0.0
    %4487 = vmatpush1.msra.mxu0 0.0
    %4488 = vmatprep.subr.mxu0 0.0
    %4489 = vmatpush1.msra.mxu0 0.0
    %4490 = vmatprep.subr.mxu0 0.0
    %4491 = vmatpush1.msra.mxu0 0.0
    %4492 = vmatprep.subr.mxu0 0.0
    %4493 = vmatpush1.msra.mxu0 0.0
    %4494 = vmatprep.subr.mxu0 0.0
    %4495 = vmatpush1.msra.mxu0 0.0
    %4496 = vmatprep.subr.mxu0 0.0
    %4497 = vmatpush1.msra.mxu0 0.0
    %4498 = vmatprep.subr.mxu0 0.0
    %4499 = vmatpush1.msra.mxu0 0.0
    %4500 = vmatprep.subr.mxu0 0.0
    %4501 = vmatpush1.msra.mxu0 0.0
    %4502 = vmatprep.subr.mxu0 0.0
    %4503 = vmatpush1.msra.mxu0 0.0
    %4504 = vmatprep.subr.mxu0 0.0
    %4505 = vmatpush1.msra.mxu0 0.0
    %4506 = vmatprep.subr.mxu0 0.0
    %4507 = vmatpush1.msra.mxu0 0.0
    %4508 = vmatprep.subr.mxu0 0.0
    %4509 = vmatpush1.msra.mxu0 0.0
    %4510 = vmatprep.subr.mxu0 0.0
    %4511 = vmatpush1.msra.mxu0 0.0
    %4512 = vmatprep.subr.mxu0 0.0
    %4513 = vmatpush1.msra.mxu0 0.0
    %4514 = vmatprep.subr.mxu0 0.0
    %4515 = vmatpush1.msra.mxu0 0.0
    %4516 = vmatprep.mubr.f32.mxu0 0.0
    %4517 = vmatmul.mubr.f32.gmra.mrb[0].mxu0 %v4294
    %v4518 = vpop.f32.mrb[0].mxu0
    %v4519 = vadd.f32 %v4449, %v4518
    %v4520 = vpop.f32.mrb[0].mxu0
    %4521 = vdwg.mxu0
    %4522 = vst.msk [vmem:[#allocation10 + $0xe] sm:$0x3] %vm163, %v4519
    %v4523 = vld [vmem:[#allocation8] sm:$0xff]
    %v4524 = vld [vmem:[#allocation8 + $0x8] sm:$0xff]
    %v4525 = vld [vmem:[%s167] sm:$0xff]
    %v4526 = vld [vmem:[%s167 + $0x8] sm:$0xff]
    %4527 = vmatprep.subr.mxu0 0.0
    %4528 = vmatpush1.msra.mxu0 %v4525
    %4529 = vmatprep.subr.mxu0 0.0
    %4530 = vmatpush1.msra.mxu0 %v4526
    %4531 = vmatprep.subr.mxu0 0.0
    %4532 = vmatpush1.msra.mxu0 0.0
    %4533 = vmatprep.subr.mxu0 0.0
    %4534 = vmatpush1.msra.mxu0 0.0
    %4535 = vmatprep.subr.mxu0 0.0
    %4536 = vmatpush1.msra.mxu0 0.0
    %4537 = vmatprep.subr.mxu0 0.0
    %4538 = vmatpush1.msra.mxu0 0.0
    %4539 = vmatprep.subr.mxu0 0.0
    %4540 = vmatpush1.msra.mxu0 0.0
    %4541 = vmatprep.subr.mxu0 0.0
    %4542 = vmatpush1.msra.mxu0 0.0
    %4543 = vmatprep.subr.mxu0 0.0
    %4544 = vmatpush1.msra.mxu0 0.0
    %4545 = vmatprep.subr.mxu0 0.0
    %4546 = vmatpush1.msra.mxu0 0.0
    %4547 = vmatprep.subr.mxu0 0.0
    %4548 = vmatpush1.msra.mxu0 0.0
    %4549 = vmatprep.subr.mxu0 0.0
    %4550 = vmatpush1.msra.mxu0 0.0
    %4551 = vmatprep.subr.mxu0 0.0
    %4552 = vmatpush1.msra.mxu0 0.0
    %4553 = vmatprep.subr.mxu0 0.0
    %4554 = vmatpush1.msra.mxu0 0.0
    %4555 = vmatprep.subr.mxu0 0.0
    %4556 = vmatpush1.msra.mxu0 0.0
    %4557 = vmatprep.subr.mxu0 0.0
    %4558 = vmatpush1.msra.mxu0 0.0
    %4559 = vmatprep.subr.mxu0 0.0
    %4560 = vmatpush1.msra.mxu0 0.0
    %4561 = vmatprep.subr.mxu0 0.0
    %4562 = vmatpush1.msra.mxu0 0.0
    %4563 = vmatprep.subr.mxu0 0.0
    %4564 = vmatpush1.msra.mxu0 0.0
    %4565 = vmatprep.subr.mxu0 0.0
    %4566 = vmatpush1.msra.mxu0 0.0
    %4567 = vmatprep.subr.mxu0 0.0
    %4568 = vmatpush1.msra.mxu0 0.0
    %4569 = vmatprep.subr.mxu0 0.0
    %4570 = vmatpush1.msra.mxu0 0.0
    %4571 = vmatprep.subr.mxu0 0.0
    %4572 = vmatpush1.msra.mxu0 0.0
    %4573 = vmatprep.subr.mxu0 0.0
    %4574 = vmatpush1.msra.mxu0 0.0
    %4575 = vmatprep.subr.mxu0 0.0
    %4576 = vmatpush1.msra.mxu0 0.0
    %4577 = vmatprep.subr.mxu0 0.0
    %4578 = vmatpush1.msra.mxu0 0.0
    %4579 = vmatprep.subr.mxu0 0.0
    %4580 = vmatpush1.msra.mxu0 0.0
    %4581 = vmatprep.subr.mxu0 0.0
    %4582 = vmatpush1.msra.mxu0 0.0
    %4583 = vmatprep.subr.mxu0 0.0
    %4584 = vmatpush1.msra.mxu0 0.0
    %4585 = vmatprep.subr.mxu0 0.0
    %4586 = vmatpush1.msra.mxu0 0.0
    %4587 = vmatprep.subr.mxu0 0.0
    %4588 = vmatpush1.msra.mxu0 0.0
    %4589 = vmatprep.subr.mxu0 0.0
    %4590 = vmatpush1.msra.mxu0 0.0
    %4591 = vmatprep.mubr.f32.mxu0 0.0
    %4592 = vmatmul.mubr.f32.gmra.mrb[0].mxu0 %v4294
    %v4593 = vpop.f32.mrb[0].mxu0
    %v4594 = vadd.f32 0.0, %v4593
    %v4595 = vpop.f32.mrb[0].mxu0
    %4596 = vdwg.mxu0
    %4597 = vrot.lane.b32.xlu0 %v2430, 16
    %v4598 = vpop.permute.xlu0 %4597
    %v4599 = vsel %vm89, %v4598, 0
    %4601 = vmatprep.subr.mxu0 0.0
    %4602 = vmatpush1.msra.mxu0 %v4523
    %4603 = vmatprep.subr.mxu0 0.0
    %4604 = vmatpush1.msra.mxu0 %v4524
    %4605 = vmatprep.subr.mxu0 0.0
    %4606 = vmatpush1.msra.mxu0 0.0
    %4607 = vmatprep.subr.mxu0 0.0
    %4608 = vmatpush1.msra.mxu0 0.0
    %4609 = vmatprep.subr.mxu0 0.0
    %4610 = vmatpush1.msra.mxu0 0.0
    %4611 = vmatprep.subr.mxu0 0.0
    %4612 = vmatpush1.msra.mxu0 0.0
    %4613 = vmatprep.subr.mxu0 0.0
    %4614 = vmatpush1.msra.mxu0 0.0
    %4615 = vmatprep.subr.mxu0 0.0
    %4616 = vmatpush1.msra.mxu0 0.0
    %4617 = vmatprep.subr.mxu0 0.0
    %4618 = vmatpush1.msra.mxu0 0.0
    %4619 = vmatprep.subr.mxu0 0.0
    %4620 = vmatpush1.msra.mxu0 0.0
    %4621 = vmatprep.subr.mxu0 0.0
    %4622 = vmatpush1.msra.mxu0 0.0
    %4623 = vmatprep.subr.mxu0 0.0
    %4624 = vmatpush1.msra.mxu0 0.0
    %4625 = vmatprep.subr.mxu0 0.0
    %4626 = vmatpush1.msra.mxu0 0.0
    %4627 = vmatprep.subr.mxu0 0.0
    %4628 = vmatpush1.msra.mxu0 0.0
    %4629 = vmatprep.subr.mxu0 0.0
    %4630 = vmatpush1.msra.mxu0 0.0
    %4631 = vmatprep.subr.mxu0 0.0
    %4632 = vmatpush1.msra.mxu0 0.0
    %4633 = vmatprep.subr.mxu0 0.0
    %4634 = vmatpush1.msra.mxu0 0.0
    %4635 = vmatprep.subr.mxu0 0.0
    %4636 = vmatpush1.msra.mxu0 0.0
    %4637 = vmatprep.subr.mxu0 0.0
    %4638 = vmatpush1.msra.mxu0 0.0
    %4639 = vmatprep.subr.mxu0 0.0
    %4640 = vmatpush1.msra.mxu0 0.0
    %4641 = vmatprep.subr.mxu0 0.0
    %4642 = vmatpush1.msra.mxu0 0.0
    %4643 = vmatprep.subr.mxu0 0.0
    %4644 = vmatpush1.msra.mxu0 0.0
    %4645 = vmatprep.subr.mxu0 0.0
    %4646 = vmatpush1.msra.mxu0 0.0
    %4647 = vmatprep.subr.mxu0 0.0
    %4648 = vmatpush1.msra.mxu0 0.0
    %4649 = vmatprep.subr.mxu0 0.0
    %4650 = vmatpush1.msra.mxu0 0.0
    %4651 = vmatprep.subr.mxu0 0.0
    %4652 = vmatpush1.msra.mxu0 0.0
    %4653 = vmatprep.subr.mxu0 0.0
    %4654 = vmatpush1.msra.mxu0 0.0
    %4655 = vmatprep.subr.mxu0 0.0
    %4656 = vmatpush1.msra.mxu0 0.0
    %4657 = vmatprep.subr.mxu0 0.0
    %4658 = vmatpush1.msra.mxu0 0.0
    %4659 = vmatprep.subr.mxu0 0.0
    %4660 = vmatpush1.msra.mxu0 0.0
    %4661 = vmatprep.subr.mxu0 0.0
    %4662 = vmatpush1.msra.mxu0 0.0
    %4663 = vmatprep.subr.mxu0 0.0
    %4664 = vmatpush1.msra.mxu0 0.0
    %4665 = vmatprep.mubr.f32.mxu0 0.0
    %4666 = vmatmul.mubr.f32.gmra.mrb[0].mxu0 %v4599
    %v4667 = vpop.f32.mrb[0].mxu0
    %v4668 = vadd.f32 %v4594, %v4667
    %v4669 = vpop.f32.mrb[0].mxu0
    %4670 = vdwg.mxu0
    %v4673 = vunpack.c.l.s4 1983009808
    %v4674 = vunpack.c.0.s8 %v4673
    %v4675 = vlaneseq
    %v4676 = vshrl.u32 %v4675, 7
    %v4677 = vsub.s32 %v4674, %v4676
    %v4678 = vrot.slane %v4668, %v4677
    %4679 = vrot.lane.b32.xlu0 %v4678, 32
    %v4680 = vpop.permute.xlu0 %4679
    %4682 = vst.msk [vmem:[#allocation10 + $0xe] sm:$0x3] %vm332, %v4680
    %v4683 = vld [vmem:[%s86] sm:$0xff]
    %v4684 = vld [vmem:[%s86 + $0x8] sm:$0xff]
    %v4685 = vld [vmem:[%s336] sm:$0xff]
    %v4686 = vld [vmem:[%s336 + $0x8] sm:$0xff]
    %4687 = vmatprep.subr.mxu0 0.0
    %4688 = vmatpush1.msra.mxu0 %v4685
    %4689 = vmatprep.subr.mxu0 0.0
    %4690 = vmatpush1.msra.mxu0 %v4686
    %4691 = vmatprep.subr.mxu0 0.0
    %4692 = vmatpush1.msra.mxu0 0.0
    %4693 = vmatprep.subr.mxu0 0.0
    %4694 = vmatpush1.msra.mxu0 0.0
    %4695 = vmatprep.subr.mxu0 0.0
    %4696 = vmatpush1.msra.mxu0 0.0
    %4697 = vmatprep.subr.mxu0 0.0
    %4698 = vmatpush1.msra.mxu0 0.0
    %4699 = vmatprep.subr.mxu0 0.0
    %4700 = vmatpush1.msra.mxu0 0.0
    %4701 = vmatprep.subr.mxu0 0.0
    %4702 = vmatpush1.msra.mxu0 0.0
    %4703 = vmatprep.subr.mxu0 0.0
    %4704 = vmatpush1.msra.mxu0 0.0
    %4705 = vmatprep.subr.mxu0 0.0
    %4706 = vmatpush1.msra.mxu0 0.0
    %4707 = vmatprep.subr.mxu0 0.0
    %4708 = vmatpush1.msra.mxu0 0.0
    %4709 = vmatprep.subr.mxu0 0.0
    %4710 = vmatpush1.msra.mxu0 0.0
    %4711 = vmatprep.subr.mxu0 0.0
    %4712 = vmatpush1.msra.mxu0 0.0
    %4713 = vmatprep.subr.mxu0 0.0
    %4714 = vmatpush1.msra.mxu0 0.0
    %4715 = vmatprep.subr.mxu0 0.0
    %4716 = vmatpush1.msra.mxu0 0.0
    %4717 = vmatprep.subr.mxu0 0.0
    %4718 = vmatpush1.msra.mxu0 0.0
    %4719 = vmatprep.subr.mxu0 0.0
    %4720 = vmatpush1.msra.mxu0 0.0
    %4721 = vmatprep.subr.mxu0 0.0
    %4722 = vmatpush1.msra.mxu0 0.0
    %4723 = vmatprep.subr.mxu0 0.0
    %4724 = vmatpush1.msra.mxu0 0.0
    %4725 = vmatprep.subr.mxu0 0.0
    %4726 = vmatpush1.msra.mxu0 0.0
    %4727 = vmatprep.subr.mxu0 0.0
    %4728 = vmatpush1.msra.mxu0 0.0
    %4729 = vmatprep.subr.mxu0 0.0
    %4730 = vmatpush1.msra.mxu0 0.0
    %4731 = vmatprep.subr.mxu0 0.0
    %4732 = vmatpush1.msra.mxu0 0.0
    %4733 = vmatprep.subr.mxu0 0.0
    %4734 = vmatpush1.msra.mxu0 0.0
    %4735 = vmatprep.subr.mxu0 0.0
    %4736 = vmatpush1.msra.mxu0 0.0
    %4737 = vmatprep.subr.mxu0 0.0
    %4738 = vmatpush1.msra.mxu0 0.0
    %4739 = vmatprep.subr.mxu0 0.0
    %4740 = vmatpush1.msra.mxu0 0.0
    %4741 = vmatprep.subr.mxu0 0.0
    %4742 = vmatpush1.msra.mxu0 0.0
    %4743 = vmatprep.subr.mxu0 0.0
    %4744 = vmatpush1.msra.mxu0 0.0
    %4745 = vmatprep.subr.mxu0 0.0
    %4746 = vmatpush1.msra.mxu0 0.0
    %4747 = vmatprep.subr.mxu0 0.0
    %4748 = vmatpush1.msra.mxu0 0.0
    %4749 = vmatprep.subr.mxu0 0.0
    %4750 = vmatpush1.msra.mxu0 0.0
    %4751 = vmatprep.mubr.f32.mxu0 0.0
    %4752 = vmatmul.mubr.f32.gmra.mrb[0].mxu0 %v4294
    %v4753 = vpop.f32.mrb[0].mxu0
    %v4754 = vadd.f32 0.0, %v4753
    %v4755 = vpop.f32.mrb[0].mxu0
    %4756 = vdwg.mxu0
    %4757 = vmatprep.subr.mxu0 0.0
    %4758 = vmatpush1.msra.mxu0 %v4683
    %4759 = vmatprep.subr.mxu0 0.0
    %4760 = vmatpush1.msra.mxu0 %v4684
    %4761 = vmatprep.subr.mxu0 0.0
    %4762 = vmatpush1.msra.mxu0 0.0
    %4763 = vmatprep.subr.mxu0 0.0
    %4764 = vmatpush1.msra.mxu0 0.0
    %4765 = vmatprep.subr.mxu0 0.0
    %4766 = vmatpush1.msra.mxu0 0.0
    %4767 = vmatprep.subr.mxu0 0.0
    %4768 = vmatpush1.msra.mxu0 0.0
    %4769 = vmatprep.subr.mxu0 0.0
    %4770 = vmatpush1.msra.mxu0 0.0
    %4771 = vmatprep.subr.mxu0 0.0
    %4772 = vmatpush1.msra.mxu0 0.0
    %4773 = vmatprep.subr.mxu0 0.0
    %4774 = vmatpush1.msra.mxu0 0.0
    %4775 = vmatprep.subr.mxu0 0.0
    %4776 = vmatpush1.msra.mxu0 0.0
    %4777 = vmatprep.subr.mxu0 0.0
    %4778 = vmatpush1.msra.mxu0 0.0
    %4779 = vmatprep.subr.mxu0 0.0
    %4780 = vmatpush1.msra.mxu0 0.0
    %4781 = vmatprep.subr.mxu0 0.0
    %4782 = vmatpush1.msra.mxu0 0.0
    %4783 = vmatprep.subr.mxu0 0.0
    %4784 = vmatpush1.msra.mxu0 0.0
    %4785 = vmatprep.subr.mxu0 0.0
    %4786 = vmatpush1.msra.mxu0 0.0
    %4787 = vmatprep.subr.mxu0 0.0
    %4788 = vmatpush1.msra.mxu0 0.0
    %4789 = vmatprep.subr.mxu0 0.0
    %4790 = vmatpush1.msra.mxu0 0.0
    %4791 = vmatprep.subr.mxu0 0.0
    %4792 = vmatpush1.msra.mxu0 0.0
    %4793 = vmatprep.subr.mxu0 0.0
    %4794 = vmatpush1.msra.mxu0 0.0
    %4795 = vmatprep.subr.mxu0 0.0
    %4796 = vmatpush1.msra.mxu0 0.0
    %4797 = vmatprep.subr.mxu0 0.0
    %4798 = vmatpush1.msra.mxu0 0.0
    %4799 = vmatprep.subr.mxu0 0.0
    %4800 = vmatpush1.msra.mxu0 0.0
    %4801 = vmatprep.subr.mxu0 0.0
    %4802 = vmatpush1.msra.mxu0 0.0
    %4803 = vmatprep.subr.mxu0 0.0
    %4804 = vmatpush1.msra.mxu0 0.0
    %4805 = vmatprep.subr.mxu0 0.0
    %4806 = vmatpush1.msra.mxu0 0.0
    %4807 = vmatprep.subr.mxu0 0.0
    %4808 = vmatpush1.msra.mxu0 0.0
    %4809 = vmatprep.subr.mxu0 0.0
    %4810 = vmatpush1.msra.mxu0 0.0
    %4811 = vmatprep.subr.mxu0 0.0
    %4812 = vmatpush1.msra.mxu0 0.0
    %4813 = vmatprep.subr.mxu0 0.0
    %4814 = vmatpush1.msra.mxu0 0.0
    %4815 = vmatprep.subr.mxu0 0.0
    %4816 = vmatpush1.msra.mxu0 0.0
    %4817 = vmatprep.subr.mxu0 0.0
    %4818 = vmatpush1.msra.mxu0 0.0
    %4819 = vmatprep.subr.mxu0 0.0
    %4820 = vmatpush1.msra.mxu0 0.0
    %4821 = vmatprep.mubr.f32.mxu0 0.0
    %4822 = vmatmul.mubr.f32.gmra.mrb[0].mxu0 %v4599
    %v4823 = vpop.f32.mrb[0].mxu0
    %v4824 = vadd.f32 %v4754, %v4823
    %v4825 = vpop.f32.mrb[0].mxu0
    %4826 = vdwg.mxu0
    %v4829 = vunpack.c.l.s4 1983009808
    %v4830 = vunpack.c.0.s8 %v4829
    %v4831 = vlaneseq
    %v4832 = vshrl.u32 %v4831, 7
    %v4833 = vsub.s32 %v4830, %v4832
    %v4834 = vrot.slane %v4824, %v4833
    %4835 = vrot.lane.b32.xlu0 %v4834, 64
    %v4836 = vpop.permute.xlu0 %4835
    %4838 = vst.msk [vmem:[#allocation10 + $0xe] sm:$0x3] %vm490, %v4836
    %v4839 = vld [vmem:[%s167] sm:$0xff]
    %v4840 = vld [vmem:[%s167 + $0x8] sm:$0xff]
    %4841 = vmatprep.subr.mxu0 0.0
    %4842 = vmatpush1.msra.mxu0 %v4839
    %4843 = vmatprep.subr.mxu0 0.0
    %4844 = vmatpush1.msra.mxu0 %v4840
    %4845 = vmatprep.subr.mxu0 0.0
    %4846 = vmatpush1.msra.mxu0 0.0
    %4847 = vmatprep.subr.mxu0 0.0
    %4848 = vmatpush1.msra.mxu0 0.0
    %4849 = vmatprep.subr.mxu0 0.0
    %4850 = vmatpush1.msra.mxu0 0.0
    %4851 = vmatprep.subr.mxu0 0.0
    %4852 = vmatpush1.msra.mxu0 0.0
    %4853 = vmatprep.subr.mxu0 0.0
    %4854 = vmatpush1.msra.mxu0 0.0
    %4855 = vmatprep.subr.mxu0 0.0
    %4856 = vmatpush1.msra.mxu0 0.0
    %4857 = vmatprep.subr.mxu0 0.0
    %4858 = vmatpush1.msra.mxu0 0.0
    %4859 = vmatprep.subr.mxu0 0.0
    %4860 = vmatpush1.msra.mxu0 0.0
    %4861 = vmatprep.subr.mxu0 0.0
    %4862 = vmatpush1.msra.mxu0 0.0
    %4863 = vmatprep.subr.mxu0 0.0
    %4864 = vmatpush1.msra.mxu0 0.0
    %4865 = vmatprep.subr.mxu0 0.0
    %4866 = vmatpush1.msra.mxu0 0.0
    %4867 = vmatprep.subr.mxu0 0.0
    %4868 = vmatpush1.msra.mxu0 0.0
    %4869 = vmatprep.subr.mxu0 0.0
    %4870 = vmatpush1.msra.mxu0 0.0
    %4871 = vmatprep.subr.mxu0 0.0
    %4872 = vmatpush1.msra.mxu0 0.0
    %4873 = vmatprep.subr.mxu0 0.0
    %4874 = vmatpush1.msra.mxu0 0.0
    %4875 = vmatprep.subr.mxu0 0.0
    %4876 = vmatpush1.msra.mxu0 0.0
    %4877 = vmatprep.subr.mxu0 0.0
    %4878 = vmatpush1.msra.mxu0 0.0
    %4879 = vmatprep.subr.mxu0 0.0
    %4880 = vmatpush1.msra.mxu0 0.0
    %4881 = vmatprep.subr.mxu0 0.0
    %4882 = vmatpush1.msra.mxu0 0.0
    %4883 = vmatprep.subr.mxu0 0.0
    %4884 = vmatpush1.msra.mxu0 0.0
    %4885 = vmatprep.subr.mxu0 0.0
    %4886 = vmatpush1.msra.mxu0 0.0
    %4887 = vmatprep.subr.mxu0 0.0
    %4888 = vmatpush1.msra.mxu0 0.0
    %4889 = vmatprep.subr.mxu0 0.0
    %4890 = vmatpush1.msra.mxu0 0.0
    %4891 = vmatprep.subr.mxu0 0.0
    %4892 = vmatpush1.msra.mxu0 0.0
    %4893 = vmatprep.subr.mxu0 0.0
    %4894 = vmatpush1.msra.mxu0 0.0
    %4895 = vmatprep.subr.mxu0 0.0
    %4896 = vmatpush1.msra.mxu0 0.0
    %4897 = vmatprep.subr.mxu0 0.0
    %4898 = vmatpush1.msra.mxu0 0.0
    %4899 = vmatprep.subr.mxu0 0.0
    %4900 = vmatpush1.msra.mxu0 0.0
    %4901 = vmatprep.subr.mxu0 0.0
    %4902 = vmatpush1.msra.mxu0 0.0
    %4903 = vmatprep.subr.mxu0 0.0
    %4904 = vmatpush1.msra.mxu0 0.0
    %4905 = vmatprep.mubr.f32.mxu0 0.0
    %4906 = vmatmul.mubr.f32.gmra.mrb[0].mxu0 %v4599
    %v4907 = vpop.f32.mrb[0].mxu0
    %v4908 = vadd.f32 0.0, %v4907
    %v4909 = vpop.f32.mrb[0].mxu0
    %4910 = vdwg.mxu0
    %v4913 = vunpack.c.l.s4 1983009808
    %v4914 = vunpack.c.0.s8 %v4913
    %v4915 = vlaneseq
    %v4916 = vshrl.u32 %v4915, 7
    %v4917 = vsub.s32 %v4914, %v4916
    %v4918 = vrot.slane %v4908, %v4917
    %4919 = vrot.lane.b32.xlu0 %v4918, 96
    %v4920 = vpop.permute.xlu0 %4919
    %4922 = vst.msk [vmem:[#allocation10 + $0xe] sm:$0x3] %vm651, %v4920
    // Predicated region
    $region30: #{tpu_custom_call.1} parent=1 // pred_check
      _
    $region31: #{tpu_custom_call.1} parent=1 // pred_check_branch
      %4924 = sbr.rel (0) target = $region33
    $region32: #{tpu_custom_call.1} parent=1 // pred_region
      %s4926 = ssub.s32 256, 256
      %4927 = vsyncadd [#allocation5], %s4926
      %s4929 = sshll.u32 [#allocation10], 4
      %s4930 = int_to_ptr.vmem [resolvable:$true] %s4929
      %4932 = dma.vmem_to_hbm [thread:$0]  %s4930, 256, %s4, [#allocation5]
    $region33: #{tpu_custom_call.1} parent=1 // pred_fallthru
      _
    // Predicated region
    $region34: #{tpu_custom_call.1} parent=1 // pred_check
      _
    $region35: #{tpu_custom_call.1} parent=1 // pred_check_branch
      %4934 = sbr.rel (0) target = $region37
    $region36: #{tpu_custom_call.1} parent=1 // pred_region
      %4935 = dma.done [#allocation5], 256
    $region37: #{tpu_custom_call.1} parent=1 // pred_fallthru
      _
    %4936 = vsyncpa [#allocation4], 1
    %4937 = vsyncpa [#allocation9], 1
    %4938 = vsyncpa [#allocation5], 1
    %4939 = vsyncpa [#allocation6], 1

</llo_original>
